<compile_context>
chip_gen: v7x
topology: tpu7x:2x2x1
jax: 0.10.0
libtpu: 0.0.40
codegen_flags: <defaults>
</compile_context>

<pallas_src>
import functools
import math

import jax
import jax.numpy as jnp
from jax.experimental import pallas as pl
from jax.experimental.pallas import tpu as pltpu


def _round_up(x, m):
    return ((x + m - 1) // m) * m


def _cdiv(a, b):
    return (a + b - 1) // b


# ---------------------------------------------------------------------------
# Pallas kernel 1: fused matmul + bias + activation (lane-dense N, bf16 MXU)
# ---------------------------------------------------------------------------
def _mm_kernel(x_ref, w_ref, b_ref, o_ref, *, act):
    acc = jnp.dot(x_ref[...], w_ref[...], preferred_element_type=jnp.float32)
    acc = acc + b_ref[...]
    if act == "relu":
        acc = jnp.maximum(acc, 0.0)
    elif act == "exp":
        acc = jnp.exp(acc)
    o_ref[...] = acc.astype(o_ref.dtype)


def _mm_scale_exp_kernel(x_ref, w_ref, b_ref, s_ref, o_ref, *, exp_lo, exp_hi):
    # Combined centerness / regression head output:
    #   col 0               -> linear (centerness logits)
    #   cols exp_lo:exp_hi  -> exp(per_row_scale * logits)  (FCOS distances)
    acc = jnp.dot(x_ref[...], w_ref[...], preferred_element_type=jnp.float32)
    acc = acc + b_ref[...]
    col = jax.lax.broadcasted_iota(jnp.int32, acc.shape, 1)
    mask = (col >= exp_lo) & (col < exp_hi)
    acc = jnp.where(mask, jnp.exp(acc * s_ref[...]), acc)
    o_ref[...] = acc.astype(o_ref.dtype)


def matmul_bias_act(x, w, b, act="none", out_dtype=jnp.bfloat16,
                    row_scale=None, exp_cols=None):
    """x:(M,K) @ w:(K,N) + b with fused activation.

    K and N are zero-padded to multiples of 128 (lane-dense loads/stores),
    operands are cast to bf16 (f32 accumulation), and M is blocked so larger
    problems get >= 2 parallel grid steps (both v7x TensorCores).
    """
    M, K = x.shape
    _, N = w.shape
    Kp = _round_up(K, 128)
    Np = _round_up(N, 128)
    if M <= 256:
        bm = _round_up(M, 64)
    else:
        bm = min(1024, _round_up(_cdiv(M, 2), 64))
    grid_m = _cdiv(M, bm)
    Mp = grid_m * bm

    xp = jnp.pad(x.astype(jnp.bfloat16), ((0, Mp - M), (0, Kp - K)))
    wp = jnp.pad(w.astype(jnp.bfloat16), ((0, Kp - K), (0, Np - N)))
    bp = jnp.pad(b.astype(jnp.float32), (0, Np - N)).reshape(1, Np)

    in_specs = [
        pl.BlockSpec((bm, Kp), lambda i: (i, 0)),
        pl.BlockSpec((Kp, Np), lambda i: (0, 0)),
        pl.BlockSpec((1, Np), lambda i: (0, 0)),
    ]
    args = [xp, wp, bp]
    if row_scale is None:
        kernel = functools.partial(_mm_kernel, act=act)
    else:
        sp = jnp.pad(row_scale.astype(jnp.float32), (0, Mp - M),
                     constant_values=1.0).reshape(Mp, 1)
        in_specs.append(pl.BlockSpec((bm, 1), lambda i: (i, 0)))
        args.append(sp)
        kernel = functools.partial(_mm_scale_exp_kernel,
                                   exp_lo=exp_cols[0], exp_hi=exp_cols[1])

    out = pl.pallas_call(
        kernel,
        out_shape=jax.ShapeDtypeStruct((Mp, Np), out_dtype),
        grid=(grid_m,),
        in_specs=in_specs,
        out_specs=pl.BlockSpec((bm, Np), lambda i: (i, 0)),
        compiler_params=pltpu.CompilerParams(
            dimension_semantics=("parallel",)),
    )(*args)
    return out[:M, :N]


# ---------------------------------------------------------------------------
# Pallas kernel 2: fused 3x3 conv (im2col done IN-KERNEL via shifted windows)
# ---------------------------------------------------------------------------
def _conv_taps_kernel(x_ref, w_ref, b_ref, o_ref, *, taps, ho, wo, act):
    # x_ref: (Hp, Wp, Cin)  one padded image (grid axis = batch)
    # w_ref: (n_taps, Cin, Cout) f32, b_ref: (1, Cout) f32
    # o_ref: (Ho*Wo, Cout)
    cin = x_ref.shape[-1]
    acc = jnp.zeros((ho * wo, o_ref.shape[-1]), jnp.float32) + b_ref[...]
    for t, (di, dj) in enumerate(taps):
        win = x_ref[pl.ds(di, ho), pl.ds(dj, wo), :].astype(jnp.float32)
        acc = acc + jnp.dot(win.reshape(ho * wo, cin), w_ref[t],
                            preferred_element_type=jnp.float32)
    if act == "relu":
        acc = jnp.maximum(acc, 0.0)
    o_ref[...] = acc.astype(o_ref.dtype)


def _fused_conv(xq, w_taps, b, taps, ho, wo, act, out_dtype):
    B, Hq, Wq, Cq = xq.shape
    n_taps, cin_t, cout = w_taps.shape
    out = pl.pallas_call(
        functools.partial(_conv_taps_kernel, taps=taps, ho=ho, wo=wo, act=act),
        out_shape=jax.ShapeDtypeStruct((B, ho * wo, cout), out_dtype),
        grid=(B,),
        in_specs=[
            pl.BlockSpec((None, Hq, Wq, Cq), lambda bb: (bb, 0, 0, 0)),
            pl.BlockSpec((n_taps, cin_t, cout), lambda bb: (0, 0, 0)),
            pl.BlockSpec((1, cout), lambda bb: (0, 0)),
        ],
        out_specs=pl.BlockSpec((None, ho * wo, cout), lambda bb: (bb, 0, 0)),
        compiler_params=pltpu.CompilerParams(
            dimension_semantics=("parallel",)),
    )(xq, w_taps.astype(jnp.float32), b.astype(jnp.float32).reshape(1, cout))
    return out


# ---------------------------------------------------------------------------
# Convolution wrappers (JAX glue only; all FLOPs run in the Pallas kernels)
# ---------------------------------------------------------------------------
def _im2col(xp, kh, kw, stride):
    # xp: already spatially padded NHWC
    B, Hp, Wp, C = xp.shape
    Ho = (Hp - kh) // stride + 1
    Wo = (Wp - kw) // stride + 1
    cols = []
    for i in range(kh):
        for j in range(kw):
            cols.append(xp[:, i:i + (Ho - 1) * stride + 1:stride,
                              j:j + (Wo - 1) * stride + 1:stride, :])
    col = jnp.concatenate(cols, axis=-1)
    return col.reshape(B * Ho * Wo, kh * kw * C), (B, Ho, Wo)


def _space_to_depth2(xp):
    # (B, Hp, Wp, C) -> (B, Hp/2, Wp/2, 4C); channel = (p*2+q)*C + c
    B, Hp, Wp, C = xp.shape
    y = xp.reshape(B, Hp // 2, 2, Wp // 2, 2, C)
    y = y.transpose(0, 1, 3, 2, 4, 5)
    return y.reshape(B, Hp // 2, Wp // 2, 4 * C)


def _repack_weight_s2d(w):
    # (3,3,Cin,Cout) -> (4, 4*Cin, Cout): stride-2 3x3 conv becomes a stride-1
    # 2x2 conv over the space-to-depth input (exact; unused parity zeroed).
    kh, kw, cin, cout = w.shape
    w6 = jnp.zeros((2, 2, 2, 2, cin, cout), jnp.float32)
    for a in range(2):
        for p in range(2):
            di = 2 * a + p
            if di >= kh:
                continue
            for bq in range(2):
                for q in range(2):
                    dj = 2 * bq + q
                    if dj >= kw:
                        continue
                    w6 = w6.at[a, bq, p, q].set(w[di, dj].astype(jnp.float32))
    return w6.reshape(4, 4 * cin, cout)


_FUSED_XBLOCK_LIMIT = 1 << 20   # padded-layout VMEM bytes per input block


def conv2d(x, w, b, stride=1, padding=0, act="none", out_dtype=jnp.bfloat16):
    """x: (B,H,W,Cin); w: (kh,kw,Cin,Cout) f32; b: (Cout,) f32."""
    B, H, W, Cin = x.shape
    kh, kw, _, Cout = w.shape
    Ho = (H + 2 * padding - kh) // stride + 1
    Wo = (W + 2 * padding - kw) // stride + 1

    # 1x1 conv == plain matmul over flattened positions (no patches at all).
    if kh == 1 and kw == 1 and stride == 1 and padding == 0:
        out = matmul_bias_act(x.reshape(B * H * W, Cin),
                              w.reshape(Cin, Cout), b, act=act,
                              out_dtype=out_dtype)
        return out.reshape(B, Ho, Wo, Cout)

    xp = jnp.pad(x.astype(jnp.bfloat16),
                 ((0, 0), (padding, padding), (padding, padding), (0, 0)))

    fused_ok = (kh == 3 and kw == 3 and stride in (1, 2) and Wo % 8 == 0)
    if fused_ok and stride == 2:
        fused_ok = (xp.shape[1] % 2 == 0) and (xp.shape[2] % 2 == 0)
    if fused_ok:
        if stride == 1:
            taps = tuple((i, j) for i in range(3) for j in range(3))
            w_taps = w.astype(jnp.float32).reshape(9, Cin, Cout)
            xq = xp
        else:
            taps = tuple((i, j) for i in range(2) for j in range(2))
            w_taps = _repack_weight_s2d(w)
            xq = _space_to_depth2(xp)
        _, Hq, Wq, Cq = xq.shape
        xblock_bytes = Hq * _round_up(Wq, 16) * _round_up(Cq, 128) * 2
        if xblock_bytes <= _FUSED_XBLOCK_LIMIT:
            out = _fused_conv(xq, w_taps, b, taps, Ho, Wo, act, out_dtype)
            return out.reshape(B, Ho, Wo, Cout)

    # Fallback (C=3 stem / tiny <=4x4 levels): im2col + lane-dense bf16 matmul.
    col, _ = _im2col(xp, kh, kw, stride)
    out = matmul_bias_act(col, w.reshape(kh * kw * Cin, Cout), b, act=act,
                          out_dtype=out_dtype)
    return out.reshape(B, Ho, Wo, Cout)


def _upsample2x(x):
    # nearest-neighbour 2x (FPN top-down path)
    return jnp.repeat(jnp.repeat(x, 2, axis=1), 2, axis=2)


# ---------------------------------------------------------------------------
# Head helpers: all 5 FPN levels share weights -> ONE pallas_call per conv.
# ---------------------------------------------------------------------------
def _levels_to_cols(feats):
    cols, sizes, shapes = [], [], []
    for f in feats:
        B, h, w_, _ = f.shape
        fp = jnp.pad(f, ((0, 0), (1, 1), (1, 1), (0, 0)))
        col, _ = _im2col(fp, 3, 3, 1)
        cols.append(col)
        sizes.append(col.shape[0])
        shapes.append((B, h, w_))
    return jnp.concatenate(cols, axis=0), sizes, shapes


def shared_conv_levels(feats, w, b, act="relu"):
    col, sizes, shapes = _levels_to_cols(feats)
    cout = w.shape[-1]
    out = matmul_bias_act(col, w.reshape(-1, cout), b, act=act,
                          out_dtype=jnp.bfloat16)
    outs, off = [], 0
    for sz, (B, h, w_) in zip(sizes, shapes):
        outs.append(out[off:off + sz].reshape(B, h, w_, cout))
        off += sz
    return outs


def fcos_head(params, feats, num_classes):
    t = feats
    for (w, b) in params["cls_tower"]:
        t = shared_conv_levels(t, w, b, act="relu")
    r = feats
    for (w, b) in params["reg_tower"]:
        r = shared_conv_levels(r, w, b, act="relu")

    # classification logits: one batched matmul over all 5 levels
    col_t, sizes, shapes = _levels_to_cols(t)
    w_cls, b_cls = params["cls_out"]
    cls_all = matmul_bias_act(col_t, w_cls.reshape(-1, num_classes), b_cls,
                              act="none", out_dtype=jnp.float32)

    # centerness + regression share the reg-tower input -> one combined matmul;
    # reg columns get exp(scale_l * logits) fused in-kernel via per-row scale.
    col_r, sizes_r, _ = _levels_to_cols(r)
    w_ct, b_ct = params["center_out"]
    w_rg, b_rg = params["reg_out"]
    w_cr = jnp.concatenate([w_ct.reshape(-1, 1), w_rg.reshape(-1, 4)], axis=1)
    b_cr = jnp.concatenate([b_ct, b_rg])
    row_scale = jnp.concatenate([
        jnp.full((sz,), params["scales"][lvl], jnp.float32)
        for lvl, sz in enumerate(sizes_r)])
    cr_all = matmul_bias_act(col_r, w_cr, b_cr, out_dtype=jnp.float32,
                             row_scale=row_scale, exp_cols=(1, 5))

    cls_outs, center_outs, reg_outs = [], [], []
    off = 0
    for sz, (B, h, w_) in zip(sizes, shapes):
        cls = cls_all[off:off + sz].reshape(B, h, w_, num_classes)
        cr = cr_all[off:off + sz].reshape(B, h, w_, 5)
        cls_outs.append(jnp.transpose(cls, (0, 3, 1, 2)))
        center_outs.append(jnp.transpose(cr[..., :1], (0, 3, 1, 2)))
        reg_outs.append(jnp.transpose(cr[..., 1:], (0, 3, 1, 2)))
        off += sz
    return cls_outs, center_outs, reg_outs


# ---------------------------------------------------------------------------
# Deterministic parameter initialisation (synthetic weights)
# ---------------------------------------------------------------------------
def _conv_params(key, kh, kw, cin, cout, scale=0.05):
    w = scale * jax.random.normal(key, (kh, kw, cin, cout), jnp.float32)
    b = jnp.zeros((cout,), jnp.float32)
    return w, b


def init_params(key, num_classes, fpn_c=32):
    keys = iter(jax.random.split(key, 32))
    p = {}
    # backbone (ResNet-like strided conv stack -> C3/C4/C5 at strides 8/16/32)
    p["stem"] = _conv_params(next(keys), 3, 3, 3, 16)
    p["layer1"] = _conv_params(next(keys), 3, 3, 16, 32)
    p["layer2"] = _conv_params(next(keys), 3, 3, 32, 64)    # C3
    p["layer3"] = _conv_params(next(keys), 3, 3, 64, 96)    # C4
    p["layer4"] = _conv_params(next(keys), 3, 3, 96, 128)   # C5
    # FPN (num_out=5)
    p["lat3"] = _conv_params(next(keys), 1, 1, 64, fpn_c)
    p["lat4"] = _conv_params(next(keys), 1, 1, 96, fpn_c)
    p["lat5"] = _conv_params(next(keys), 1, 1, 128, fpn_c)
    p["out3"] = _conv_params(next(keys), 3, 3, fpn_c, fpn_c)
    p["out4"] = _conv_params(next(keys), 3, 3, fpn_c, fpn_c)
    p["out5"] = _conv_params(next(keys), 3, 3, fpn_c, fpn_c)
    p["p6"] = _conv_params(next(keys), 3, 3, fpn_c, fpn_c)
    p["p7"] = _conv_params(next(keys), 3, 3, fpn_c, fpn_c)
    # FCOS head (shared towers across levels)
    p["cls_tower"] = [_conv_params(next(keys), 3, 3, fpn_c, fpn_c) for _ in range(4)]
    p["reg_tower"] = [_conv_params(next(keys), 3, 3, fpn_c, fpn_c) for _ in range(4)]
    p["cls_out"] = _conv_params(next(keys), 3, 3, fpn_c, num_classes)
    p["center_out"] = _conv_params(next(keys), 3, 3, fpn_c, 1)
    p["reg_out"] = _conv_params(next(keys), 3, 3, fpn_c, 4)
    p["scales"] = jnp.ones((5,), jnp.float32)   # per-level reg scale
    return p


# ---------------------------------------------------------------------------
# Forward: Fcos.forward(x) -> (cls_outs, center_outs, reg_outs)
# ---------------------------------------------------------------------------
def fcos_forward(params, x_nchw):
    num_classes = params["cls_out"][0].shape[-1]
    x = jnp.transpose(x_nchw, (0, 2, 3, 1)).astype(jnp.bfloat16)  # NCHW -> NHWC
    _, H, W, _ = x.shape
    # TODO(synk): general input sizes need a resize-to-lateral-shape on the FPN
    # top-down path; multiples of 32 make the 2x nearest upsample exact.
    assert H % 32 == 0 and W % 32 == 0

    # ---- backbone ----
    s = conv2d(x, *params["stem"], stride=2, padding=1, act="relu")
    s = conv2d(s, *params["layer1"], stride=2, padding=1, act="relu")
    c3 = conv2d(s, *params["layer2"], stride=2, padding=1, act="relu")   # /8
    c4 = conv2d(c3, *params["layer3"], stride=2, padding=1, act="relu")  # /16
    c5 = conv2d(c4, *params["layer4"], stride=2, padding=1, act="relu")  # /32

    # ---- FPN (5 outputs) ----
    l3 = conv2d(c3, *params["lat3"], stride=1, padding=0)
    l4 = conv2d(c4, *params["lat4"], stride=1, padding=0)
    l5 = conv2d(c5, *params["lat5"], stride=1, padding=0)
    p5 = l5
    p4 = l4 + _upsample2x(p5)
    p3 = l3 + _upsample2x(p4)
    p3 = conv2d(p3, *params["out3"], stride=1, padding=1)
    p4 = conv2d(p4, *params["out4"], stride=1, padding=1)
    p5 = conv2d(p5, *params["out5"], stride=1, padding=1)
    p6 = conv2d(p5, *params["p6"], stride=2, padding=1)                  # /64
    p7 = conv2d(jnp.maximum(p6, 0.0), *params["p7"], stride=2, padding=1)  # /128
    feats = [p3, p4, p5, p6, p7]

    # ---- head (level-batched shared towers + level-batched outputs) ----
    return fcos_head(params, feats, num_classes)


# TODO(synk): calc_loss / postprocess / generate_points are not part of
#             forward(); only the forward pass is implemented here.

if __name__ == "__main__":
    key = jax.random.PRNGKey(0)
    k_param, k_x = jax.random.split(key)

    num_classes = 4
    B, C, H, W = 2, 3, 128, 128       # 128 so the stride-128 level is >= 1x1
    strides = (8, 16, 32, 64, 128)

    params = init_params(k_param, num_classes)
    x = jax.random.normal(k_x, (B, C, H, W), jnp.float32)

    # --- quick numeric check of the fused conv kernel vs XLA reference ---
    def conv_ref(xr, wr, br, stride, padding):
        y = jax.lax.conv_general_dilated(
            xr.astype(jnp.float32), wr.astype(jnp.float32),
            window_strides=(stride, stride),
            padding=((padding, padding), (padding, padding)),
            dimension_numbers=("NHWC", "HWIO", "NHWC"))
        return y + br.reshape(1, 1, 1, -1)

    xt = jax.random.normal(jax.random.PRNGKey(1), (2, 16, 16, 32),
                           jnp.float32).astype(jnp.bfloat16)
    wt = 0.05 * jax.random.normal(jax.random.PRNGKey(2), (3, 3, 32, 32),
                                  jnp.float32)
    bt = 0.01 * jax.random.normal(jax.random.PRNGKey(3), (32,), jnp.float32)
    got = conv2d(xt, wt, bt, stride=1, padding=1).astype(jnp.float32)
    assert float(jnp.max(jnp.abs(got - conv_ref(xt, wt, bt, 1, 1)))) < 5e-2
    got = conv2d(xt, wt, bt, stride=2, padding=1).astype(jnp.float32)
    assert float(jnp.max(jnp.abs(got - conv_ref(xt, wt, bt, 2, 1)))) < 5e-2
    got = conv2d(xt[:, :8, :8, :], wt, bt, stride=2, padding=1).astype(jnp.float32)
    assert float(jnp.max(jnp.abs(
        got - conv_ref(xt[:, :8, :8, :], wt, bt, 2, 1)))) < 5e-2

    # --- full forward ---
    fwd = jax.jit(fcos_forward)
    cls_outs, center_outs, reg_outs = fwd(params, x)
    jax.block_until_ready(cls_outs)
    jax.block_until_ready(center_outs)
    jax.block_until_ready(reg_outs)

    # sanity-check output shapes against the documented per-level convention
    for lvl, stride in enumerate(strides):
        h, w = math.ceil(H / stride), math.ceil(W / stride)
        assert cls_outs[lvl].shape == (B, num_classes, h, w), cls_outs[lvl].shape
        assert center_outs[lvl].shape == (B, 1, h, w), center_outs[lvl].shape
        assert reg_outs[lvl].shape == (B, 4, h, w), reg_outs[lvl].shape
        assert bool(jnp.all(jnp.isfinite(cls_outs[lvl])))
        assert bool(jnp.all(reg_outs[lvl] > 0.0))   # exp() distances are positive

    print("KERNEL_OK")
</pallas_src>

<mosaic_0001>
module attributes {stable_mosaic.version = 11 : i64} {
  func.func @_conv_taps_kernel(%arg0: i32, %arg1: memref<1x18x18x32xbf16, #tpu.memory_space<vmem>>, %arg2: memref<9x32x32xf32, #tpu.memory_space<vmem>>, %arg3: memref<1x32xf32, #tpu.memory_space<vmem>>, %arg4: memref<1x256x32xbf16, #tpu.memory_space<vmem>>) attributes {dimension_semantics = [#tpu.dimension_semantics<parallel>], iteration_bounds = array<i64: 2>, scalar_prefetch = 0 : i64, scratch_operands = 0 : i64, tpu.core_type = #tpu.core_type<tc>, window_params = [{transform_indices = @transform_0, window_bounds = array<i64: 1, 18, 18, 32>}, {pipeline_mode = #tpu.pipeline_mode<synchronous>, transform_indices = @transform_1, window_bounds = array<i64: 9, 32, 32>}, {pipeline_mode = #tpu.pipeline_mode<synchronous>, transform_indices = @transform_2, window_bounds = array<i64: 1, 32>}, {transform_indices = @transform_3, window_bounds = array<i64: 1, 256, 32>}]} {
    %cst = arith.constant 0.000000e+00 : f32
    %0 = vector.broadcast %cst : f32 to vector<256x32xf32>
    %c0 = arith.constant 0 : index
    %c0_0 = arith.constant 0 : index
    %1 = vector.load %arg3[%c0, %c0_0] : memref<1x32xf32, #tpu.memory_space<vmem>>, vector<1x32xf32>
    %2 = vector.broadcast %1 : vector<1x32xf32> to vector<256x32xf32>
    %3 = arith.addf %0, %2 : vector<256x32xf32>
    %c0_1 = arith.constant 0 : index
    %c0_2 = arith.constant 0 : index
    %c0_3 = arith.constant 0 : index
    %c0_4 = arith.constant 0 : index
    %4 = vector.load %arg1[%c0_1, %c0_2, %c0_3, %c0_4] : memref<1x18x18x32xbf16, #tpu.memory_space<vmem>>, vector<1x16x16x32xbf16>
    %5 = vector.shape_cast %4 : vector<1x16x16x32xbf16> to vector<16x16x32xbf16>
    %6 = arith.extf %5 : vector<16x16x32xbf16> to vector<16x16x32xf32>
    %7 = vector.shape_cast %6 : vector<16x16x32xf32> to vector<256x32xf32>
    %c0_5 = arith.constant 0 : index
    %c0_6 = arith.constant 0 : index
    %c0_7 = arith.constant 0 : index
    %8 = vector.load %arg2[%c0_5, %c0_6, %c0_7] : memref<9x32x32xf32, #tpu.memory_space<vmem>>, vector<1x32x32xf32>
    %9 = vector.shape_cast %8 : vector<1x32x32xf32> to vector<32x32xf32>
    %cst_8 = arith.constant dense<0.000000e+00> : vector<256x32xf32>
    %10 = tpu.matmul %7, %9, %cst_8 {dimension_numbers = #tpu.dot_dimension_numbers<[1], [0], [0], [1], [0, 0, 1, 1], [], []>} : vector<256x32xf32>, vector<32x32xf32>, vector<256x32xf32> -> vector<256x32xf32>
    %11 = arith.addf %3, %10 : vector<256x32xf32>
    %c0_9 = arith.constant 0 : index
    %c0_10 = arith.constant 0 : index
    %c1 = arith.constant 1 : index
    %c0_11 = arith.constant 0 : index
    %12 = vector.load %arg1[%c0_9, %c0_10, %c1, %c0_11] : memref<1x18x18x32xbf16, #tpu.memory_space<vmem>>, vector<1x16x16x32xbf16>
    %13 = vector.shape_cast %12 : vector<1x16x16x32xbf16> to vector<16x16x32xbf16>
    %14 = arith.extf %13 : vector<16x16x32xbf16> to vector<16x16x32xf32>
    %15 = vector.shape_cast %14 : vector<16x16x32xf32> to vector<256x32xf32>
    %c1_12 = arith.constant 1 : index
    %c0_13 = arith.constant 0 : index
    %c0_14 = arith.constant 0 : index
    %16 = vector.load %arg2[%c1_12, %c0_13, %c0_14] : memref<9x32x32xf32, #tpu.memory_space<vmem>>, vector<1x32x32xf32>
    %17 = vector.shape_cast %16 : vector<1x32x32xf32> to vector<32x32xf32>
    %cst_15 = arith.constant dense<0.000000e+00> : vector<256x32xf32>
    %18 = tpu.matmul %15, %17, %cst_15 {dimension_numbers = #tpu.dot_dimension_numbers<[1], [0], [0], [1], [0, 0, 1, 1], [], []>} : vector<256x32xf32>, vector<32x32xf32>, vector<256x32xf32> -> vector<256x32xf32>
    %19 = arith.addf %11, %18 : vector<256x32xf32>
    %c0_16 = arith.constant 0 : index
    %c0_17 = arith.constant 0 : index
    %c2 = arith.constant 2 : index
    %c0_18 = arith.constant 0 : index
    %20 = vector.load %arg1[%c0_16, %c0_17, %c2, %c0_18] : memref<1x18x18x32xbf16, #tpu.memory_space<vmem>>, vector<1x16x16x32xbf16>
    %21 = vector.shape_cast %20 : vector<1x16x16x32xbf16> to vector<16x16x32xbf16>
    %22 = arith.extf %21 : vector<16x16x32xbf16> to vector<16x16x32xf32>
    %23 = vector.shape_cast %22 : vector<16x16x32xf32> to vector<256x32xf32>
    %c2_19 = arith.constant 2 : index
    %c0_20 = arith.constant 0 : index
    %c0_21 = arith.constant 0 : index
    %24 = vector.load %arg2[%c2_19, %c0_20, %c0_21] : memref<9x32x32xf32, #tpu.memory_space<vmem>>, vector<1x32x32xf32>
    %25 = vector.shape_cast %24 : vector<1x32x32xf32> to vector<32x32xf32>
    %cst_22 = arith.constant dense<0.000000e+00> : vector<256x32xf32>
    %26 = tpu.matmul %23, %25, %cst_22 {dimension_numbers = #tpu.dot_dimension_numbers<[1], [0], [0], [1], [0, 0, 1, 1], [], []>} : vector<256x32xf32>, vector<32x32xf32>, vector<256x32xf32> -> vector<256x32xf32>
    %27 = arith.addf %19, %26 : vector<256x32xf32>
    %c0_23 = arith.constant 0 : index
    %c1_24 = arith.constant 1 : index
    %c0_25 = arith.constant 0 : index
    %c0_26 = arith.constant 0 : index
    %28 = vector.load %arg1[%c0_23, %c1_24, %c0_25, %c0_26] : memref<1x18x18x32xbf16, #tpu.memory_space<vmem>>, vector<1x16x16x32xbf16>
    %29 = vector.shape_cast %28 : vector<1x16x16x32xbf16> to vector<16x16x32xbf16>
    %30 = arith.extf %29 : vector<16x16x32xbf16> to vector<16x16x32xf32>
    %31 = vector.shape_cast %30 : vector<16x16x32xf32> to vector<256x32xf32>
    %c3 = arith.constant 3 : index
    %c0_27 = arith.constant 0 : index
    %c0_28 = arith.constant 0 : index
    %32 = vector.load %arg2[%c3, %c0_27, %c0_28] : memref<9x32x32xf32, #tpu.memory_space<vmem>>, vector<1x32x32xf32>
    %33 = vector.shape_cast %32 : vector<1x32x32xf32> to vector<32x32xf32>
    %cst_29 = arith.constant dense<0.000000e+00> : vector<256x32xf32>
    %34 = tpu.matmul %31, %33, %cst_29 {dimension_numbers = #tpu.dot_dimension_numbers<[1], [0], [0], [1], [0, 0, 1, 1], [], []>} : vector<256x32xf32>, vector<32x32xf32>, vector<256x32xf32> -> vector<256x32xf32>
    %35 = arith.addf %27, %34 : vector<256x32xf32>
    %c0_30 = arith.constant 0 : index
    %c1_31 = arith.constant 1 : index
    %c1_32 = arith.constant 1 : index
    %c0_33 = arith.constant 0 : index
    %36 = vector.load %arg1[%c0_30, %c1_31, %c1_32, %c0_33] : memref<1x18x18x32xbf16, #tpu.memory_space<vmem>>, vector<1x16x16x32xbf16>
    %37 = vector.shape_cast %36 : vector<1x16x16x32xbf16> to vector<16x16x32xbf16>
    %38 = arith.extf %37 : vector<16x16x32xbf16> to vector<16x16x32xf32>
    %39 = vector.shape_cast %38 : vector<16x16x32xf32> to vector<256x32xf32>
    %c4 = arith.constant 4 : index
    %c0_34 = arith.constant 0 : index
    %c0_35 = arith.constant 0 : index
    %40 = vector.load %arg2[%c4, %c0_34, %c0_35] : memref<9x32x32xf32, #tpu.memory_space<vmem>>, vector<1x32x32xf32>
    %41 = vector.shape_cast %40 : vector<1x32x32xf32> to vector<32x32xf32>
    %cst_36 = arith.constant dense<0.000000e+00> : vector<256x32xf32>
    %42 = tpu.matmul %39, %41, %cst_36 {dimension_numbers = #tpu.dot_dimension_numbers<[1], [0], [0], [1], [0, 0, 1, 1], [], []>} : vector<256x32xf32>, vector<32x32xf32>, vector<256x32xf32> -> vector<256x32xf32>
    %43 = arith.addf %35, %42 : vector<256x32xf32>
    %c0_37 = arith.constant 0 : index
    %c1_38 = arith.constant 1 : index
    %c2_39 = arith.constant 2 : index
    %c0_40 = arith.constant 0 : index
    %44 = vector.load %arg1[%c0_37, %c1_38, %c2_39, %c0_40] : memref<1x18x18x32xbf16, #tpu.memory_space<vmem>>, vector<1x16x16x32xbf16>
    %45 = vector.shape_cast %44 : vector<1x16x16x32xbf16> to vector<16x16x32xbf16>
    %46 = arith.extf %45 : vector<16x16x32xbf16> to vector<16x16x32xf32>
    %47 = vector.shape_cast %46 : vector<16x16x32xf32> to vector<256x32xf32>
    %c5 = arith.constant 5 : index
    %c0_41 = arith.constant 0 : index
    %c0_42 = arith.constant 0 : index
    %48 = vector.load %arg2[%c5, %c0_41, %c0_42] : memref<9x32x32xf32, #tpu.memory_space<vmem>>, vector<1x32x32xf32>
    %49 = vector.shape_cast %48 : vector<1x32x32xf32> to vector<32x32xf32>
    %cst_43 = arith.constant dense<0.000000e+00> : vector<256x32xf32>
    %50 = tpu.matmul %47, %49, %cst_43 {dimension_numbers = #tpu.dot_dimension_numbers<[1], [0], [0], [1], [0, 0, 1, 1], [], []>} : vector<256x32xf32>, vector<32x32xf32>, vector<256x32xf32> -> vector<256x32xf32>
    %51 = arith.addf %43, %50 : vector<256x32xf32>
    %c0_44 = arith.constant 0 : index
    %c2_45 = arith.constant 2 : index
    %c0_46 = arith.constant 0 : index
    %c0_47 = arith.constant 0 : index
    %52 = vector.load %arg1[%c0_44, %c2_45, %c0_46, %c0_47] : memref<1x18x18x32xbf16, #tpu.memory_space<vmem>>, vector<1x16x16x32xbf16>
    %53 = vector.shape_cast %52 : vector<1x16x16x32xbf16> to vector<16x16x32xbf16>
    %54 = arith.extf %53 : vector<16x16x32xbf16> to vector<16x16x32xf32>
    %55 = vector.shape_cast %54 : vector<16x16x32xf32> to vector<256x32xf32>
    %c6 = arith.constant 6 : index
    %c0_48 = arith.constant 0 : index
    %c0_49 = arith.constant 0 : index
    %56 = vector.load %arg2[%c6, %c0_48, %c0_49] : memref<9x32x32xf32, #tpu.memory_space<vmem>>, vector<1x32x32xf32>
    %57 = vector.shape_cast %56 : vector<1x32x32xf32> to vector<32x32xf32>
    %cst_50 = arith.constant dense<0.000000e+00> : vector<256x32xf32>
    %58 = tpu.matmul %55, %57, %cst_50 {dimension_numbers = #tpu.dot_dimension_numbers<[1], [0], [0], [1], [0, 0, 1, 1], [], []>} : vector<256x32xf32>, vector<32x32xf32>, vector<256x32xf32> -> vector<256x32xf32>
    %59 = arith.addf %51, %58 : vector<256x32xf32>
    %c0_51 = arith.constant 0 : index
    %c2_52 = arith.constant 2 : index
    %c1_53 = arith.constant 1 : index
    %c0_54 = arith.constant 0 : index
    %60 = vector.load %arg1[%c0_51, %c2_52, %c1_53, %c0_54] : memref<1x18x18x32xbf16, #tpu.memory_space<vmem>>, vector<1x16x16x32xbf16>
    %61 = vector.shape_cast %60 : vector<1x16x16x32xbf16> to vector<16x16x32xbf16>
    %62 = arith.extf %61 : vector<16x16x32xbf16> to vector<16x16x32xf32>
    %63 = vector.shape_cast %62 : vector<16x16x32xf32> to vector<256x32xf32>
    %c7 = arith.constant 7 : index
    %c0_55 = arith.constant 0 : index
    %c0_56 = arith.constant 0 : index
    %64 = vector.load %arg2[%c7, %c0_55, %c0_56] : memref<9x32x32xf32, #tpu.memory_space<vmem>>, vector<1x32x32xf32>
    %65 = vector.shape_cast %64 : vector<1x32x32xf32> to vector<32x32xf32>
    %cst_57 = arith.constant dense<0.000000e+00> : vector<256x32xf32>
    %66 = tpu.matmul %63, %65, %cst_57 {dimension_numbers = #tpu.dot_dimension_numbers<[1], [0], [0], [1], [0, 0, 1, 1], [], []>} : vector<256x32xf32>, vector<32x32xf32>, vector<256x32xf32> -> vector<256x32xf32>
    %67 = arith.addf %59, %66 : vector<256x32xf32>
    %c0_58 = arith.constant 0 : index
    %c2_59 = arith.constant 2 : index
    %c2_60 = arith.constant 2 : index
    %c0_61 = arith.constant 0 : index
    %68 = vector.load %arg1[%c0_58, %c2_59, %c2_60, %c0_61] : memref<1x18x18x32xbf16, #tpu.memory_space<vmem>>, vector<1x16x16x32xbf16>
    %69 = vector.shape_cast %68 : vector<1x16x16x32xbf16> to vector<16x16x32xbf16>
    %70 = arith.extf %69 : vector<16x16x32xbf16> to vector<16x16x32xf32>
    %71 = vector.shape_cast %70 : vector<16x16x32xf32> to vector<256x32xf32>
    %c8 = arith.constant 8 : index
    %c0_62 = arith.constant 0 : index
    %c0_63 = arith.constant 0 : index
    %72 = vector.load %arg2[%c8, %c0_62, %c0_63] : memref<9x32x32xf32, #tpu.memory_space<vmem>>, vector<1x32x32xf32>
    %73 = vector.shape_cast %72 : vector<1x32x32xf32> to vector<32x32xf32>
    %cst_64 = arith.constant dense<0.000000e+00> : vector<256x32xf32>
    %74 = tpu.matmul %71, %73, %cst_64 {dimension_numbers = #tpu.dot_dimension_numbers<[1], [0], [0], [1], [0, 0, 1, 1], [], []>} : vector<256x32xf32>, vector<32x32xf32>, vector<256x32xf32> -> vector<256x32xf32>
    %75 = arith.addf %67, %74 : vector<256x32xf32>
    %76 = arith.truncf %75 : vector<256x32xf32> to vector<256x32xbf16>
    %c0_65 = arith.constant 0 : index
    %c0_66 = arith.constant 0 : index
    %c0_67 = arith.constant 0 : index
    %77 = vector.load %arg4[%c0_65, %c0_66, %c0_67] : memref<1x256x32xbf16, #tpu.memory_space<vmem>>, vector<1x256x32xbf16>
    %78 = vector.shape_cast %77 : vector<1x256x32xbf16> to vector<256x32xbf16>
    %79 = vector.shape_cast %76 : vector<256x32xbf16> to vector<1x256x32xbf16>
    tpu.vector_store %arg4[%c0_65, %c0_66, %c0_67], %79 {strides = array<i32>} : memref<1x256x32xbf16, #tpu.memory_space<vmem>>, vector<1x256x32xbf16>,
    return
  }
  func.func @transform_0(%arg0: i32) -> (i32, i32, i32, i32) {
    %c0_i32 = arith.constant 0 : i32
    %c0_i32_0 = arith.constant 0 : i32
    %c0_i32_1 = arith.constant 0 : i32
    %c0_i32_2 = arith.constant 0 : i32
    return %arg0, %c0_i32, %c0_i32_0, %c0_i32_1 : i32, i32, i32, i32
  }
  func.func @transform_1(%arg0: i32) -> (i32, i32, i32) {
    %c0_i32 = arith.constant 0 : i32
    %c0_i32_0 = arith.constant 0 : i32
    %c0_i32_1 = arith.constant 0 : i32
    %c0_i32_2 = arith.constant 0 : i32
    return %c0_i32, %c0_i32_0, %c0_i32_1 : i32, i32, i32
  }
  func.func @transform_2(%arg0: i32) -> (i32, i32) {
    %c0_i32 = arith.constant 0 : i32
    %c0_i32_0 = arith.constant 0 : i32
    %c0_i32_1 = arith.constant 0 : i32
    return %c0_i32, %c0_i32_0 : i32, i32
  }
  func.func @transform_3(%arg0: i32) -> (i32, i32, i32) {
    %c0_i32 = arith.constant 0 : i32
    %c0_i32_0 = arith.constant 0 : i32
    %c0_i32_1 = arith.constant 0 : i32
    return %arg0, %c0_i32, %c0_i32_0 : i32, i32, i32
  }
}

</mosaic_0001>

<llo_original>
// kernel: tpu_custom_call.1
$region0: #{tpu_custom_call.1}
  #allocation0 [shape = 'u32[]', space=smem, size = 0x4, offset = 0x4, fixed_abs, tag = 'smem constant byte address 0x4 - core index']
  #allocation1 [shape = 'u32[144,128]{1,0:T(1,128)}', space=vmem, size = 0x12000, scoped, tag = 'internal scratch']
  %s0 = inlined_call_operand.vmem [shape: bf16[2,18,18,32], index: 0, kind: input, shape index: {}]
  %s1 = inlined_call_operand.vmem [shape: f32[9,32,32], index: 1, kind: input, shape index: {}]
  %s2 = inlined_call_operand.vmem [shape: f32[1,32], index: 2, kind: input, shape index: {}]
  %s3 = inlined_call_operand.vmem [shape: bf16[2,256,32], index: 3, kind: output, shape index: {}]
  %s4 = sld [smem:[#allocation0]]
  $region45: #{tpu_custom_call.1} parent=0
    _
  %s6 = ssub.s32 1, %s4
  %s7 = scalar_select 0, %s6, %s4
  loop: start=0, step=1, limit=4
  $region2: #{tpu_custom_call.1} parent=0 // loop_pre_header
    _
  $region3: #{tpu_custom_call.1} parent=0 // loop_header
    %s9 = sphi 0, %s13
    %p10 = scmp.ge.s32.totalorder %s9, 4
    %s19 = sphi 0, %s21
    %s22 = sphi 0, %s19
    %s23 = sphi 0, %s22
    %s39 = sphi 0, %s23
    %s43 = sphi 0, %s43
    %s45 = sphi 0, %s43
    %s46 = sphi 0, %s45
    %s60 = sphi 0, %s46
    %s64 = sphi 0, %s64
    %s66 = sphi 0, %s64
    %s67 = sphi 0, %s66
    %s81 = sphi 0, %s67
    %s87 = sphi 0, %s89
    %s90 = sphi 0, %s87
    %s91 = sphi 0, %s90
    %s107 = sphi 0, %s91
  $region4: #{tpu_custom_call.1} parent=0 // loop_header_branch
    %12 = sbr.rel (%p10) target = $region8
  $region5: #{tpu_custom_call.1} parent=0 // loop_body
    %s14 = ssub.s32 %s9, 1
    %s15 = ssub.s32 %s9, 2
    %s16 = sadd.s32 %s9, 1
    %s17 = ssub.s32 %s9, %s16
    %p18 = scmp.eq.s32.totalorder %s17, 0
    %s20 = sadd.s32 %s19, 1
    %s21 = scalar_select %p18, %s19, %s20
    %p24 = pneg %p18
    %p25 = scmp.eq.s32.totalorder %s9, 1
    %p26 = por %p24, %p25
    %p27 = scmp.ne.s32.totalorder %s19, %s22
    %p28 = scmp.eq.s32.totalorder %s9, 0
    %p29 = por %p27, %p28
    %p30 = scmp.ne.s32.totalorder %s19, %s22
    %p31 = scmp.eq.s32.totalorder %s14, 1
    %p32 = por %p30, %p31
    %p33 = scmp.ne.s32.totalorder %s22, %s23
    %p34 = scmp.eq.s32.totalorder %s14, 0
    %p35 = por %p33, %p34
    %p36 = scmp.ne.s32.totalorder %s22, %s23
    %p37 = scmp.eq.s32.totalorder %s15, 1
    %p38 = por %p36, %p37
    %p40 = scmp.ne.s32.totalorder %s23, %s39
    %p41 = scmp.eq.s32.totalorder %s15, 0
    %p42 = por %p40, %p41
    %s44 = sadd.s32 %s43, 1
    %p47 = scmp.eq.s32.totalorder %s9, 1
    %p48 = scmp.ne.s32.totalorder %s43, %s45
    %p49 = scmp.eq.s32.totalorder %s9, 0
    %p50 = por %p48, %p49
    %p51 = scmp.ne.s32.totalorder %s43, %s45
    %p52 = scmp.eq.s32.totalorder %s14, 1
    %p53 = por %p51, %p52
    %p54 = scmp.ne.s32.totalorder %s45, %s46
    %p55 = scmp.eq.s32.totalorder %s14, 0
    %p56 = por %p54, %p55
    %p57 = scmp.ne.s32.totalorder %s45, %s46
    %p58 = scmp.eq.s32.totalorder %s15, 1
    %p59 = por %p57, %p58
    %p61 = scmp.ne.s32.totalorder %s46, %s60
    %p62 = scmp.eq.s32.totalorder %s15, 0
    %p63 = por %p61, %p62
    %s65 = sadd.s32 %s64, 1
    %p68 = scmp.eq.s32.totalorder %s9, 1
    %p69 = scmp.ne.s32.totalorder %s64, %s66
    %p70 = scmp.eq.s32.totalorder %s9, 0
    %p71 = por %p69, %p70
    %p72 = scmp.ne.s32.totalorder %s64, %s66
    %p73 = scmp.eq.s32.totalorder %s14, 1
    %p74 = por %p72, %p73
    %p75 = scmp.ne.s32.totalorder %s66, %s67
    %p76 = scmp.eq.s32.totalorder %s14, 0
    %p77 = por %p75, %p76
    %p78 = scmp.ne.s32.totalorder %s66, %s67
    %p79 = scmp.eq.s32.totalorder %s15, 1
    %p80 = por %p78, %p79
    %p82 = scmp.ne.s32.totalorder %s67, %s81
    %p83 = scmp.eq.s32.totalorder %s15, 0
    %p84 = por %p82, %p83
    %s85 = ssub.s32 %s9, %s16
    %p86 = scmp.eq.s32.totalorder %s85, 0
    %s88 = sadd.s32 %s87, 1
    %s89 = scalar_select %p86, %s87, %s88
    %p92 = pneg %p86
    %p93 = scmp.eq.s32.totalorder %s9, 1
    %p94 = por %p92, %p93
    %p95 = scmp.ne.s32.totalorder %s87, %s90
    %p96 = scmp.eq.s32.totalorder %s9, 0
    %p97 = por %p95, %p96
    %p98 = scmp.ne.s32.totalorder %s87, %s90
    %p99 = scmp.eq.s32.totalorder %s14, 1
    %p100 = por %p98, %p99
    %p101 = scmp.ne.s32.totalorder %s90, %s91
    %p102 = scmp.eq.s32.totalorder %s14, 0
    %p103 = por %p101, %p102
    %p104 = scmp.ne.s32.totalorder %s90, %s91
    %p105 = scmp.eq.s32.totalorder %s15, 1
    %p106 = por %p104, %p105
    %p108 = scmp.ne.s32.totalorder %s91, %s107
    %p109 = scmp.eq.s32.totalorder %s15, 0
    %p110 = por %p108, %p109
    %p111 = scmp.le.s32.totalorder 1, %s9
    %p112 = scmp.lt.s32.totalorder %s9, 3
    %p113 = pnand %p111, %p112
    %p114 = pneg %p113
    // Predicated region
    $region9: #{tpu_custom_call.1} parent=5 // pred_check
      _
    $region10: #{tpu_custom_call.1} parent=5 // pred_check_branch
      %116 = sbr.rel (%p113) target = $region12
    $region11: #{tpu_custom_call.1} parent=5 // pred_region
      %s117 = ssub.s32 %s9, 1
      // Predicated region
      $region13: #{tpu_custom_call.1} parent=11 // pred_check
        %p118 = pneg %p56
      $region14: #{tpu_custom_call.1} parent=11 // pred_check_branch
        %120 = sbr.rel (%p118) target = $region16
      $region15: #{tpu_custom_call.1} parent=11 // pred_region
        _
      $region16: #{tpu_custom_call.1} parent=11 // pred_fallthru
        _
      // Predicated region
      $region17: #{tpu_custom_call.1} parent=11 // pred_check
        %p121 = pneg %p77
      $region18: #{tpu_custom_call.1} parent=11 // pred_check_branch
        %123 = sbr.rel (%p121) target = $region20
      $region19: #{tpu_custom_call.1} parent=11 // pred_region
        _
      $region20: #{tpu_custom_call.1} parent=11 // pred_fallthru
        _
    $region12: #{tpu_custom_call.1} parent=5 // pred_fallthru
      _
    %p124 = scmp.lt.s32.totalorder %s9, 2
    // Predicated region
    $region21: #{tpu_custom_call.1} parent=5 // pred_check
      %p125 = pneg %p124
    $region22: #{tpu_custom_call.1} parent=5 // pred_check_branch
      %127 = sbr.rel (%p125) target = $region24
    $region23: #{tpu_custom_call.1} parent=5 // pred_region
      // Predicated region
      $region25: #{tpu_custom_call.1} parent=23 // pred_check
        %p128 = pneg %p29
      $region26: #{tpu_custom_call.1} parent=23 // pred_check_branch
        %130 = sbr.rel (%p128) target = $region28
      $region27: #{tpu_custom_call.1} parent=23 // pred_region
        %p131 = scmp.lt.s32.totalorder %s9, 1
        %s132 = scalar_select %p131, %s9, 1
        %s133 = smul.addr %s132, 54
        %s134 = smul.addr %s133, 4
        %s135 = scalar_lea.vmem %s0, %s134
      $region28: #{tpu_custom_call.1} parent=23 // pred_fallthru
        _
    $region24: #{tpu_custom_call.1} parent=5 // pred_fallthru
      _
    %p136 = scmp.le.s32.totalorder 1, %s9
    %p137 = scmp.lt.s32.totalorder %s9, 3
    %p138 = pnand %p136, %p137
    %p139 = pneg %p138
    // Predicated region
    $region29: #{tpu_custom_call.1} parent=5 // pred_check
      _
    $region30: #{tpu_custom_call.1} parent=5 // pred_check_branch
      %141 = sbr.rel (%p138) target = $region32
    $region31: #{tpu_custom_call.1} parent=5 // pred_region
      %s142 = ssub.s32 %s9, 1
      %p143 = scmp.lt.s32.totalorder %s14, 1
      %s144 = scalar_select %p143, %s14, 1
      %s145 = smul.addr %s144, 54
      %s146 = smul.addr %s145, 4
      %s147 = scalar_lea.vmem %s0, %s146
      %p148 = pneg %p35
      %p149 = pneg %p32
      %p150 = pneg %p56
      %p151 = pneg %p53
      %p152 = pneg %p77
      %p153 = pneg %p74
      %p154 = pneg %p103
      %p155 = pneg %p100
      %p156 = scmp.lt.s32.totalorder %s14, 1
      %s157 = scalar_select %p156, %s14, 1
      %s158 = smul.addr %s157, 32
      %s159 = smul.addr %s158, 4
      %s160 = scalar_lea.vmem %s3, %s159
      %p161 = scmp.lt.s32.totalorder %s14, 1
      %s162 = scalar_select %p161, %s14, 1
      %s163 = smul.addr %s162, 54
      %s164 = smul.addr %s163, 4
      %s165 = scalar_lea.vmem %s0, %s164
      %p166 = scmp.lt.s32.totalorder %s14, 1
      %s167 = scalar_select %p166, %s14, 1
      %s168 = smul.addr %s167, 32
      %s169 = smul.addr %s168, 4
      %s170 = scalar_lea.vmem %s3, %s169
      %v171 = vld [vmem:[%s2] sm:$0x1]
      %v173 = vlaneseq
      %v174 = vshrl.u32 %v173, 7
      %v175 = vsub.s32 0, %v174
      %v176 = vrot.slane %v171, %v175
      %v178 = vadd.f32 %v176, 0.0
      %v179 = vld [vmem:[%s165] sm:$0xf]
      %v180 = vld [vmem:[%s165 + $0x4] sm:$0xf]
      %v181 = vld [vmem:[%s165 + $0xc] sm:$0xf]
      %v182 = vld [vmem:[%s165 + $0x10] sm:$0xf]
      %v183 = vld [vmem:[%s165 + $0x18] sm:$0xf]
      %v184 = vld [vmem:[%s165 + $0x1c] sm:$0xf]
      %v185 = vld [vmem:[%s165 + $0x24] sm:$0xf]
      %v186 = vld [vmem:[%s165 + $0x28] sm:$0xf]
      %v187 = vld [vmem:[%s165 + $0x30] sm:$0xf]
      %v188 = vld [vmem:[%s165 + $0x34] sm:$0xf]
      %v189 = vld [vmem:[%s165 + $0x3c] sm:$0xf]
      %v190 = vld [vmem:[%s165 + $0x40] sm:$0xf]
      %v191 = vld [vmem:[%s165 + $0x48] sm:$0xf]
      %v192 = vld [vmem:[%s165 + $0x4c] sm:$0xf]
      %v193 = vld [vmem:[%s165 + $0x54] sm:$0xf]
      %v194 = vld [vmem:[%s165 + $0x58] sm:$0xf]
      %v195 = vld [vmem:[%s165 + $0x60] sm:$0xf]
      %v196 = vld [vmem:[%s165 + $0x64] sm:$0xf]
      %v197 = vld [vmem:[%s165 + $0x6c] sm:$0xf]
      %v198 = vld [vmem:[%s165 + $0x70] sm:$0xf]
      %v199 = vld [vmem:[%s165 + $0x78] sm:$0xf]
      %v200 = vld [vmem:[%s165 + $0x7c] sm:$0xf]
      %v201 = vld [vmem:[%s165 + $0x84] sm:$0xf]
      %v202 = vld [vmem:[%s165 + $0x88] sm:$0xf]
      %v203 = vld [vmem:[%s165 + $0x90] sm:$0xf]
      %v204 = vld [vmem:[%s165 + $0x94] sm:$0xf]
      %v205 = vld [vmem:[%s165 + $0x9c] sm:$0xf]
      %v206 = vld [vmem:[%s165 + $0xa0] sm:$0xf]
      %v207 = vld [vmem:[%s165 + $0xa8] sm:$0xf]
      %v208 = vld [vmem:[%s165 + $0xac] sm:$0xf]
      %v209 = vld [vmem:[%s165 + $0xb4] sm:$0xf]
      %v210 = vld [vmem:[%s165 + $0xb8] sm:$0xf]
      %v211 = vunpack.c.l.bf16 %v179
      %v212 = vunpack.c.l.bf16 %v180
      %v213 = vunpack.c.l.bf16 %v181
      %v214 = vunpack.c.l.bf16 %v182
      %v215 = vunpack.c.l.bf16 %v183
      %v216 = vunpack.c.l.bf16 %v184
      %v217 = vunpack.c.l.bf16 %v185
      %v218 = vunpack.c.l.bf16 %v186
      %v219 = vunpack.c.l.bf16 %v187
      %v220 = vunpack.c.l.bf16 %v188
      %v221 = vunpack.c.l.bf16 %v189
      %v222 = vunpack.c.l.bf16 %v190
      %v223 = vunpack.c.l.bf16 %v191
      %v224 = vunpack.c.l.bf16 %v192
      %v225 = vunpack.c.l.bf16 %v193
      %v226 = vunpack.c.l.bf16 %v194
      %v227 = vunpack.c.l.bf16 %v195
      %v228 = vunpack.c.l.bf16 %v196
      %v229 = vunpack.c.l.bf16 %v197
      %v230 = vunpack.c.l.bf16 %v198
      %v231 = vunpack.c.l.bf16 %v199
      %v232 = vunpack.c.l.bf16 %v200
      %v233 = vunpack.c.l.bf16 %v201
      %v234 = vunpack.c.l.bf16 %v202
      %v235 = vunpack.c.l.bf16 %v203
      %v236 = vunpack.c.l.bf16 %v204
      %v237 = vunpack.c.l.bf16 %v205
      %v238 = vunpack.c.l.bf16 %v206
      %v239 = vunpack.c.l.bf16 %v207
      %v240 = vunpack.c.l.bf16 %v208
      %v241 = vunpack.c.l.bf16 %v209
      %v242 = vunpack.c.l.bf16 %v210
      %v243 = vld [vmem:[%s1] sm:$0xff]
      %v244 = vld [vmem:[%s1 + $0x8] sm:$0xff]
      %v245 = vld [vmem:[%s1 + $0x10] sm:$0xff]
      %v246 = vld [vmem:[%s1 + $0x18] sm:$0xff]
      %vm247 = vcmask 261120
      %v249 = vsel %vm247, %v211, 0
      %v252 = vsel %vm247, %v212, 0
      %v255 = vsel %vm247, %v213, 0
      %v258 = vsel %vm247, %v214, 0
      %v261 = vsel %vm247, %v215, 0
      %v264 = vsel %vm247, %v216, 0
      %v267 = vsel %vm247, %v217, 0
      %v270 = vsel %vm247, %v218, 0
      %v273 = vsel %vm247, %v219, 0
      %v276 = vsel %vm247, %v220, 0
      %v279 = vsel %vm247, %v221, 0
      %v282 = vsel %vm247, %v222, 0
      %v285 = vsel %vm247, %v223, 0
      %v288 = vsel %vm247, %v224, 0
      %v291 = vsel %vm247, %v225, 0
      %v294 = vsel %vm247, %v226, 0
      %v297 = vsel %vm247, %v227, 0
      %v300 = vsel %vm247, %v228, 0
      %v303 = vsel %vm247, %v229, 0
      %v306 = vsel %vm247, %v230, 0
      %v309 = vsel %vm247, %v231, 0
      %v312 = vsel %vm247, %v232, 0
      %v315 = vsel %vm247, %v233, 0
      %v318 = vsel %vm247, %v234, 0
      %v321 = vsel %vm247, %v235, 0
      %v324 = vsel %vm247, %v236, 0
      %v327 = vsel %vm247, %v237, 0
      %v330 = vsel %vm247, %v238, 0
      %v333 = vsel %vm247, %v239, 0
      %v336 = vsel %vm247, %v240, 0
      %v339 = vsel %vm247, %v241, 0
      %v342 = vsel %vm247, %v242, 0
      %344 = vmatprep.subr.mxu0 0.0
      %345 = vmatpush1.msra.mxu0 %v243
      %346 = vmatprep.subr.mxu0 0.0
      %347 = vmatpush1.msra.mxu0 %v244
      %348 = vmatprep.subr.mxu0 0.0
      %349 = vmatpush1.msra.mxu0 %v245
      %350 = vmatprep.subr.mxu0 0.0
      %351 = vmatpush1.msra.mxu0 %v246
      %352 = vmatprep.subr.mxu0 0.0
      %353 = vmatpush1.msra.mxu0 0.0
      %354 = vmatprep.subr.mxu0 0.0
      %355 = vmatpush1.msra.mxu0 0.0
      %356 = vmatprep.subr.mxu0 0.0
      %357 = vmatpush1.msra.mxu0 0.0
      %358 = vmatprep.subr.mxu0 0.0
      %359 = vmatpush1.msra.mxu0 0.0
      %360 = vmatprep.subr.mxu0 0.0
      %361 = vmatpush1.msra.mxu0 0.0
      %362 = vmatprep.subr.mxu0 0.0
      %363 = vmatpush1.msra.mxu0 0.0
      %364 = vmatprep.subr.mxu0 0.0
      %365 = vmatpush1.msra.mxu0 0.0
      %366 = vmatprep.subr.mxu0 0.0
      %367 = vmatpush1.msra.mxu0 0.0
      %368 = vmatprep.subr.mxu0 0.0
      %369 = vmatpush1.msra.mxu0 0.0
      %370 = vmatprep.subr.mxu0 0.0
      %371 = vmatpush1.msra.mxu0 0.0
      %372 = vmatprep.subr.mxu0 0.0
      %373 = vmatpush1.msra.mxu0 0.0
      %374 = vmatprep.subr.mxu0 0.0
      %375 = vmatpush1.msra.mxu0 0.0
      %376 = vmatprep.subr.mxu0 0.0
      %377 = vmatpush1.msra.mxu0 0.0
      %378 = vmatprep.subr.mxu0 0.0
      %379 = vmatpush1.msra.mxu0 0.0
      %380 = vmatprep.subr.mxu0 0.0
      %381 = vmatpush1.msra.mxu0 0.0
      %382 = vmatprep.subr.mxu0 0.0
      %383 = vmatpush1.msra.mxu0 0.0
      %384 = vmatprep.subr.mxu0 0.0
      %385 = vmatpush1.msra.mxu0 0.0
      %386 = vmatprep.subr.mxu0 0.0
      %387 = vmatpush1.msra.mxu0 0.0
      %388 = vmatprep.subr.mxu0 0.0
      %389 = vmatpush1.msra.mxu0 0.0
      %390 = vmatprep.subr.mxu0 0.0
      %391 = vmatpush1.msra.mxu0 0.0
      %392 = vmatprep.subr.mxu0 0.0
      %393 = vmatpush1.msra.mxu0 0.0
      %394 = vmatprep.subr.mxu0 0.0
      %395 = vmatpush1.msra.mxu0 0.0
      %396 = vmatprep.subr.mxu0 0.0
      %397 = vmatpush1.msra.mxu0 0.0
      %398 = vmatprep.subr.mxu0 0.0
      %399 = vmatpush1.msra.mxu0 0.0
      %400 = vmatprep.subr.mxu0 0.0
      %401 = vmatpush1.msra.mxu0 0.0
      %402 = vmatprep.subr.mxu0 0.0
      %403 = vmatpush1.msra.mxu0 0.0
      %404 = vmatprep.subr.mxu0 0.0
      %405 = vmatpush1.msra.mxu0 0.0
      %406 = vmatprep.subr.mxu0 0.0
      %407 = vmatpush1.msra.mxu0 0.0
      %408 = vmatprep.mubr.f32.mxu0 0.0
      %409 = vmatmul.mubr.f32.gmra.mrb[0].mxu0 %v249
      %v410 = vpop.f32.mrb[0].mxu0
      %v411 = vadd.f32 0.0, %v410
      %v412 = vpop.f32.mrb[0].mxu0
      %413 = vmatprep.mubr.f32.mxu0 0.0
      %414 = vmatmul.mubr.f32.gmra.mrb[0].mxu0 %v252
      %v415 = vpop.f32.mrb[0].mxu0
      %v416 = vadd.f32 0.0, %v415
      %v417 = vpop.f32.mrb[0].mxu0
      %418 = vmatprep.mubr.f32.mxu0 0.0
      %419 = vmatmul.mubr.f32.gmra.mrb[0].mxu0 %v255
      %v420 = vpop.f32.mrb[0].mxu0
      %v421 = vadd.f32 0.0, %v420
      %v422 = vpop.f32.mrb[0].mxu0
      %423 = vmatprep.mubr.f32.mxu0 0.0
      %424 = vmatmul.mubr.f32.gmra.mrb[0].mxu0 %v258
      %v425 = vpop.f32.mrb[0].mxu0
      %v426 = vadd.f32 0.0, %v425
      %v427 = vpop.f32.mrb[0].mxu0
      %428 = vmatprep.mubr.f32.mxu0 0.0
      %429 = vmatmul.mubr.f32.gmra.mrb[0].mxu0 %v261
      %v430 = vpop.f32.mrb[0].mxu0
      %v431 = vadd.f32 0.0, %v430
      %v432 = vpop.f32.mrb[0].mxu0
      %433 = vmatprep.mubr.f32.mxu0 0.0
      %434 = vmatmul.mubr.f32.gmra.mrb[0].mxu0 %v264
      %v435 = vpop.f32.mrb[0].mxu0
      %v436 = vadd.f32 0.0, %v435
      %v437 = vpop.f32.mrb[0].mxu0
      %438 = vmatprep.mubr.f32.mxu0 0.0
      %439 = vmatmul.mubr.f32.gmra.mrb[0].mxu0 %v267
      %v440 = vpop.f32.mrb[0].mxu0
      %v441 = vadd.f32 0.0, %v440
      %v442 = vpop.f32.mrb[0].mxu0
      %443 = vmatprep.mubr.f32.mxu0 0.0
      %444 = vmatmul.mubr.f32.gmra.mrb[0].mxu0 %v270
      %v445 = vpop.f32.mrb[0].mxu0
      %v446 = vadd.f32 0.0, %v445
      %v447 = vpop.f32.mrb[0].mxu0
      %448 = vmatprep.mubr.f32.mxu0 0.0
      %449 = vmatmul.mubr.f32.gmra.mrb[0].mxu0 %v273
      %v450 = vpop.f32.mrb[0].mxu0
      %v451 = vadd.f32 0.0, %v450
      %v452 = vpop.f32.mrb[0].mxu0
      %453 = vmatprep.mubr.f32.mxu0 0.0
      %454 = vmatmul.mubr.f32.gmra.mrb[0].mxu0 %v276
      %v455 = vpop.f32.mrb[0].mxu0
      %v456 = vadd.f32 0.0, %v455
      %v457 = vpop.f32.mrb[0].mxu0
      %458 = vmatprep.mubr.f32.mxu0 0.0
      %459 = vmatmul.mubr.f32.gmra.mrb[0].mxu0 %v279
      %v460 = vpop.f32.mrb[0].mxu0
      %v461 = vadd.f32 0.0, %v460
      %v462 = vpop.f32.mrb[0].mxu0
      %463 = vmatprep.mubr.f32.mxu0 0.0
      %464 = vmatmul.mubr.f32.gmra.mrb[0].mxu0 %v282
      %v465 = vpop.f32.mrb[0].mxu0
      %v466 = vadd.f32 0.0, %v465
      %v467 = vpop.f32.mrb[0].mxu0
      %468 = vmatprep.mubr.f32.mxu0 0.0
      %469 = vmatmul.mubr.f32.gmra.mrb[0].mxu0 %v285
      %v470 = vpop.f32.mrb[0].mxu0
      %v471 = vadd.f32 0.0, %v470
      %v472 = vpop.f32.mrb[0].mxu0
      %473 = vmatprep.mubr.f32.mxu0 0.0
      %474 = vmatmul.mubr.f32.gmra.mrb[0].mxu0 %v288
      %v475 = vpop.f32.mrb[0].mxu0
      %v476 = vadd.f32 0.0, %v475
      %v477 = vpop.f32.mrb[0].mxu0
      %478 = vmatprep.mubr.f32.mxu0 0.0
      %479 = vmatmul.mubr.f32.gmra.mrb[0].mxu0 %v291
      %v480 = vpop.f32.mrb[0].mxu0
      %v481 = vadd.f32 0.0, %v480
      %v482 = vpop.f32.mrb[0].mxu0
      %483 = vmatprep.mubr.f32.mxu0 0.0
      %484 = vmatmul.mubr.f32.gmra.mrb[0].mxu0 %v294
      %v485 = vpop.f32.mrb[0].mxu0
      %v486 = vadd.f32 0.0, %v485
      %v487 = vpop.f32.mrb[0].mxu0
      %488 = vmatprep.mubr.f32.mxu0 0.0
      %489 = vmatmul.mubr.f32.gmra.mrb[0].mxu0 %v297
      %v490 = vpop.f32.mrb[0].mxu0
      %v491 = vadd.f32 0.0, %v490
      %v492 = vpop.f32.mrb[0].mxu0
      %493 = vmatprep.mubr.f32.mxu0 0.0
      %494 = vmatmul.mubr.f32.gmra.mrb[0].mxu0 %v300
      %v495 = vpop.f32.mrb[0].mxu0
      %v496 = vadd.f32 0.0, %v495
      %v497 = vpop.f32.mrb[0].mxu0
      %498 = vmatprep.mubr.f32.mxu0 0.0
      %499 = vmatmul.mubr.f32.gmra.mrb[0].mxu0 %v303
      %v500 = vpop.f32.mrb[0].mxu0
      %v501 = vadd.f32 0.0, %v500
      %v502 = vpop.f32.mrb[0].mxu0
      %503 = vmatprep.mubr.f32.mxu0 0.0
      %504 = vmatmul.mubr.f32.gmra.mrb[0].mxu0 %v306
      %v505 = vpop.f32.mrb[0].mxu0
      %v506 = vadd.f32 0.0, %v505
      %v507 = vpop.f32.mrb[0].mxu0
      %508 = vmatprep.mubr.f32.mxu0 0.0
      %509 = vmatmul.mubr.f32.gmra.mrb[0].mxu0 %v309
      %v510 = vpop.f32.mrb[0].mxu0
      %v511 = vadd.f32 0.0, %v510
      %v512 = vpop.f32.mrb[0].mxu0
      %513 = vmatprep.mubr.f32.mxu0 0.0
      %514 = vmatmul.mubr.f32.gmra.mrb[0].mxu0 %v312
      %v515 = vpop.f32.mrb[0].mxu0
      %v516 = vadd.f32 0.0, %v515
      %v517 = vpop.f32.mrb[0].mxu0
      %518 = vmatprep.mubr.f32.mxu0 0.0
      %519 = vmatmul.mubr.f32.gmra.mrb[0].mxu0 %v315
      %v520 = vpop.f32.mrb[0].mxu0
      %v521 = vadd.f32 0.0, %v520
      %v522 = vpop.f32.mrb[0].mxu0
      %523 = vmatprep.mubr.f32.mxu0 0.0
      %524 = vmatmul.mubr.f32.gmra.mrb[0].mxu0 %v318
      %v525 = vpop.f32.mrb[0].mxu0
      %v526 = vadd.f32 0.0, %v525
      %v527 = vpop.f32.mrb[0].mxu0
      %528 = vmatprep.mubr.f32.mxu0 0.0
      %529 = vmatmul.mubr.f32.gmra.mrb[0].mxu0 %v321
      %v530 = vpop.f32.mrb[0].mxu0
      %v531 = vadd.f32 0.0, %v530
      %v532 = vpop.f32.mrb[0].mxu0
      %533 = vmatprep.mubr.f32.mxu0 0.0
      %534 = vmatmul.mubr.f32.gmra.mrb[0].mxu0 %v324
      %v535 = vpop.f32.mrb[0].mxu0
      %v536 = vadd.f32 0.0, %v535
      %v537 = vpop.f32.mrb[0].mxu0
      %538 = vmatprep.mubr.f32.mxu0 0.0
      %539 = vmatmul.mubr.f32.gmra.mrb[0].mxu0 %v327
      %v540 = vpop.f32.mrb[0].mxu0
      %v541 = vadd.f32 0.0, %v540
      %v542 = vpop.f32.mrb[0].mxu0
      %543 = vmatprep.mubr.f32.mxu0 0.0
      %544 = vmatmul.mubr.f32.gmra.mrb[0].mxu0 %v330
      %v545 = vpop.f32.mrb[0].mxu0
      %v546 = vadd.f32 0.0, %v545
      %v547 = vpop.f32.mrb[0].mxu0
      %548 = vmatprep.mubr.f32.mxu0 0.0
      %549 = vmatmul.mubr.f32.gmra.mrb[0].mxu0 %v333
      %v550 = vpop.f32.mrb[0].mxu0
      %v551 = vadd.f32 0.0, %v550
      %v552 = vpop.f32.mrb[0].mxu0
      %553 = vmatprep.mubr.f32.mxu0 0.0
      %554 = vmatmul.mubr.f32.gmra.mrb[0].mxu0 %v336
      %v555 = vpop.f32.mrb[0].mxu0
      %v556 = vadd.f32 0.0, %v555
      %v557 = vpop.f32.mrb[0].mxu0
      %558 = vmatprep.mubr.f32.mxu0 0.0
      %559 = vmatmul.mubr.f32.gmra.mrb[0].mxu0 %v339
      %v560 = vpop.f32.mrb[0].mxu0
      %v561 = vadd.f32 0.0, %v560
      %v562 = vpop.f32.mrb[0].mxu0
      %563 = vmatprep.mubr.f32.mxu0 0.0
      %564 = vmatmul.mubr.f32.gmra.mrb[0].mxu0 %v342
      %v565 = vpop.f32.mrb[0].mxu0
      %v566 = vadd.f32 0.0, %v565
      %v567 = vpop.f32.mrb[0].mxu0
      %568 = vdwg.mxu0
      %v569 = vadd.f32 %v178, %v411
      %v570 = vadd.f32 %v178, %v416
      %v571 = vadd.f32 %v178, %v421
      %v572 = vadd.f32 %v178, %v426
      %v573 = vadd.f32 %v178, %v431
      %v574 = vadd.f32 %v178, %v436
      %v575 = vadd.f32 %v178, %v441
      %v576 = vadd.f32 %v178, %v446
      %v577 = vadd.f32 %v178, %v451
      %v578 = vadd.f32 %v178, %v456
      %v579 = vadd.f32 %v178, %v461
      %v580 = vadd.f32 %v178, %v466
      %v581 = vadd.f32 %v178, %v471
      %v582 = vadd.f32 %v178, %v476
      %v583 = vadd.f32 %v178, %v481
      %v584 = vadd.f32 %v178, %v486
      %v585 = vadd.f32 %v178, %v491
      %v586 = vadd.f32 %v178, %v496
      %v587 = vadd.f32 %v178, %v501
      %v588 = vadd.f32 %v178, %v506
      %v589 = vadd.f32 %v178, %v511
      %v590 = vadd.f32 %v178, %v516
      %v591 = vadd.f32 %v178, %v521
      %v592 = vadd.f32 %v178, %v526
      %v593 = vadd.f32 %v178, %v531
      %v594 = vadd.f32 %v178, %v536
      %v595 = vadd.f32 %v178, %v541
      %v596 = vadd.f32 %v178, %v546
      %v597 = vadd.f32 %v178, %v551
      %v598 = vadd.f32 %v178, %v556
      %v599 = vadd.f32 %v178, %v561
      %v600 = vadd.f32 %v178, %v566
      %v601 = vld [vmem:[%s165] sm:$0xf]
      %v602 = vld [vmem:[%s165 + $0x4] sm:$0xf]
      %v603 = vld [vmem:[%s165 + $0x8] sm:$0x1]
      %v604 = vld [vmem:[%s165 + $0xc] sm:$0xf]
      %v605 = vld [vmem:[%s165 + $0x10] sm:$0xf]
      %v606 = vld [vmem:[%s165 + $0x14] sm:$0x1]
      %v607 = vld [vmem:[%s165 + $0x18] sm:$0xf]
      %v608 = vld [vmem:[%s165 + $0x1c] sm:$0xf]
      %v609 = vld [vmem:[%s165 + $0x20] sm:$0x1]
      %v610 = vld [vmem:[%s165 + $0x24] sm:$0xf]
      %v611 = vld [vmem:[%s165 + $0x28] sm:$0xf]
      %v612 = vld [vmem:[%s165 + $0x2c] sm:$0x1]
      %v613 = vld [vmem:[%s165 + $0x30] sm:$0xf]
      %v614 = vld [vmem:[%s165 + $0x34] sm:$0xf]
      %v615 = vld [vmem:[%s165 + $0x38] sm:$0x1]
      %v616 = vld [vmem:[%s165 + $0x3c] sm:$0xf]
      %v617 = vld [vmem:[%s165 + $0x40] sm:$0xf]
      %v618 = vld [vmem:[%s165 + $0x44] sm:$0x1]
      %v619 = vld [vmem:[%s165 + $0x48] sm:$0xf]
      %v620 = vld [vmem:[%s165 + $0x4c] sm:$0xf]
      %v621 = vld [vmem:[%s165 + $0x50] sm:$0x1]
      %v622 = vld [vmem:[%s165 + $0x54] sm:$0xf]
      %v623 = vld [vmem:[%s165 + $0x58] sm:$0xf]
      %v624 = vld [vmem:[%s165 + $0x5c] sm:$0x1]
      %v625 = vld [vmem:[%s165 + $0x60] sm:$0xf]
      %v626 = vld [vmem:[%s165 + $0x64] sm:$0xf]
      %v627 = vld [vmem:[%s165 + $0x68] sm:$0x1]
      %v628 = vld [vmem:[%s165 + $0x6c] sm:$0xf]
      %v629 = vld [vmem:[%s165 + $0x70] sm:$0xf]
      %v630 = vld [vmem:[%s165 + $0x74] sm:$0x1]
      %v631 = vld [vmem:[%s165 + $0x78] sm:$0xf]
      %v632 = vld [vmem:[%s165 + $0x7c] sm:$0xf]
      %v633 = vld [vmem:[%s165 + $0x80] sm:$0x1]
      %v634 = vld [vmem:[%s165 + $0x84] sm:$0xf]
      %v635 = vld [vmem:[%s165 + $0x88] sm:$0xf]
      %v636 = vld [vmem:[%s165 + $0x8c] sm:$0x1]
      %v637 = vld [vmem:[%s165 + $0x90] sm:$0xf]
      %v638 = vld [vmem:[%s165 + $0x94] sm:$0xf]
      %v639 = vld [vmem:[%s165 + $0x98] sm:$0x1]
      %v640 = vld [vmem:[%s165 + $0x9c] sm:$0xf]
      %v641 = vld [vmem:[%s165 + $0xa0] sm:$0xf]
      %v642 = vld [vmem:[%s165 + $0xa4] sm:$0x1]
      %v643 = vld [vmem:[%s165 + $0xa8] sm:$0xf]
      %v644 = vld [vmem:[%s165 + $0xac] sm:$0xf]
      %v645 = vld [vmem:[%s165 + $0xb0] sm:$0x1]
      %v646 = vld [vmem:[%s165 + $0xb4] sm:$0xf]
      %v647 = vld [vmem:[%s165 + $0xb8] sm:$0xf]
      %v648 = vld [vmem:[%s165 + $0xbc] sm:$0x1]
      %v649 = vunpack.c.l.bf16 %v601
      %v650 = vunpack.c.l.bf16 %v602
      %v651 = vunpack.c.l.bf16 %v603
      %v652 = vunpack.c.l.bf16 %v604
      %v653 = vunpack.c.l.bf16 %v605
      %v654 = vunpack.c.l.bf16 %v606
      %v655 = vunpack.c.l.bf16 %v607
      %v656 = vunpack.c.l.bf16 %v608
      %v657 = vunpack.c.l.bf16 %v609
      %v658 = vunpack.c.l.bf16 %v610
      %v659 = vunpack.c.l.bf16 %v611
      %v660 = vunpack.c.l.bf16 %v612
      %v661 = vunpack.c.l.bf16 %v613
      %v662 = vunpack.c.l.bf16 %v614
      %v663 = vunpack.c.l.bf16 %v615
      %v664 = vunpack.c.l.bf16 %v616
      %v665 = vunpack.c.l.bf16 %v617
      %v666 = vunpack.c.l.bf16 %v618
      %v667 = vunpack.c.l.bf16 %v619
      %v668 = vunpack.c.l.bf16 %v620
      %v669 = vunpack.c.l.bf16 %v621
      %v670 = vunpack.c.l.bf16 %v622
      %v671 = vunpack.c.l.bf16 %v623
      %v672 = vunpack.c.l.bf16 %v624
      %v673 = vunpack.c.l.bf16 %v625
      %v674 = vunpack.c.l.bf16 %v626
      %v675 = vunpack.c.l.bf16 %v627
      %v676 = vunpack.c.l.bf16 %v628
      %v677 = vunpack.c.l.bf16 %v629
      %v678 = vunpack.c.l.bf16 %v630
      %v679 = vunpack.c.l.bf16 %v631
      %v680 = vunpack.c.l.bf16 %v632
      %v681 = vunpack.c.l.bf16 %v633
      %v682 = vunpack.c.l.bf16 %v634
      %v683 = vunpack.c.l.bf16 %v635
      %v684 = vunpack.c.l.bf16 %v636
      %v685 = vunpack.c.l.bf16 %v637
      %v686 = vunpack.c.l.bf16 %v638
      %v687 = vunpack.c.l.bf16 %v639
      %v688 = vunpack.c.l.bf16 %v640
      %v689 = vunpack.c.l.bf16 %v641
      %v690 = vunpack.c.l.bf16 %v642
      %v691 = vunpack.c.l.bf16 %v643
      %v692 = vunpack.c.l.bf16 %v644
      %v693 = vunpack.c.l.bf16 %v645
      %v694 = vunpack.c.l.bf16 %v646
      %v695 = vunpack.c.l.bf16 %v647
      %v696 = vunpack.c.l.bf16 %v648
      %vm745 = vcmask 1046528
      %v746 = vrot.slane %v649, 1
      %v747 = vrot.slane %v650, 1
      %v748 = vsel %vm745, %v746, %v747
      %v749 = vrot.slane %v651, 1
      %v750 = vsel %vm745, %v747, %v749
      %v751 = vrot.slane %v652, 1
      %v752 = vrot.slane %v653, 1
      %v753 = vsel %vm745, %v751, %v752
      %v754 = vrot.slane %v654, 1
      %v755 = vsel %vm745, %v752, %v754
      %v756 = vrot.slane %v655, 1
      %v757 = vrot.slane %v656, 1
      %v758 = vsel %vm745, %v756, %v757
      %v759 = vrot.slane %v657, 1
      %v760 = vsel %vm745, %v757, %v759
      %v761 = vrot.slane %v658, 1
      %v762 = vrot.slane %v659, 1
      %v763 = vsel %vm745, %v761, %v762
      %v764 = vrot.slane %v660, 1
      %v765 = vsel %vm745, %v762, %v764
      %v766 = vrot.slane %v661, 1
      %v767 = vrot.slane %v662, 1
      %v768 = vsel %vm745, %v766, %v767
      %v769 = vrot.slane %v663, 1
      %v770 = vsel %vm745, %v767, %v769
      %v771 = vrot.slane %v664, 1
      %v772 = vrot.slane %v665, 1
      %v773 = vsel %vm745, %v771, %v772
      %v774 = vrot.slane %v666, 1
      %v775 = vsel %vm745, %v772, %v774
      %v776 = vrot.slane %v667, 1
      %v777 = vrot.slane %v668, 1
      %v778 = vsel %vm745, %v776, %v777
      %v779 = vrot.slane %v669, 1
      %v780 = vsel %vm745, %v777, %v779
      %v781 = vrot.slane %v670, 1
      %v782 = vrot.slane %v671, 1
      %v783 = vsel %vm745, %v781, %v782
      %v784 = vrot.slane %v672, 1
      %v785 = vsel %vm745, %v782, %v784
      %v786 = vrot.slane %v673, 1
      %v787 = vrot.slane %v674, 1
      %v788 = vsel %vm745, %v786, %v787
      %v789 = vrot.slane %v675, 1
      %v790 = vsel %vm745, %v787, %v789
      %v791 = vrot.slane %v676, 1
      %v792 = vrot.slane %v677, 1
      %v793 = vsel %vm745, %v791, %v792
      %v794 = vrot.slane %v678, 1
      %v795 = vsel %vm745, %v792, %v794
      %v796 = vrot.slane %v679, 1
      %v797 = vrot.slane %v680, 1
      %v798 = vsel %vm745, %v796, %v797
      %v799 = vrot.slane %v681, 1
      %v800 = vsel %vm745, %v797, %v799
      %v801 = vrot.slane %v682, 1
      %v802 = vrot.slane %v683, 1
      %v803 = vsel %vm745, %v801, %v802
      %v804 = vrot.slane %v684, 1
      %v805 = vsel %vm745, %v802, %v804
      %v806 = vrot.slane %v685, 1
      %v807 = vrot.slane %v686, 1
      %v808 = vsel %vm745, %v806, %v807
      %v809 = vrot.slane %v687, 1
      %v810 = vsel %vm745, %v807, %v809
      %v811 = vrot.slane %v688, 1
      %v812 = vrot.slane %v689, 1
      %v813 = vsel %vm745, %v811, %v812
      %v814 = vrot.slane %v690, 1
      %v815 = vsel %vm745, %v812, %v814
      %v816 = vrot.slane %v691, 1
      %v817 = vrot.slane %v692, 1
      %v818 = vsel %vm745, %v816, %v817
      %v819 = vrot.slane %v693, 1
      %v820 = vsel %vm745, %v817, %v819
      %v821 = vrot.slane %v694, 1
      %v822 = vrot.slane %v695, 1
      %v823 = vsel %vm745, %v821, %v822
      %v824 = vrot.slane %v696, 1
      %v825 = vsel %vm745, %v822, %v824
      %s826 = scalar_lea.vmem %s1, 32
      %v827 = vld [vmem:[%s826] sm:$0xff]
      %v828 = vld [vmem:[%s826 + $0x8] sm:$0xff]
      %v829 = vld [vmem:[%s826 + $0x10] sm:$0xff]
      %v830 = vld [vmem:[%s826 + $0x18] sm:$0xff]
      %v831 = vsel %vm247, %v748, 0
      %v833 = vsel %vm247, %v750, 0
      %v835 = vsel %vm247, %v753, 0
      %v837 = vsel %vm247, %v755, 0
      %v839 = vsel %vm247, %v758, 0
      %v841 = vsel %vm247, %v760, 0
      %v843 = vsel %vm247, %v763, 0
      %v845 = vsel %vm247, %v765, 0
      %v847 = vsel %vm247, %v768, 0
      %v849 = vsel %vm247, %v770, 0
      %v851 = vsel %vm247, %v773, 0
      %v853 = vsel %vm247, %v775, 0
      %v855 = vsel %vm247, %v778, 0
      %v857 = vsel %vm247, %v780, 0
      %v859 = vsel %vm247, %v783, 0
      %v861 = vsel %vm247, %v785, 0
      %v863 = vsel %vm247, %v788, 0
      %v865 = vsel %vm247, %v790, 0
      %v867 = vsel %vm247, %v793, 0
      %v869 = vsel %vm247, %v795, 0
      %v871 = vsel %vm247, %v798, 0
      %v873 = vsel %vm247, %v800, 0
      %v875 = vsel %vm247, %v803, 0
      %v877 = vsel %vm247, %v805, 0
      %v879 = vsel %vm247, %v808, 0
      %v881 = vsel %vm247, %v810, 0
      %v883 = vsel %vm247, %v813, 0
      %v885 = vsel %vm247, %v815, 0
      %v887 = vsel %vm247, %v818, 0
      %v889 = vsel %vm247, %v820, 0
      %v891 = vsel %vm247, %v823, 0
      %v893 = vsel %vm247, %v825, 0
      %895 = vmatprep.subr.mxu0 0.0
      %896 = vmatpush1.msra.mxu0 %v827
      %897 = vmatprep.subr.mxu0 0.0
      %898 = vmatpush1.msra.mxu0 %v828
      %899 = vmatprep.subr.mxu0 0.0
      %900 = vmatpush1.msra.mxu0 %v829
      %901 = vmatprep.subr.mxu0 0.0
      %902 = vmatpush1.msra.mxu0 %v830
      %903 = vmatprep.subr.mxu0 0.0
      %904 = vmatpush1.msra.mxu0 0.0
      %905 = vmatprep.subr.mxu0 0.0
      %906 = vmatpush1.msra.mxu0 0.0
      %907 = vmatprep.subr.mxu0 0.0
      %908 = vmatpush1.msra.mxu0 0.0
      %909 = vmatprep.subr.mxu0 0.0
      %910 = vmatpush1.msra.mxu0 0.0
      %911 = vmatprep.subr.mxu0 0.0
      %912 = vmatpush1.msra.mxu0 0.0
      %913 = vmatprep.subr.mxu0 0.0
      %914 = vmatpush1.msra.mxu0 0.0
      %915 = vmatprep.subr.mxu0 0.0
      %916 = vmatpush1.msra.mxu0 0.0
      %917 = vmatprep.subr.mxu0 0.0
      %918 = vmatpush1.msra.mxu0 0.0
      %919 = vmatprep.subr.mxu0 0.0
      %920 = vmatpush1.msra.mxu0 0.0
      %921 = vmatprep.subr.mxu0 0.0
      %922 = vmatpush1.msra.mxu0 0.0
      %923 = vmatprep.subr.mxu0 0.0
      %924 = vmatpush1.msra.mxu0 0.0
      %925 = vmatprep.subr.mxu0 0.0
      %926 = vmatpush1.msra.mxu0 0.0
      %927 = vmatprep.subr.mxu0 0.0
      %928 = vmatpush1.msra.mxu0 0.0
      %929 = vmatprep.subr.mxu0 0.0
      %930 = vmatpush1.msra.mxu0 0.0
      %931 = vmatprep.subr.mxu0 0.0
      %932 = vmatpush1.msra.mxu0 0.0
      %933 = vmatprep.subr.mxu0 0.0
      %934 = vmatpush1.msra.mxu0 0.0
      %935 = vmatprep.subr.mxu0 0.0
      %936 = vmatpush1.msra.mxu0 0.0
      %937 = vmatprep.subr.mxu0 0.0
      %938 = vmatpush1.msra.mxu0 0.0
      %939 = vmatprep.subr.mxu0 0.0
      %940 = vmatpush1.msra.mxu0 0.0
      %941 = vmatprep.subr.mxu0 0.0
      %942 = vmatpush1.msra.mxu0 0.0
      %943 = vmatprep.subr.mxu0 0.0
      %944 = vmatpush1.msra.mxu0 0.0
      %945 = vmatprep.subr.mxu0 0.0
      %946 = vmatpush1.msra.mxu0 0.0
      %947 = vmatprep.subr.mxu0 0.0
      %948 = vmatpush1.msra.mxu0 0.0
      %949 = vmatprep.subr.mxu0 0.0
      %950 = vmatpush1.msra.mxu0 0.0
      %951 = vmatprep.subr.mxu0 0.0
      %952 = vmatpush1.msra.mxu0 0.0
      %953 = vmatprep.subr.mxu0 0.0
      %954 = vmatpush1.msra.mxu0 0.0
      %955 = vmatprep.subr.mxu0 0.0
      %956 = vmatpush1.msra.mxu0 0.0
      %957 = vmatprep.subr.mxu0 0.0
      %958 = vmatpush1.msra.mxu0 0.0
      %959 = vmatprep.mubr.f32.mxu0 0.0
      %960 = vmatmul.mubr.f32.gmra.mrb[0].mxu0 %v831
      %v961 = vpop.f32.mrb[0].mxu0
      %v962 = vadd.f32 0.0, %v961
      %v963 = vpop.f32.mrb[0].mxu0
      %964 = vmatprep.mubr.f32.mxu0 0.0
      %965 = vmatmul.mubr.f32.gmra.mrb[0].mxu0 %v833
      %v966 = vpop.f32.mrb[0].mxu0
      %v967 = vadd.f32 0.0, %v966
      %v968 = vpop.f32.mrb[0].mxu0
      %969 = vmatprep.mubr.f32.mxu0 0.0
      %970 = vmatmul.mubr.f32.gmra.mrb[0].mxu0 %v835
      %v971 = vpop.f32.mrb[0].mxu0
      %v972 = vadd.f32 0.0, %v971
      %v973 = vpop.f32.mrb[0].mxu0
      %974 = vmatprep.mubr.f32.mxu0 0.0
      %975 = vmatmul.mubr.f32.gmra.mrb[0].mxu0 %v837
      %v976 = vpop.f32.mrb[0].mxu0
      %v977 = vadd.f32 0.0, %v976
      %v978 = vpop.f32.mrb[0].mxu0
      %979 = vmatprep.mubr.f32.mxu0 0.0
      %980 = vmatmul.mubr.f32.gmra.mrb[0].mxu0 %v839
      %v981 = vpop.f32.mrb[0].mxu0
      %v982 = vadd.f32 0.0, %v981
      %v983 = vpop.f32.mrb[0].mxu0
      %984 = vmatprep.mubr.f32.mxu0 0.0
      %985 = vmatmul.mubr.f32.gmra.mrb[0].mxu0 %v841
      %v986 = vpop.f32.mrb[0].mxu0
      %v987 = vadd.f32 0.0, %v986
      %v988 = vpop.f32.mrb[0].mxu0
      %989 = vmatprep.mubr.f32.mxu0 0.0
      %990 = vmatmul.mubr.f32.gmra.mrb[0].mxu0 %v843
      %v991 = vpop.f32.mrb[0].mxu0
      %v992 = vadd.f32 0.0, %v991
      %v993 = vpop.f32.mrb[0].mxu0
      %994 = vmatprep.mubr.f32.mxu0 0.0
      %995 = vmatmul.mubr.f32.gmra.mrb[0].mxu0 %v845
      %v996 = vpop.f32.mrb[0].mxu0
      %v997 = vadd.f32 0.0, %v996
      %v998 = vpop.f32.mrb[0].mxu0
      %999 = vmatprep.mubr.f32.mxu0 0.0
      %1000 = vmatmul.mubr.f32.gmra.mrb[0].mxu0 %v847
      %v1001 = vpop.f32.mrb[0].mxu0
      %v1002 = vadd.f32 0.0, %v1001
      %v1003 = vpop.f32.mrb[0].mxu0
      %1004 = vmatprep.mubr.f32.mxu0 0.0
      %1005 = vmatmul.mubr.f32.gmra.mrb[0].mxu0 %v849
      %v1006 = vpop.f32.mrb[0].mxu0
      %v1007 = vadd.f32 0.0, %v1006
      %v1008 = vpop.f32.mrb[0].mxu0
      %1009 = vmatprep.mubr.f32.mxu0 0.0
      %1010 = vmatmul.mubr.f32.gmra.mrb[0].mxu0 %v851
      %v1011 = vpop.f32.mrb[0].mxu0
      %v1012 = vadd.f32 0.0, %v1011
      %v1013 = vpop.f32.mrb[0].mxu0
      %1014 = vmatprep.mubr.f32.mxu0 0.0
      %1015 = vmatmul.mubr.f32.gmra.mrb[0].mxu0 %v853
      %v1016 = vpop.f32.mrb[0].mxu0
      %v1017 = vadd.f32 0.0, %v1016
      %v1018 = vpop.f32.mrb[0].mxu0
      %1019 = vmatprep.mubr.f32.mxu0 0.0
      %1020 = vmatmul.mubr.f32.gmra.mrb[0].mxu0 %v855
      %v1021 = vpop.f32.mrb[0].mxu0
      %v1022 = vadd.f32 0.0, %v1021
      %v1023 = vpop.f32.mrb[0].mxu0
      %1024 = vmatprep.mubr.f32.mxu0 0.0
      %1025 = vmatmul.mubr.f32.gmra.mrb[0].mxu0 %v857
      %v1026 = vpop.f32.mrb[0].mxu0
      %v1027 = vadd.f32 0.0, %v1026
      %v1028 = vpop.f32.mrb[0].mxu0
      %1029 = vmatprep.mubr.f32.mxu0 0.0
      %1030 = vmatmul.mubr.f32.gmra.mrb[0].mxu0 %v859
      %v1031 = vpop.f32.mrb[0].mxu0
      %v1032 = vadd.f32 0.0, %v1031
      %v1033 = vpop.f32.mrb[0].mxu0
      %1034 = vmatprep.mubr.f32.mxu0 0.0
      %1035 = vmatmul.mubr.f32.gmra.mrb[0].mxu0 %v861
      %v1036 = vpop.f32.mrb[0].mxu0
      %v1037 = vadd.f32 0.0, %v1036
      %v1038 = vpop.f32.mrb[0].mxu0
      %1039 = vmatprep.mubr.f32.mxu0 0.0
      %1040 = vmatmul.mubr.f32.gmra.mrb[0].mxu0 %v863
      %v1041 = vpop.f32.mrb[0].mxu0
      %v1042 = vadd.f32 0.0, %v1041
      %v1043 = vpop.f32.mrb[0].mxu0
      %1044 = vmatprep.mubr.f32.mxu0 0.0
      %1045 = vmatmul.mubr.f32.gmra.mrb[0].mxu0 %v865
      %v1046 = vpop.f32.mrb[0].mxu0
      %v1047 = vadd.f32 0.0, %v1046
      %v1048 = vpop.f32.mrb[0].mxu0
      %1049 = vmatprep.mubr.f32.mxu0 0.0
      %1050 = vmatmul.mubr.f32.gmra.mrb[0].mxu0 %v867
      %v1051 = vpop.f32.mrb[0].mxu0
      %v1052 = vadd.f32 0.0, %v1051
      %v1053 = vpop.f32.mrb[0].mxu0
      %1054 = vmatprep.mubr.f32.mxu0 0.0
      %1055 = vmatmul.mubr.f32.gmra.mrb[0].mxu0 %v869
      %v1056 = vpop.f32.mrb[0].mxu0
      %v1057 = vadd.f32 0.0, %v1056
      %v1058 = vpop.f32.mrb[0].mxu0
      %1059 = vmatprep.mubr.f32.mxu0 0.0
      %1060 = vmatmul.mubr.f32.gmra.mrb[0].mxu0 %v871
      %v1061 = vpop.f32.mrb[0].mxu0
      %v1062 = vadd.f32 0.0, %v1061
      %v1063 = vpop.f32.mrb[0].mxu0
      %1064 = vmatprep.mubr.f32.mxu0 0.0
      %1065 = vmatmul.mubr.f32.gmra.mrb[0].mxu0 %v873
      %v1066 = vpop.f32.mrb[0].mxu0
      %v1067 = vadd.f32 0.0, %v1066
      %v1068 = vpop.f32.mrb[0].mxu0
      %1069 = vmatprep.mubr.f32.mxu0 0.0
      %1070 = vmatmul.mubr.f32.gmra.mrb[0].mxu0 %v875
      %v1071 = vpop.f32.mrb[0].mxu0
      %v1072 = vadd.f32 0.0, %v1071
      %v1073 = vpop.f32.mrb[0].mxu0
      %1074 = vmatprep.mubr.f32.mxu0 0.0
      %1075 = vmatmul.mubr.f32.gmra.mrb[0].mxu0 %v877
      %v1076 = vpop.f32.mrb[0].mxu0
      %v1077 = vadd.f32 0.0, %v1076
      %v1078 = vpop.f32.mrb[0].mxu0
      %1079 = vmatprep.mubr.f32.mxu0 0.0
      %1080 = vmatmul.mubr.f32.gmra.mrb[0].mxu0 %v879
      %v1081 = vpop.f32.mrb[0].mxu0
      %v1082 = vadd.f32 0.0, %v1081
      %v1083 = vpop.f32.mrb[0].mxu0
      %1084 = vmatprep.mubr.f32.mxu0 0.0
      %1085 = vmatmul.mubr.f32.gmra.mrb[0].mxu0 %v881
      %v1086 = vpop.f32.mrb[0].mxu0
      %v1087 = vadd.f32 0.0, %v1086
      %v1088 = vpop.f32.mrb[0].mxu0
      %1089 = vmatprep.mubr.f32.mxu0 0.0
      %1090 = vmatmul.mubr.f32.gmra.mrb[0].mxu0 %v883
      %v1091 = vpop.f32.mrb[0].mxu0
      %v1092 = vadd.f32 0.0, %v1091
      %v1093 = vpop.f32.mrb[0].mxu0
      %1094 = vmatprep.mubr.f32.mxu0 0.0
      %1095 = vmatmul.mubr.f32.gmra.mrb[0].mxu0 %v885
      %v1096 = vpop.f32.mrb[0].mxu0
      %v1097 = vadd.f32 0.0, %v1096
      %v1098 = vpop.f32.mrb[0].mxu0
      %1099 = vmatprep.mubr.f32.mxu0 0.0
      %1100 = vmatmul.mubr.f32.gmra.mrb[0].mxu0 %v887
      %v1101 = vpop.f32.mrb[0].mxu0
      %v1102 = vadd.f32 0.0, %v1101
      %v1103 = vpop.f32.mrb[0].mxu0
      %1104 = vmatprep.mubr.f32.mxu0 0.0
      %1105 = vmatmul.mubr.f32.gmra.mrb[0].mxu0 %v889
      %v1106 = vpop.f32.mrb[0].mxu0
      %v1107 = vadd.f32 0.0, %v1106
      %v1108 = vpop.f32.mrb[0].mxu0
      %1109 = vmatprep.mubr.f32.mxu0 0.0
      %1110 = vmatmul.mubr.f32.gmra.mrb[0].mxu0 %v891
      %v1111 = vpop.f32.mrb[0].mxu0
      %v1112 = vadd.f32 0.0, %v1111
      %v1113 = vpop.f32.mrb[0].mxu0
      %1114 = vmatprep.mubr.f32.mxu0 0.0
      %1115 = vmatmul.mubr.f32.gmra.mrb[0].mxu0 %v893
      %v1116 = vpop.f32.mrb[0].mxu0
      %v1117 = vadd.f32 0.0, %v1116
      %v1118 = vpop.f32.mrb[0].mxu0
      %1119 = vdwg.mxu0
      %v1120 = vadd.f32 %v569, %v962
      %v1121 = vadd.f32 %v570, %v967
      %v1122 = vadd.f32 %v571, %v972
      %v1123 = vadd.f32 %v572, %v977
      %v1124 = vadd.f32 %v573, %v982
      %v1125 = vadd.f32 %v574, %v987
      %v1126 = vadd.f32 %v575, %v992
      %v1127 = vadd.f32 %v576, %v997
      %v1128 = vadd.f32 %v577, %v1002
      %v1129 = vadd.f32 %v578, %v1007
      %v1130 = vadd.f32 %v579, %v1012
      %v1131 = vadd.f32 %v580, %v1017
      %v1132 = vadd.f32 %v581, %v1022
      %v1133 = vadd.f32 %v582, %v1027
      %v1134 = vadd.f32 %v583, %v1032
      %v1135 = vadd.f32 %v584, %v1037
      %v1136 = vadd.f32 %v585, %v1042
      %v1137 = vadd.f32 %v586, %v1047
      %v1138 = vadd.f32 %v587, %v1052
      %v1139 = vadd.f32 %v588, %v1057
      %v1140 = vadd.f32 %v589, %v1062
      %v1141 = vadd.f32 %v590, %v1067
      %v1142 = vadd.f32 %v591, %v1072
      %v1143 = vadd.f32 %v592, %v1077
      %v1144 = vadd.f32 %v593, %v1082
      %v1145 = vadd.f32 %v594, %v1087
      %v1146 = vadd.f32 %v595, %v1092
      %v1147 = vadd.f32 %v596, %v1097
      %v1148 = vadd.f32 %v597, %v1102
      %v1149 = vadd.f32 %v598, %v1107
      %v1150 = vadd.f32 %v599, %v1112
      %v1151 = vadd.f32 %v600, %v1117
      %v1152 = vld [vmem:[%s165] sm:$0xe]
      %v1153 = vld [vmem:[%s165 + $0xc] sm:$0xe]
      %v1154 = vld [vmem:[%s165 + $0x18] sm:$0xe]
      %v1155 = vld [vmem:[%s165 + $0x24] sm:$0xe]
      %v1156 = vld [vmem:[%s165 + $0x30] sm:$0xe]
      %v1157 = vld [vmem:[%s165 + $0x3c] sm:$0xe]
      %v1158 = vld [vmem:[%s165 + $0x48] sm:$0xe]
      %v1159 = vld [vmem:[%s165 + $0x54] sm:$0xe]
      %v1160 = vld [vmem:[%s165 + $0x60] sm:$0xe]
      %v1161 = vld [vmem:[%s165 + $0x6c] sm:$0xe]
      %v1162 = vld [vmem:[%s165 + $0x78] sm:$0xe]
      %v1163 = vld [vmem:[%s165 + $0x84] sm:$0xe]
      %v1164 = vld [vmem:[%s165 + $0x90] sm:$0xe]
      %v1165 = vld [vmem:[%s165 + $0x9c] sm:$0xe]
      %v1166 = vld [vmem:[%s165 + $0xa8] sm:$0xe]
      %v1167 = vld [vmem:[%s165 + $0xb4] sm:$0xe]
      %v1168 = vunpack.c.l.bf16 %v1152
      %v1169 = vunpack.c.l.bf16 %v1153
      %v1170 = vunpack.c.l.bf16 %v1154
      %v1171 = vunpack.c.l.bf16 %v1155
      %v1172 = vunpack.c.l.bf16 %v1156
      %v1173 = vunpack.c.l.bf16 %v1157
      %v1174 = vunpack.c.l.bf16 %v1158
      %v1175 = vunpack.c.l.bf16 %v1159
      %v1176 = vunpack.c.l.bf16 %v1160
      %v1177 = vunpack.c.l.bf16 %v1161
      %v1178 = vunpack.c.l.bf16 %v1162
      %v1179 = vunpack.c.l.bf16 %v1163
      %v1180 = vunpack.c.l.bf16 %v1164
      %v1181 = vunpack.c.l.bf16 %v1165
      %v1182 = vunpack.c.l.bf16 %v1166
      %v1183 = vunpack.c.l.bf16 %v1167
      %vm1200 = vcmask 1045504
      %v1201 = vrot.slane %v1168, 2
      %v1202 = vrot.slane %v650, 2
      %v1203 = vsel %vm1200, %v1201, %v1202
      %v1204 = vrot.slane %v651, 2
      %v1205 = vsel %vm1200, %v1202, %v1204
      %v1206 = vrot.slane %v1169, 2
      %v1207 = vrot.slane %v653, 2
      %v1208 = vsel %vm1200, %v1206, %v1207
      %v1209 = vrot.slane %v654, 2
      %v1210 = vsel %vm1200, %v1207, %v1209
      %v1211 = vrot.slane %v1170, 2
      %v1212 = vrot.slane %v656, 2
      %v1213 = vsel %vm1200, %v1211, %v1212
      %v1214 = vrot.slane %v657, 2
      %v1215 = vsel %vm1200, %v1212, %v1214
      %v1216 = vrot.slane %v1171, 2
      %v1217 = vrot.slane %v659, 2
      %v1218 = vsel %vm1200, %v1216, %v1217
      %v1219 = vrot.slane %v660, 2
      %v1220 = vsel %vm1200, %v1217, %v1219
      %v1221 = vrot.slane %v1172, 2
      %v1222 = vrot.slane %v662, 2
      %v1223 = vsel %vm1200, %v1221, %v1222
      %v1224 = vrot.slane %v663, 2
      %v1225 = vsel %vm1200, %v1222, %v1224
      %v1226 = vrot.slane %v1173, 2
      %v1227 = vrot.slane %v665, 2
      %v1228 = vsel %vm1200, %v1226, %v1227
      %v1229 = vrot.slane %v666, 2
      %v1230 = vsel %vm1200, %v1227, %v1229
      %v1231 = vrot.slane %v1174, 2
      %v1232 = vrot.slane %v668, 2
      %v1233 = vsel %vm1200, %v1231, %v1232
      %v1234 = vrot.slane %v669, 2
      %v1235 = vsel %vm1200, %v1232, %v1234
      %v1236 = vrot.slane %v1175, 2
      %v1237 = vrot.slane %v671, 2
      %v1238 = vsel %vm1200, %v1236, %v1237
      %v1239 = vrot.slane %v672, 2
      %v1240 = vsel %vm1200, %v1237, %v1239
      %v1241 = vrot.slane %v1176, 2
      %v1242 = vrot.slane %v674, 2
      %v1243 = vsel %vm1200, %v1241, %v1242
      %v1244 = vrot.slane %v675, 2
      %v1245 = vsel %vm1200, %v1242, %v1244
      %v1246 = vrot.slane %v1177, 2
      %v1247 = vrot.slane %v677, 2
      %v1248 = vsel %vm1200, %v1246, %v1247
      %v1249 = vrot.slane %v678, 2
      %v1250 = vsel %vm1200, %v1247, %v1249
      %v1251 = vrot.slane %v1178, 2
      %v1252 = vrot.slane %v680, 2
      %v1253 = vsel %vm1200, %v1251, %v1252
      %v1254 = vrot.slane %v681, 2
      %v1255 = vsel %vm1200, %v1252, %v1254
      %v1256 = vrot.slane %v1179, 2
      %v1257 = vrot.slane %v683, 2
      %v1258 = vsel %vm1200, %v1256, %v1257
      %v1259 = vrot.slane %v684, 2
      %v1260 = vsel %vm1200, %v1257, %v1259
      %v1261 = vrot.slane %v1180, 2
      %v1262 = vrot.slane %v686, 2
      %v1263 = vsel %vm1200, %v1261, %v1262
      %v1264 = vrot.slane %v687, 2
      %v1265 = vsel %vm1200, %v1262, %v1264
      %v1266 = vrot.slane %v1181, 2
      %v1267 = vrot.slane %v689, 2
      %v1268 = vsel %vm1200, %v1266, %v1267
      %v1269 = vrot.slane %v690, 2
      %v1270 = vsel %vm1200, %v1267, %v1269
      %v1271 = vrot.slane %v1182, 2
      %v1272 = vrot.slane %v692, 2
      %v1273 = vsel %vm1200, %v1271, %v1272
      %v1274 = vrot.slane %v693, 2
      %v1275 = vsel %vm1200, %v1272, %v1274
      %v1276 = vrot.slane %v1183, 2
      %v1277 = vrot.slane %v695, 2
      %v1278 = vsel %vm1200, %v1276, %v1277
      %v1279 = vrot.slane %v696, 2
      %v1280 = vsel %vm1200, %v1277, %v1279
      %s1281 = scalar_lea.vmem %s1, 64
      %v1282 = vld [vmem:[%s1281] sm:$0xff]
      %v1283 = vld [vmem:[%s1281 + $0x8] sm:$0xff]
      %v1284 = vld [vmem:[%s1281 + $0x10] sm:$0xff]
      %v1285 = vld [vmem:[%s1281 + $0x18] sm:$0xff]
      %v1286 = vsel %vm247, %v1203, 0
      %v1288 = vsel %vm247, %v1205, 0
      %v1290 = vsel %vm247, %v1208, 0
      %v1292 = vsel %vm247, %v1210, 0
      %v1294 = vsel %vm247, %v1213, 0
      %v1296 = vsel %vm247, %v1215, 0
      %v1298 = vsel %vm247, %v1218, 0
      %v1300 = vsel %vm247, %v1220, 0
      %v1302 = vsel %vm247, %v1223, 0
      %v1304 = vsel %vm247, %v1225, 0
      %v1306 = vsel %vm247, %v1228, 0
      %v1308 = vsel %vm247, %v1230, 0
      %v1310 = vsel %vm247, %v1233, 0
      %v1312 = vsel %vm247, %v1235, 0
      %v1314 = vsel %vm247, %v1238, 0
      %v1316 = vsel %vm247, %v1240, 0
      %v1318 = vsel %vm247, %v1243, 0
      %v1320 = vsel %vm247, %v1245, 0
      %v1322 = vsel %vm247, %v1248, 0
      %v1324 = vsel %vm247, %v1250, 0
      %v1326 = vsel %vm247, %v1253, 0
      %v1328 = vsel %vm247, %v1255, 0
      %v1330 = vsel %vm247, %v1258, 0
      %v1332 = vsel %vm247, %v1260, 0
      %v1334 = vsel %vm247, %v1263, 0
      %v1336 = vsel %vm247, %v1265, 0
      %v1338 = vsel %vm247, %v1268, 0
      %v1340 = vsel %vm247, %v1270, 0
      %v1342 = vsel %vm247, %v1273, 0
      %v1344 = vsel %vm247, %v1275, 0
      %v1346 = vsel %vm247, %v1278, 0
      %v1348 = vsel %vm247, %v1280, 0
      %1350 = vmatprep.subr.mxu0 0.0
      %1351 = vmatpush1.msra.mxu0 %v1282
      %1352 = vmatprep.subr.mxu0 0.0
      %1353 = vmatpush1.msra.mxu0 %v1283
      %1354 = vmatprep.subr.mxu0 0.0
      %1355 = vmatpush1.msra.mxu0 %v1284
      %1356 = vmatprep.subr.mxu0 0.0
      %1357 = vmatpush1.msra.mxu0 %v1285
      %1358 = vmatprep.subr.mxu0 0.0
      %1359 = vmatpush1.msra.mxu0 0.0
      %1360 = vmatprep.subr.mxu0 0.0
      %1361 = vmatpush1.msra.mxu0 0.0
      %1362 = vmatprep.subr.mxu0 0.0
      %1363 = vmatpush1.msra.mxu0 0.0
      %1364 = vmatprep.subr.mxu0 0.0
      %1365 = vmatpush1.msra.mxu0 0.0
      %1366 = vmatprep.subr.mxu0 0.0
      %1367 = vmatpush1.msra.mxu0 0.0
      %1368 = vmatprep.subr.mxu0 0.0
      %1369 = vmatpush1.msra.mxu0 0.0
      %1370 = vmatprep.subr.mxu0 0.0
      %1371 = vmatpush1.msra.mxu0 0.0
      %1372 = vmatprep.subr.mxu0 0.0
      %1373 = vmatpush1.msra.mxu0 0.0
      %1374 = vmatprep.subr.mxu0 0.0
      %1375 = vmatpush1.msra.mxu0 0.0
      %1376 = vmatprep.subr.mxu0 0.0
      %1377 = vmatpush1.msra.mxu0 0.0
      %1378 = vmatprep.subr.mxu0 0.0
      %1379 = vmatpush1.msra.mxu0 0.0
      %1380 = vmatprep.subr.mxu0 0.0
      %1381 = vmatpush1.msra.mxu0 0.0
      %1382 = vmatprep.subr.mxu0 0.0
      %1383 = vmatpush1.msra.mxu0 0.0
      %1384 = vmatprep.subr.mxu0 0.0
      %1385 = vmatpush1.msra.mxu0 0.0
      %1386 = vmatprep.subr.mxu0 0.0
      %1387 = vmatpush1.msra.mxu0 0.0
      %1388 = vmatprep.subr.mxu0 0.0
      %1389 = vmatpush1.msra.mxu0 0.0
      %1390 = vmatprep.subr.mxu0 0.0
      %1391 = vmatpush1.msra.mxu0 0.0
      %1392 = vmatprep.subr.mxu0 0.0
      %1393 = vmatpush1.msra.mxu0 0.0
      %1394 = vmatprep.subr.mxu0 0.0
      %1395 = vmatpush1.msra.mxu0 0.0
      %1396 = vmatprep.subr.mxu0 0.0
      %1397 = vmatpush1.msra.mxu0 0.0
      %1398 = vmatprep.subr.mxu0 0.0
      %1399 = vmatpush1.msra.mxu0 0.0
      %1400 = vmatprep.subr.mxu0 0.0
      %1401 = vmatpush1.msra.mxu0 0.0
      %1402 = vmatprep.subr.mxu0 0.0
      %1403 = vmatpush1.msra.mxu0 0.0
      %1404 = vmatprep.subr.mxu0 0.0
      %1405 = vmatpush1.msra.mxu0 0.0
      %1406 = vmatprep.subr.mxu0 0.0
      %1407 = vmatpush1.msra.mxu0 0.0
      %1408 = vmatprep.subr.mxu0 0.0
      %1409 = vmatpush1.msra.mxu0 0.0
      %1410 = vmatprep.subr.mxu0 0.0
      %1411 = vmatpush1.msra.mxu0 0.0
      %1412 = vmatprep.subr.mxu0 0.0
      %1413 = vmatpush1.msra.mxu0 0.0
      %1414 = vmatprep.mubr.f32.mxu0 0.0
      %1415 = vmatmul.mubr.f32.gmra.mrb[0].mxu0 %v1286
      %v1416 = vpop.f32.mrb[0].mxu0
      %v1417 = vadd.f32 0.0, %v1416
      %v1418 = vpop.f32.mrb[0].mxu0
      %1419 = vmatprep.mubr.f32.mxu0 0.0
      %1420 = vmatmul.mubr.f32.gmra.mrb[0].mxu0 %v1288
      %v1421 = vpop.f32.mrb[0].mxu0
      %v1422 = vadd.f32 0.0, %v1421
      %v1423 = vpop.f32.mrb[0].mxu0
      %1424 = vmatprep.mubr.f32.mxu0 0.0
      %1425 = vmatmul.mubr.f32.gmra.mrb[0].mxu0 %v1290
      %v1426 = vpop.f32.mrb[0].mxu0
      %v1427 = vadd.f32 0.0, %v1426
      %v1428 = vpop.f32.mrb[0].mxu0
      %1429 = vmatprep.mubr.f32.mxu0 0.0
      %1430 = vmatmul.mubr.f32.gmra.mrb[0].mxu0 %v1292
      %v1431 = vpop.f32.mrb[0].mxu0
      %v1432 = vadd.f32 0.0, %v1431
      %v1433 = vpop.f32.mrb[0].mxu0
      %1434 = vmatprep.mubr.f32.mxu0 0.0
      %1435 = vmatmul.mubr.f32.gmra.mrb[0].mxu0 %v1294
      %v1436 = vpop.f32.mrb[0].mxu0
      %v1437 = vadd.f32 0.0, %v1436
      %v1438 = vpop.f32.mrb[0].mxu0
      %1439 = vmatprep.mubr.f32.mxu0 0.0
      %1440 = vmatmul.mubr.f32.gmra.mrb[0].mxu0 %v1296
      %v1441 = vpop.f32.mrb[0].mxu0
      %v1442 = vadd.f32 0.0, %v1441
      %v1443 = vpop.f32.mrb[0].mxu0
      %1444 = vmatprep.mubr.f32.mxu0 0.0
      %1445 = vmatmul.mubr.f32.gmra.mrb[0].mxu0 %v1298
      %v1446 = vpop.f32.mrb[0].mxu0
      %v1447 = vadd.f32 0.0, %v1446
      %v1448 = vpop.f32.mrb[0].mxu0
      %1449 = vmatprep.mubr.f32.mxu0 0.0
      %1450 = vmatmul.mubr.f32.gmra.mrb[0].mxu0 %v1300
      %v1451 = vpop.f32.mrb[0].mxu0
      %v1452 = vadd.f32 0.0, %v1451
      %v1453 = vpop.f32.mrb[0].mxu0
      %1454 = vmatprep.mubr.f32.mxu0 0.0
      %1455 = vmatmul.mubr.f32.gmra.mrb[0].mxu0 %v1302
      %v1456 = vpop.f32.mrb[0].mxu0
      %v1457 = vadd.f32 0.0, %v1456
      %v1458 = vpop.f32.mrb[0].mxu0
      %1459 = vmatprep.mubr.f32.mxu0 0.0
      %1460 = vmatmul.mubr.f32.gmra.mrb[0].mxu0 %v1304
      %v1461 = vpop.f32.mrb[0].mxu0
      %v1462 = vadd.f32 0.0, %v1461
      %v1463 = vpop.f32.mrb[0].mxu0
      %1464 = vmatprep.mubr.f32.mxu0 0.0
      %1465 = vmatmul.mubr.f32.gmra.mrb[0].mxu0 %v1306
      %v1466 = vpop.f32.mrb[0].mxu0
      %v1467 = vadd.f32 0.0, %v1466
      %v1468 = vpop.f32.mrb[0].mxu0
      %1469 = vmatprep.mubr.f32.mxu0 0.0
      %1470 = vmatmul.mubr.f32.gmra.mrb[0].mxu0 %v1308
      %v1471 = vpop.f32.mrb[0].mxu0
      %v1472 = vadd.f32 0.0, %v1471
      %v1473 = vpop.f32.mrb[0].mxu0
      %1474 = vmatprep.mubr.f32.mxu0 0.0
      %1475 = vmatmul.mubr.f32.gmra.mrb[0].mxu0 %v1310
      %v1476 = vpop.f32.mrb[0].mxu0
      %v1477 = vadd.f32 0.0, %v1476
      %v1478 = vpop.f32.mrb[0].mxu0
      %1479 = vmatprep.mubr.f32.mxu0 0.0
      %1480 = vmatmul.mubr.f32.gmra.mrb[0].mxu0 %v1312
      %v1481 = vpop.f32.mrb[0].mxu0
      %v1482 = vadd.f32 0.0, %v1481
      %v1483 = vpop.f32.mrb[0].mxu0
      %1484 = vmatprep.mubr.f32.mxu0 0.0
      %1485 = vmatmul.mubr.f32.gmra.mrb[0].mxu0 %v1314
      %v1486 = vpop.f32.mrb[0].mxu0
      %v1487 = vadd.f32 0.0, %v1486
      %v1488 = vpop.f32.mrb[0].mxu0
      %1489 = vmatprep.mubr.f32.mxu0 0.0
      %1490 = vmatmul.mubr.f32.gmra.mrb[0].mxu0 %v1316
      %v1491 = vpop.f32.mrb[0].mxu0
      %v1492 = vadd.f32 0.0, %v1491
      %v1493 = vpop.f32.mrb[0].mxu0
      %1494 = vmatprep.mubr.f32.mxu0 0.0
      %1495 = vmatmul.mubr.f32.gmra.mrb[0].mxu0 %v1318
      %v1496 = vpop.f32.mrb[0].mxu0
      %v1497 = vadd.f32 0.0, %v1496
      %v1498 = vpop.f32.mrb[0].mxu0
      %1499 = vmatprep.mubr.f32.mxu0 0.0
      %1500 = vmatmul.mubr.f32.gmra.mrb[0].mxu0 %v1320
      %v1501 = vpop.f32.mrb[0].mxu0
      %v1502 = vadd.f32 0.0, %v1501
      %v1503 = vpop.f32.mrb[0].mxu0
      %1504 = vmatprep.mubr.f32.mxu0 0.0
      %1505 = vmatmul.mubr.f32.gmra.mrb[0].mxu0 %v1322
      %v1506 = vpop.f32.mrb[0].mxu0
      %v1507 = vadd.f32 0.0, %v1506
      %v1508 = vpop.f32.mrb[0].mxu0
      %1509 = vmatprep.mubr.f32.mxu0 0.0
      %1510 = vmatmul.mubr.f32.gmra.mrb[0].mxu0 %v1324
      %v1511 = vpop.f32.mrb[0].mxu0
      %v1512 = vadd.f32 0.0, %v1511
      %v1513 = vpop.f32.mrb[0].mxu0
      %1514 = vmatprep.mubr.f32.mxu0 0.0
      %1515 = vmatmul.mubr.f32.gmra.mrb[0].mxu0 %v1326
      %v1516 = vpop.f32.mrb[0].mxu0
      %v1517 = vadd.f32 0.0, %v1516
      %v1518 = vpop.f32.mrb[0].mxu0
      %1519 = vmatprep.mubr.f32.mxu0 0.0
      %1520 = vmatmul.mubr.f32.gmra.mrb[0].mxu0 %v1328
      %v1521 = vpop.f32.mrb[0].mxu0
      %v1522 = vadd.f32 0.0, %v1521
      %v1523 = vpop.f32.mrb[0].mxu0
      %1524 = vmatprep.mubr.f32.mxu0 0.0
      %1525 = vmatmul.mubr.f32.gmra.mrb[0].mxu0 %v1330
      %v1526 = vpop.f32.mrb[0].mxu0
      %v1527 = vadd.f32 0.0, %v1526
      %v1528 = vpop.f32.mrb[0].mxu0
      %1529 = vmatprep.mubr.f32.mxu0 0.0
      %1530 = vmatmul.mubr.f32.gmra.mrb[0].mxu0 %v1332
      %v1531 = vpop.f32.mrb[0].mxu0
      %v1532 = vadd.f32 0.0, %v1531
      %v1533 = vpop.f32.mrb[0].mxu0
      %1534 = vmatprep.mubr.f32.mxu0 0.0
      %1535 = vmatmul.mubr.f32.gmra.mrb[0].mxu0 %v1334
      %v1536 = vpop.f32.mrb[0].mxu0
      %v1537 = vadd.f32 0.0, %v1536
      %v1538 = vpop.f32.mrb[0].mxu0
      %1539 = vmatprep.mubr.f32.mxu0 0.0
      %1540 = vmatmul.mubr.f32.gmra.mrb[0].mxu0 %v1336
      %v1541 = vpop.f32.mrb[0].mxu0
      %v1542 = vadd.f32 0.0, %v1541
      %v1543 = vpop.f32.mrb[0].mxu0
      %1544 = vmatprep.mubr.f32.mxu0 0.0
      %1545 = vmatmul.mubr.f32.gmra.mrb[0].mxu0 %v1338
      %v1546 = vpop.f32.mrb[0].mxu0
      %v1547 = vadd.f32 0.0, %v1546
      %v1548 = vpop.f32.mrb[0].mxu0
      %1549 = vmatprep.mubr.f32.mxu0 0.0
      %1550 = vmatmul.mubr.f32.gmra.mrb[0].mxu0 %v1340
      %v1551 = vpop.f32.mrb[0].mxu0
      %v1552 = vadd.f32 0.0, %v1551
      %v1553 = vpop.f32.mrb[0].mxu0
      %1554 = vmatprep.mubr.f32.mxu0 0.0
      %1555 = vmatmul.mubr.f32.gmra.mrb[0].mxu0 %v1342
      %v1556 = vpop.f32.mrb[0].mxu0
      %v1557 = vadd.f32 0.0, %v1556
      %v1558 = vpop.f32.mrb[0].mxu0
      %1559 = vmatprep.mubr.f32.mxu0 0.0
      %1560 = vmatmul.mubr.f32.gmra.mrb[0].mxu0 %v1344
      %v1561 = vpop.f32.mrb[0].mxu0
      %v1562 = vadd.f32 0.0, %v1561
      %v1563 = vpop.f32.mrb[0].mxu0
      %1564 = vmatprep.mubr.f32.mxu0 0.0
      %1565 = vmatmul.mubr.f32.gmra.mrb[0].mxu0 %v1346
      %v1566 = vpop.f32.mrb[0].mxu0
      %v1567 = vadd.f32 0.0, %v1566
      %v1568 = vpop.f32.mrb[0].mxu0
      %1569 = vmatprep.mubr.f32.mxu0 0.0
      %1570 = vmatmul.mubr.f32.gmra.mrb[0].mxu0 %v1348
      %v1571 = vpop.f32.mrb[0].mxu0
      %v1572 = vadd.f32 0.0, %v1571
      %v1573 = vpop.f32.mrb[0].mxu0
      %1574 = vdwg.mxu0
      %v1575 = vadd.f32 %v1120, %v1417
      %v1576 = vadd.f32 %v1121, %v1422
      %v1577 = vadd.f32 %v1122, %v1427
      %v1578 = vadd.f32 %v1123, %v1432
      %v1579 = vadd.f32 %v1124, %v1437
      %v1580 = vadd.f32 %v1125, %v1442
      %v1581 = vadd.f32 %v1126, %v1447
      %v1582 = vadd.f32 %v1127, %v1452
      %v1583 = vadd.f32 %v1128, %v1457
      %v1584 = vadd.f32 %v1129, %v1462
      %v1585 = vadd.f32 %v1130, %v1467
      %v1586 = vadd.f32 %v1131, %v1472
      %v1587 = vadd.f32 %v1132, %v1477
      %v1588 = vadd.f32 %v1133, %v1482
      %v1589 = vadd.f32 %v1134, %v1487
      %v1590 = vadd.f32 %v1135, %v1492
      %v1591 = vadd.f32 %v1136, %v1497
      %v1592 = vadd.f32 %v1137, %v1502
      %v1593 = vadd.f32 %v1138, %v1507
      %v1594 = vadd.f32 %v1139, %v1512
      %v1595 = vadd.f32 %v1140, %v1517
      %v1596 = vadd.f32 %v1141, %v1522
      %v1597 = vadd.f32 %v1142, %v1527
      %v1598 = vadd.f32 %v1143, %v1532
      %v1599 = vadd.f32 %v1144, %v1537
      %v1600 = vadd.f32 %v1145, %v1542
      %v1601 = vadd.f32 %v1146, %v1547
      %v1602 = vadd.f32 %v1147, %v1552
      %v1603 = vadd.f32 %v1148, %v1557
      %v1604 = vadd.f32 %v1149, %v1562
      %v1605 = vadd.f32 %v1150, %v1567
      %v1606 = vadd.f32 %v1151, %v1572
      %s1607 = scalar_lea.vmem %s165, 12
      %v1608 = vld [vmem:[%s1607] sm:$0xf]
      %v1609 = vld [vmem:[%s1607 + $0x4] sm:$0xf]
      %v1610 = vld [vmem:[%s1607 + $0xc] sm:$0xf]
      %v1611 = vld [vmem:[%s1607 + $0x10] sm:$0xf]
      %v1612 = vld [vmem:[%s1607 + $0x18] sm:$0xf]
      %v1613 = vld [vmem:[%s1607 + $0x1c] sm:$0xf]
      %v1614 = vld [vmem:[%s1607 + $0x24] sm:$0xf]
      %v1615 = vld [vmem:[%s1607 + $0x28] sm:$0xf]
      %v1616 = vld [vmem:[%s1607 + $0x30] sm:$0xf]
      %v1617 = vld [vmem:[%s1607 + $0x34] sm:$0xf]
      %v1618 = vld [vmem:[%s1607 + $0x3c] sm:$0xf]
      %v1619 = vld [vmem:[%s1607 + $0x40] sm:$0xf]
      %v1620 = vld [vmem:[%s1607 + $0x48] sm:$0xf]
      %v1621 = vld [vmem:[%s1607 + $0x4c] sm:$0xf]
      %v1622 = vld [vmem:[%s1607 + $0x54] sm:$0xf]
      %v1623 = vld [vmem:[%s1607 + $0x58] sm:$0xf]
      %v1624 = vld [vmem:[%s1607 + $0x60] sm:$0xf]
      %v1625 = vld [vmem:[%s1607 + $0x64] sm:$0xf]
      %v1626 = vld [vmem:[%s1607 + $0x6c] sm:$0xf]
      %v1627 = vld [vmem:[%s1607 + $0x70] sm:$0xf]
      %v1628 = vld [vmem:[%s1607 + $0x78] sm:$0xf]
      %v1629 = vld [vmem:[%s1607 + $0x7c] sm:$0xf]
      %v1630 = vld [vmem:[%s1607 + $0x84] sm:$0xf]
      %v1631 = vld [vmem:[%s1607 + $0x88] sm:$0xf]
      %v1632 = vld [vmem:[%s1607 + $0x90] sm:$0xf]
      %v1633 = vld [vmem:[%s1607 + $0x94] sm:$0xf]
      %v1634 = vld [vmem:[%s1607 + $0x9c] sm:$0xf]
      %v1635 = vld [vmem:[%s1607 + $0xa0] sm:$0xf]
      %v1636 = vld [vmem:[%s1607 + $0xa8] sm:$0xf]
      %v1637 = vld [vmem:[%s1607 + $0xac] sm:$0xf]
      %v1638 = vld [vmem:[%s1607 + $0xb4] sm:$0xf]
      %v1639 = vld [vmem:[%s1607 + $0xb8] sm:$0xf]
      %v1640 = vunpack.c.l.bf16 %v1608
      %v1641 = vunpack.c.l.bf16 %v1609
      %v1642 = vunpack.c.l.bf16 %v1610
      %v1643 = vunpack.c.l.bf16 %v1611
      %v1644 = vunpack.c.l.bf16 %v1612
      %v1645 = vunpack.c.l.bf16 %v1613
      %v1646 = vunpack.c.l.bf16 %v1614
      %v1647 = vunpack.c.l.bf16 %v1615
      %v1648 = vunpack.c.l.bf16 %v1616
      %v1649 = vunpack.c.l.bf16 %v1617
      %v1650 = vunpack.c.l.bf16 %v1618
      %v1651 = vunpack.c.l.bf16 %v1619
      %v1652 = vunpack.c.l.bf16 %v1620
      %v1653 = vunpack.c.l.bf16 %v1621
      %v1654 = vunpack.c.l.bf16 %v1622
      %v1655 = vunpack.c.l.bf16 %v1623
      %v1656 = vunpack.c.l.bf16 %v1624
      %v1657 = vunpack.c.l.bf16 %v1625
      %v1658 = vunpack.c.l.bf16 %v1626
      %v1659 = vunpack.c.l.bf16 %v1627
      %v1660 = vunpack.c.l.bf16 %v1628
      %v1661 = vunpack.c.l.bf16 %v1629
      %v1662 = vunpack.c.l.bf16 %v1630
      %v1663 = vunpack.c.l.bf16 %v1631
      %v1664 = vunpack.c.l.bf16 %v1632
      %v1665 = vunpack.c.l.bf16 %v1633
      %v1666 = vunpack.c.l.bf16 %v1634
      %v1667 = vunpack.c.l.bf16 %v1635
      %v1668 = vunpack.c.l.bf16 %v1636
      %v1669 = vunpack.c.l.bf16 %v1637
      %v1670 = vunpack.c.l.bf16 %v1638
      %v1671 = vunpack.c.l.bf16 %v1639
      %s1672 = scalar_lea.vmem %s1, 96
      %v1673 = vld [vmem:[%s1672] sm:$0xff]
      %v1674 = vld [vmem:[%s1672 + $0x8] sm:$0xff]
      %v1675 = vld [vmem:[%s1672 + $0x10] sm:$0xff]
      %v1676 = vld [vmem:[%s1672 + $0x18] sm:$0xff]
      %v1678 = vsel %vm247, %v1640, 0
      %v1681 = vsel %vm247, %v1641, 0
      %v1684 = vsel %vm247, %v1642, 0
      %v1687 = vsel %vm247, %v1643, 0
      %v1690 = vsel %vm247, %v1644, 0
      %v1693 = vsel %vm247, %v1645, 0
      %v1696 = vsel %vm247, %v1646, 0
      %v1699 = vsel %vm247, %v1647, 0
      %v1702 = vsel %vm247, %v1648, 0
      %v1705 = vsel %vm247, %v1649, 0
      %v1708 = vsel %vm247, %v1650, 0
      %v1711 = vsel %vm247, %v1651, 0
      %v1714 = vsel %vm247, %v1652, 0
      %v1717 = vsel %vm247, %v1653, 0
      %v1720 = vsel %vm247, %v1654, 0
      %v1723 = vsel %vm247, %v1655, 0
      %v1726 = vsel %vm247, %v1656, 0
      %v1729 = vsel %vm247, %v1657, 0
      %v1732 = vsel %vm247, %v1658, 0
      %v1735 = vsel %vm247, %v1659, 0
      %v1738 = vsel %vm247, %v1660, 0
      %v1741 = vsel %vm247, %v1661, 0
      %v1744 = vsel %vm247, %v1662, 0
      %v1747 = vsel %vm247, %v1663, 0
      %v1750 = vsel %vm247, %v1664, 0
      %v1753 = vsel %vm247, %v1665, 0
      %v1756 = vsel %vm247, %v1666, 0
      %v1759 = vsel %vm247, %v1667, 0
      %v1762 = vsel %vm247, %v1668, 0
      %v1765 = vsel %vm247, %v1669, 0
      %v1768 = vsel %vm247, %v1670, 0
      %v1771 = vsel %vm247, %v1671, 0
      %1773 = vmatprep.subr.mxu0 0.0
      %1774 = vmatpush1.msra.mxu0 %v1673
      %1775 = vmatprep.subr.mxu0 0.0
      %1776 = vmatpush1.msra.mxu0 %v1674
      %1777 = vmatprep.subr.mxu0 0.0
      %1778 = vmatpush1.msra.mxu0 %v1675
      %1779 = vmatprep.subr.mxu0 0.0
      %1780 = vmatpush1.msra.mxu0 %v1676
      %1781 = vmatprep.subr.mxu0 0.0
      %1782 = vmatpush1.msra.mxu0 0.0
      %1783 = vmatprep.subr.mxu0 0.0
      %1784 = vmatpush1.msra.mxu0 0.0
      %1785 = vmatprep.subr.mxu0 0.0
      %1786 = vmatpush1.msra.mxu0 0.0
      %1787 = vmatprep.subr.mxu0 0.0
      %1788 = vmatpush1.msra.mxu0 0.0
      %1789 = vmatprep.subr.mxu0 0.0
      %1790 = vmatpush1.msra.mxu0 0.0
      %1791 = vmatprep.subr.mxu0 0.0
      %1792 = vmatpush1.msra.mxu0 0.0
      %1793 = vmatprep.subr.mxu0 0.0
      %1794 = vmatpush1.msra.mxu0 0.0
      %1795 = vmatprep.subr.mxu0 0.0
      %1796 = vmatpush1.msra.mxu0 0.0
      %1797 = vmatprep.subr.mxu0 0.0
      %1798 = vmatpush1.msra.mxu0 0.0
      %1799 = vmatprep.subr.mxu0 0.0
      %1800 = vmatpush1.msra.mxu0 0.0
      %1801 = vmatprep.subr.mxu0 0.0
      %1802 = vmatpush1.msra.mxu0 0.0
      %1803 = vmatprep.subr.mxu0 0.0
      %1804 = vmatpush1.msra.mxu0 0.0
      %1805 = vmatprep.subr.mxu0 0.0
      %1806 = vmatpush1.msra.mxu0 0.0
      %1807 = vmatprep.subr.mxu0 0.0
      %1808 = vmatpush1.msra.mxu0 0.0
      %1809 = vmatprep.subr.mxu0 0.0
      %1810 = vmatpush1.msra.mxu0 0.0
      %1811 = vmatprep.subr.mxu0 0.0
      %1812 = vmatpush1.msra.mxu0 0.0
      %1813 = vmatprep.subr.mxu0 0.0
      %1814 = vmatpush1.msra.mxu0 0.0
      %1815 = vmatprep.subr.mxu0 0.0
      %1816 = vmatpush1.msra.mxu0 0.0
      %1817 = vmatprep.subr.mxu0 0.0
      %1818 = vmatpush1.msra.mxu0 0.0
      %1819 = vmatprep.subr.mxu0 0.0
      %1820 = vmatpush1.msra.mxu0 0.0
      %1821 = vmatprep.subr.mxu0 0.0
      %1822 = vmatpush1.msra.mxu0 0.0
      %1823 = vmatprep.subr.mxu0 0.0
      %1824 = vmatpush1.msra.mxu0 0.0
      %1825 = vmatprep.subr.mxu0 0.0
      %1826 = vmatpush1.msra.mxu0 0.0
      %1827 = vmatprep.subr.mxu0 0.0
      %1828 = vmatpush1.msra.mxu0 0.0
      %1829 = vmatprep.subr.mxu0 0.0
      %1830 = vmatpush1.msra.mxu0 0.0
      %1831 = vmatprep.subr.mxu0 0.0
      %1832 = vmatpush1.msra.mxu0 0.0
      %1833 = vmatprep.subr.mxu0 0.0
      %1834 = vmatpush1.msra.mxu0 0.0
      %1835 = vmatprep.subr.mxu0 0.0
      %1836 = vmatpush1.msra.mxu0 0.0
      %1837 = vmatprep.mubr.f32.mxu0 0.0
      %1838 = vmatmul.mubr.f32.gmra.mrb[0].mxu0 %v1678
      %v1839 = vpop.f32.mrb[0].mxu0
      %v1840 = vadd.f32 0.0, %v1839
      %v1841 = vpop.f32.mrb[0].mxu0
      %1842 = vmatprep.mubr.f32.mxu0 0.0
      %1843 = vmatmul.mubr.f32.gmra.mrb[0].mxu0 %v1681
      %v1844 = vpop.f32.mrb[0].mxu0
      %v1845 = vadd.f32 0.0, %v1844
      %v1846 = vpop.f32.mrb[0].mxu0
      %1847 = vmatprep.mubr.f32.mxu0 0.0
      %1848 = vmatmul.mubr.f32.gmra.mrb[0].mxu0 %v1684
      %v1849 = vpop.f32.mrb[0].mxu0
      %v1850 = vadd.f32 0.0, %v1849
      %v1851 = vpop.f32.mrb[0].mxu0
      %1852 = vmatprep.mubr.f32.mxu0 0.0
      %1853 = vmatmul.mubr.f32.gmra.mrb[0].mxu0 %v1687
      %v1854 = vpop.f32.mrb[0].mxu0
      %v1855 = vadd.f32 0.0, %v1854
      %v1856 = vpop.f32.mrb[0].mxu0
      %1857 = vmatprep.mubr.f32.mxu0 0.0
      %1858 = vmatmul.mubr.f32.gmra.mrb[0].mxu0 %v1690
      %v1859 = vpop.f32.mrb[0].mxu0
      %v1860 = vadd.f32 0.0, %v1859
      %v1861 = vpop.f32.mrb[0].mxu0
      %1862 = vmatprep.mubr.f32.mxu0 0.0
      %1863 = vmatmul.mubr.f32.gmra.mrb[0].mxu0 %v1693
      %v1864 = vpop.f32.mrb[0].mxu0
      %v1865 = vadd.f32 0.0, %v1864
      %v1866 = vpop.f32.mrb[0].mxu0
      %1867 = vmatprep.mubr.f32.mxu0 0.0
      %1868 = vmatmul.mubr.f32.gmra.mrb[0].mxu0 %v1696
      %v1869 = vpop.f32.mrb[0].mxu0
      %v1870 = vadd.f32 0.0, %v1869
      %v1871 = vpop.f32.mrb[0].mxu0
      %1872 = vmatprep.mubr.f32.mxu0 0.0
      %1873 = vmatmul.mubr.f32.gmra.mrb[0].mxu0 %v1699
      %v1874 = vpop.f32.mrb[0].mxu0
      %v1875 = vadd.f32 0.0, %v1874
      %v1876 = vpop.f32.mrb[0].mxu0
      %1877 = vmatprep.mubr.f32.mxu0 0.0
      %1878 = vmatmul.mubr.f32.gmra.mrb[0].mxu0 %v1702
      %v1879 = vpop.f32.mrb[0].mxu0
      %v1880 = vadd.f32 0.0, %v1879
      %v1881 = vpop.f32.mrb[0].mxu0
      %1882 = vmatprep.mubr.f32.mxu0 0.0
      %1883 = vmatmul.mubr.f32.gmra.mrb[0].mxu0 %v1705
      %v1884 = vpop.f32.mrb[0].mxu0
      %v1885 = vadd.f32 0.0, %v1884
      %v1886 = vpop.f32.mrb[0].mxu0
      %1887 = vmatprep.mubr.f32.mxu0 0.0
      %1888 = vmatmul.mubr.f32.gmra.mrb[0].mxu0 %v1708
      %v1889 = vpop.f32.mrb[0].mxu0
      %v1890 = vadd.f32 0.0, %v1889
      %v1891 = vpop.f32.mrb[0].mxu0
      %1892 = vmatprep.mubr.f32.mxu0 0.0
      %1893 = vmatmul.mubr.f32.gmra.mrb[0].mxu0 %v1711
      %v1894 = vpop.f32.mrb[0].mxu0
      %v1895 = vadd.f32 0.0, %v1894
      %v1896 = vpop.f32.mrb[0].mxu0
      %1897 = vmatprep.mubr.f32.mxu0 0.0
      %1898 = vmatmul.mubr.f32.gmra.mrb[0].mxu0 %v1714
      %v1899 = vpop.f32.mrb[0].mxu0
      %v1900 = vadd.f32 0.0, %v1899
      %v1901 = vpop.f32.mrb[0].mxu0
      %1902 = vmatprep.mubr.f32.mxu0 0.0
      %1903 = vmatmul.mubr.f32.gmra.mrb[0].mxu0 %v1717
      %v1904 = vpop.f32.mrb[0].mxu0
      %v1905 = vadd.f32 0.0, %v1904
      %v1906 = vpop.f32.mrb[0].mxu0
      %1907 = vmatprep.mubr.f32.mxu0 0.0
      %1908 = vmatmul.mubr.f32.gmra.mrb[0].mxu0 %v1720
      %v1909 = vpop.f32.mrb[0].mxu0
      %v1910 = vadd.f32 0.0, %v1909
      %v1911 = vpop.f32.mrb[0].mxu0
      %1912 = vmatprep.mubr.f32.mxu0 0.0
      %1913 = vmatmul.mubr.f32.gmra.mrb[0].mxu0 %v1723
      %v1914 = vpop.f32.mrb[0].mxu0
      %v1915 = vadd.f32 0.0, %v1914
      %v1916 = vpop.f32.mrb[0].mxu0
      %1917 = vmatprep.mubr.f32.mxu0 0.0
      %1918 = vmatmul.mubr.f32.gmra.mrb[0].mxu0 %v1726
      %v1919 = vpop.f32.mrb[0].mxu0
      %v1920 = vadd.f32 0.0, %v1919
      %v1921 = vpop.f32.mrb[0].mxu0
      %1922 = vmatprep.mubr.f32.mxu0 0.0
      %1923 = vmatmul.mubr.f32.gmra.mrb[0].mxu0 %v1729
      %v1924 = vpop.f32.mrb[0].mxu0
      %v1925 = vadd.f32 0.0, %v1924
      %v1926 = vpop.f32.mrb[0].mxu0
      %1927 = vmatprep.mubr.f32.mxu0 0.0
      %1928 = vmatmul.mubr.f32.gmra.mrb[0].mxu0 %v1732
      %v1929 = vpop.f32.mrb[0].mxu0
      %v1930 = vadd.f32 0.0, %v1929
      %v1931 = vpop.f32.mrb[0].mxu0
      %1932 = vmatprep.mubr.f32.mxu0 0.0
      %1933 = vmatmul.mubr.f32.gmra.mrb[0].mxu0 %v1735
      %v1934 = vpop.f32.mrb[0].mxu0
      %v1935 = vadd.f32 0.0, %v1934
      %v1936 = vpop.f32.mrb[0].mxu0
      %1937 = vmatprep.mubr.f32.mxu0 0.0
      %1938 = vmatmul.mubr.f32.gmra.mrb[0].mxu0 %v1738
      %v1939 = vpop.f32.mrb[0].mxu0
      %v1940 = vadd.f32 0.0, %v1939
      %v1941 = vpop.f32.mrb[0].mxu0
      %1942 = vmatprep.mubr.f32.mxu0 0.0
      %1943 = vmatmul.mubr.f32.gmra.mrb[0].mxu0 %v1741
      %v1944 = vpop.f32.mrb[0].mxu0
      %v1945 = vadd.f32 0.0, %v1944
      %v1946 = vpop.f32.mrb[0].mxu0
      %1947 = vmatprep.mubr.f32.mxu0 0.0
      %1948 = vmatmul.mubr.f32.gmra.mrb[0].mxu0 %v1744
      %v1949 = vpop.f32.mrb[0].mxu0
      %v1950 = vadd.f32 0.0, %v1949
      %v1951 = vpop.f32.mrb[0].mxu0
      %1952 = vmatprep.mubr.f32.mxu0 0.0
      %1953 = vmatmul.mubr.f32.gmra.mrb[0].mxu0 %v1747
      %v1954 = vpop.f32.mrb[0].mxu0
      %v1955 = vadd.f32 0.0, %v1954
      %v1956 = vpop.f32.mrb[0].mxu0
      %1957 = vmatprep.mubr.f32.mxu0 0.0
      %1958 = vmatmul.mubr.f32.gmra.mrb[0].mxu0 %v1750
      %v1959 = vpop.f32.mrb[0].mxu0
      %v1960 = vadd.f32 0.0, %v1959
      %v1961 = vpop.f32.mrb[0].mxu0
      %1962 = vmatprep.mubr.f32.mxu0 0.0
      %1963 = vmatmul.mubr.f32.gmra.mrb[0].mxu0 %v1753
      %v1964 = vpop.f32.mrb[0].mxu0
      %v1965 = vadd.f32 0.0, %v1964
      %v1966 = vpop.f32.mrb[0].mxu0
      %1967 = vmatprep.mubr.f32.mxu0 0.0
      %1968 = vmatmul.mubr.f32.gmra.mrb[0].mxu0 %v1756
      %v1969 = vpop.f32.mrb[0].mxu0
      %v1970 = vadd.f32 0.0, %v1969
      %v1971 = vpop.f32.mrb[0].mxu0
      %1972 = vmatprep.mubr.f32.mxu0 0.0
      %1973 = vmatmul.mubr.f32.gmra.mrb[0].mxu0 %v1759
      %v1974 = vpop.f32.mrb[0].mxu0
      %v1975 = vadd.f32 0.0, %v1974
      %v1976 = vpop.f32.mrb[0].mxu0
      %1977 = vmatprep.mubr.f32.mxu0 0.0
      %1978 = vmatmul.mubr.f32.gmra.mrb[0].mxu0 %v1762
      %v1979 = vpop.f32.mrb[0].mxu0
      %v1980 = vadd.f32 0.0, %v1979
      %v1981 = vpop.f32.mrb[0].mxu0
      %1982 = vmatprep.mubr.f32.mxu0 0.0
      %1983 = vmatmul.mubr.f32.gmra.mrb[0].mxu0 %v1765
      %v1984 = vpop.f32.mrb[0].mxu0
      %v1985 = vadd.f32 0.0, %v1984
      %v1986 = vpop.f32.mrb[0].mxu0
      %1987 = vmatprep.mubr.f32.mxu0 0.0
      %1988 = vmatmul.mubr.f32.gmra.mrb[0].mxu0 %v1768
      %v1989 = vpop.f32.mrb[0].mxu0
      %v1990 = vadd.f32 0.0, %v1989
      %v1991 = vpop.f32.mrb[0].mxu0
      %1992 = vmatprep.mubr.f32.mxu0 0.0
      %1993 = vmatmul.mubr.f32.gmra.mrb[0].mxu0 %v1771
      %v1994 = vpop.f32.mrb[0].mxu0
      %v1995 = vadd.f32 0.0, %v1994
      %v1996 = vpop.f32.mrb[0].mxu0
      %1997 = vdwg.mxu0
      %v1998 = vadd.f32 %v1575, %v1840
      %v1999 = vadd.f32 %v1576, %v1845
      %v2000 = vadd.f32 %v1577, %v1850
      %v2001 = vadd.f32 %v1578, %v1855
      %v2002 = vadd.f32 %v1579, %v1860
      %v2003 = vadd.f32 %v1580, %v1865
      %v2004 = vadd.f32 %v1581, %v1870
      %v2005 = vadd.f32 %v1582, %v1875
      %v2006 = vadd.f32 %v1583, %v1880
      %v2007 = vadd.f32 %v1584, %v1885
      %v2008 = vadd.f32 %v1585, %v1890
      %v2009 = vadd.f32 %v1586, %v1895
      %v2010 = vadd.f32 %v1587, %v1900
      %v2011 = vadd.f32 %v1588, %v1905
      %v2012 = vadd.f32 %v1589, %v1910
      %v2013 = vadd.f32 %v1590, %v1915
      %v2014 = vadd.f32 %v1591, %v1920
      %v2015 = vadd.f32 %v1592, %v1925
      %v2016 = vadd.f32 %v1593, %v1930
      %v2017 = vadd.f32 %v1594, %v1935
      %v2018 = vadd.f32 %v1595, %v1940
      %v2019 = vadd.f32 %v1596, %v1945
      %v2020 = vadd.f32 %v1597, %v1950
      %v2021 = vadd.f32 %v1598, %v1955
      %v2022 = vadd.f32 %v1599, %v1960
      %v2023 = vadd.f32 %v1600, %v1965
      %v2024 = vadd.f32 %v1601, %v1970
      %v2025 = vadd.f32 %v1602, %v1975
      %v2026 = vadd.f32 %v1603, %v1980
      %v2027 = vadd.f32 %v1604, %v1985
      %v2028 = vadd.f32 %v1605, %v1990
      %v2029 = vadd.f32 %v1606, %v1995
      %v2030 = vld [vmem:[%s1607] sm:$0xf]
      %v2031 = vld [vmem:[%s1607 + $0x4] sm:$0xf]
      %v2032 = vld [vmem:[%s1607 + $0x8] sm:$0x1]
      %v2033 = vld [vmem:[%s1607 + $0xc] sm:$0xf]
      %v2034 = vld [vmem:[%s1607 + $0x10] sm:$0xf]
      %v2035 = vld [vmem:[%s1607 + $0x14] sm:$0x1]
      %v2036 = vld [vmem:[%s1607 + $0x18] sm:$0xf]
      %v2037 = vld [vmem:[%s1607 + $0x1c] sm:$0xf]
      %v2038 = vld [vmem:[%s1607 + $0x20] sm:$0x1]
      %v2039 = vld [vmem:[%s1607 + $0x24] sm:$0xf]
      %v2040 = vld [vmem:[%s1607 + $0x28] sm:$0xf]
      %v2041 = vld [vmem:[%s1607 + $0x2c] sm:$0x1]
      %v2042 = vld [vmem:[%s1607 + $0x30] sm:$0xf]
      %v2043 = vld [vmem:[%s1607 + $0x34] sm:$0xf]
      %v2044 = vld [vmem:[%s1607 + $0x38] sm:$0x1]
      %v2045 = vld [vmem:[%s1607 + $0x3c] sm:$0xf]
      %v2046 = vld [vmem:[%s1607 + $0x40] sm:$0xf]
      %v2047 = vld [vmem:[%s1607 + $0x44] sm:$0x1]
      %v2048 = vld [vmem:[%s1607 + $0x48] sm:$0xf]
      %v2049 = vld [vmem:[%s1607 + $0x4c] sm:$0xf]
      %v2050 = vld [vmem:[%s1607 + $0x50] sm:$0x1]
      %v2051 = vld [vmem:[%s1607 + $0x54] sm:$0xf]
      %v2052 = vld [vmem:[%s1607 + $0x58] sm:$0xf]
      %v2053 = vld [vmem:[%s1607 + $0x5c] sm:$0x1]
      %v2054 = vld [vmem:[%s1607 + $0x60] sm:$0xf]
      %v2055 = vld [vmem:[%s1607 + $0x64] sm:$0xf]
      %v2056 = vld [vmem:[%s1607 + $0x68] sm:$0x1]
      %v2057 = vld [vmem:[%s1607 + $0x6c] sm:$0xf]
      %v2058 = vld [vmem:[%s1607 + $0x70] sm:$0xf]
      %v2059 = vld [vmem:[%s1607 + $0x74] sm:$0x1]
      %v2060 = vld [vmem:[%s1607 + $0x78] sm:$0xf]
      %v2061 = vld [vmem:[%s1607 + $0x7c] sm:$0xf]
      %v2062 = vld [vmem:[%s1607 + $0x80] sm:$0x1]
      %v2063 = vld [vmem:[%s1607 + $0x84] sm:$0xf]
      %v2064 = vld [vmem:[%s1607 + $0x88] sm:$0xf]
      %v2065 = vld [vmem:[%s1607 + $0x8c] sm:$0x1]
      %v2066 = vld [vmem:[%s1607 + $0x90] sm:$0xf]
      %v2067 = vld [vmem:[%s1607 + $0x94] sm:$0xf]
      %v2068 = vld [vmem:[%s1607 + $0x98] sm:$0x1]
      %v2069 = vld [vmem:[%s1607 + $0x9c] sm:$0xf]
      %v2070 = vld [vmem:[%s1607 + $0xa0] sm:$0xf]
      %v2071 = vld [vmem:[%s1607 + $0xa4] sm:$0x1]
      %v2072 = vld [vmem:[%s1607 + $0xa8] sm:$0xf]
      %v2073 = vld [vmem:[%s1607 + $0xac] sm:$0xf]
      %v2074 = vld [vmem:[%s1607 + $0xb0] sm:$0x1]
      %v2075 = vld [vmem:[%s1607 + $0xb4] sm:$0xf]
      %v2076 = vld [vmem:[%s1607 + $0xb8] sm:$0xf]
      %v2077 = vld [vmem:[%s1607 + $0xbc] sm:$0x1]
      %v2078 = vunpack.c.l.bf16 %v2030
      %v2079 = vunpack.c.l.bf16 %v2031
      %v2080 = vunpack.c.l.bf16 %v2032
      %v2081 = vunpack.c.l.bf16 %v2033
      %v2082 = vunpack.c.l.bf16 %v2034
      %v2083 = vunpack.c.l.bf16 %v2035
      %v2084 = vunpack.c.l.bf16 %v2036
      %v2085 = vunpack.c.l.bf16 %v2037
      %v2086 = vunpack.c.l.bf16 %v2038
      %v2087 = vunpack.c.l.bf16 %v2039
      %v2088 = vunpack.c.l.bf16 %v2040
      %v2089 = vunpack.c.l.bf16 %v2041
      %v2090 = vunpack.c.l.bf16 %v2042
      %v2091 = vunpack.c.l.bf16 %v2043
      %v2092 = vunpack.c.l.bf16 %v2044
      %v2093 = vunpack.c.l.bf16 %v2045
      %v2094 = vunpack.c.l.bf16 %v2046
      %v2095 = vunpack.c.l.bf16 %v2047
      %v2096 = vunpack.c.l.bf16 %v2048
      %v2097 = vunpack.c.l.bf16 %v2049
      %v2098 = vunpack.c.l.bf16 %v2050
      %v2099 = vunpack.c.l.bf16 %v2051
      %v2100 = vunpack.c.l.bf16 %v2052
      %v2101 = vunpack.c.l.bf16 %v2053
      %v2102 = vunpack.c.l.bf16 %v2054
      %v2103 = vunpack.c.l.bf16 %v2055
      %v2104 = vunpack.c.l.bf16 %v2056
      %v2105 = vunpack.c.l.bf16 %v2057
      %v2106 = vunpack.c.l.bf16 %v2058
      %v2107 = vunpack.c.l.bf16 %v2059
      %v2108 = vunpack.c.l.bf16 %v2060
      %v2109 = vunpack.c.l.bf16 %v2061
      %v2110 = vunpack.c.l.bf16 %v2062
      %v2111 = vunpack.c.l.bf16 %v2063
      %v2112 = vunpack.c.l.bf16 %v2064
      %v2113 = vunpack.c.l.bf16 %v2065
      %v2114 = vunpack.c.l.bf16 %v2066
      %v2115 = vunpack.c.l.bf16 %v2067
      %v2116 = vunpack.c.l.bf16 %v2068
      %v2117 = vunpack.c.l.bf16 %v2069
      %v2118 = vunpack.c.l.bf16 %v2070
      %v2119 = vunpack.c.l.bf16 %v2071
      %v2120 = vunpack.c.l.bf16 %v2072
      %v2121 = vunpack.c.l.bf16 %v2073
      %v2122 = vunpack.c.l.bf16 %v2074
      %v2123 = vunpack.c.l.bf16 %v2075
      %v2124 = vunpack.c.l.bf16 %v2076
      %v2125 = vunpack.c.l.bf16 %v2077
      %v2174 = vrot.slane %v2078, 1
      %v2175 = vrot.slane %v2079, 1
      %v2176 = vsel %vm745, %v2174, %v2175
      %v2177 = vrot.slane %v2080, 1
      %v2178 = vsel %vm745, %v2175, %v2177
      %v2179 = vrot.slane %v2081, 1
      %v2180 = vrot.slane %v2082, 1
      %v2181 = vsel %vm745, %v2179, %v2180
      %v2182 = vrot.slane %v2083, 1
      %v2183 = vsel %vm745, %v2180, %v2182
      %v2184 = vrot.slane %v2084, 1
      %v2185 = vrot.slane %v2085, 1
      %v2186 = vsel %vm745, %v2184, %v2185
      %v2187 = vrot.slane %v2086, 1
      %v2188 = vsel %vm745, %v2185, %v2187
      %v2189 = vrot.slane %v2087, 1
      %v2190 = vrot.slane %v2088, 1
      %v2191 = vsel %vm745, %v2189, %v2190
      %v2192 = vrot.slane %v2089, 1
      %v2193 = vsel %vm745, %v2190, %v2192
      %v2194 = vrot.slane %v2090, 1
      %v2195 = vrot.slane %v2091, 1
      %v2196 = vsel %vm745, %v2194, %v2195
      %v2197 = vrot.slane %v2092, 1
      %v2198 = vsel %vm745, %v2195, %v2197
      %v2199 = vrot.slane %v2093, 1
      %v2200 = vrot.slane %v2094, 1
      %v2201 = vsel %vm745, %v2199, %v2200
      %v2202 = vrot.slane %v2095, 1
      %v2203 = vsel %vm745, %v2200, %v2202
      %v2204 = vrot.slane %v2096, 1
      %v2205 = vrot.slane %v2097, 1
      %v2206 = vsel %vm745, %v2204, %v2205
      %v2207 = vrot.slane %v2098, 1
      %v2208 = vsel %vm745, %v2205, %v2207
      %v2209 = vrot.slane %v2099, 1
      %v2210 = vrot.slane %v2100, 1
      %v2211 = vsel %vm745, %v2209, %v2210
      %v2212 = vrot.slane %v2101, 1
      %v2213 = vsel %vm745, %v2210, %v2212
      %v2214 = vrot.slane %v2102, 1
      %v2215 = vrot.slane %v2103, 1
      %v2216 = vsel %vm745, %v2214, %v2215
      %v2217 = vrot.slane %v2104, 1
      %v2218 = vsel %vm745, %v2215, %v2217
      %v2219 = vrot.slane %v2105, 1
      %v2220 = vrot.slane %v2106, 1
      %v2221 = vsel %vm745, %v2219, %v2220
      %v2222 = vrot.slane %v2107, 1
      %v2223 = vsel %vm745, %v2220, %v2222
      %v2224 = vrot.slane %v2108, 1
      %v2225 = vrot.slane %v2109, 1
      %v2226 = vsel %vm745, %v2224, %v2225
      %v2227 = vrot.slane %v2110, 1
      %v2228 = vsel %vm745, %v2225, %v2227
      %v2229 = vrot.slane %v2111, 1
      %v2230 = vrot.slane %v2112, 1
      %v2231 = vsel %vm745, %v2229, %v2230
      %v2232 = vrot.slane %v2113, 1
      %v2233 = vsel %vm745, %v2230, %v2232
      %v2234 = vrot.slane %v2114, 1
      %v2235 = vrot.slane %v2115, 1
      %v2236 = vsel %vm745, %v2234, %v2235
      %v2237 = vrot.slane %v2116, 1
      %v2238 = vsel %vm745, %v2235, %v2237
      %v2239 = vrot.slane %v2117, 1
      %v2240 = vrot.slane %v2118, 1
      %v2241 = vsel %vm745, %v2239, %v2240
      %v2242 = vrot.slane %v2119, 1
      %v2243 = vsel %vm745, %v2240, %v2242
      %v2244 = vrot.slane %v2120, 1
      %v2245 = vrot.slane %v2121, 1
      %v2246 = vsel %vm745, %v2244, %v2245
      %v2247 = vrot.slane %v2122, 1
      %v2248 = vsel %vm745, %v2245, %v2247
      %v2249 = vrot.slane %v2123, 1
      %v2250 = vrot.slane %v2124, 1
      %v2251 = vsel %vm745, %v2249, %v2250
      %v2252 = vrot.slane %v2125, 1
      %v2253 = vsel %vm745, %v2250, %v2252
      %s2254 = scalar_lea.vmem %s1, 128
      %v2255 = vld [vmem:[%s2254] sm:$0xff]
      %v2256 = vld [vmem:[%s2254 + $0x8] sm:$0xff]
      %v2257 = vld [vmem:[%s2254 + $0x10] sm:$0xff]
      %v2258 = vld [vmem:[%s2254 + $0x18] sm:$0xff]
      %v2259 = vsel %vm247, %v2176, 0
      %v2261 = vsel %vm247, %v2178, 0
      %v2263 = vsel %vm247, %v2181, 0
      %v2265 = vsel %vm247, %v2183, 0
      %v2267 = vsel %vm247, %v2186, 0
      %v2269 = vsel %vm247, %v2188, 0
      %v2271 = vsel %vm247, %v2191, 0
      %v2273 = vsel %vm247, %v2193, 0
      %v2275 = vsel %vm247, %v2196, 0
      %v2277 = vsel %vm247, %v2198, 0
      %v2279 = vsel %vm247, %v2201, 0
      %v2281 = vsel %vm247, %v2203, 0
      %v2283 = vsel %vm247, %v2206, 0
      %v2285 = vsel %vm247, %v2208, 0
      %v2287 = vsel %vm247, %v2211, 0
      %v2289 = vsel %vm247, %v2213, 0
      %v2291 = vsel %vm247, %v2216, 0
      %v2293 = vsel %vm247, %v2218, 0
      %v2295 = vsel %vm247, %v2221, 0
      %v2297 = vsel %vm247, %v2223, 0
      %v2299 = vsel %vm247, %v2226, 0
      %v2301 = vsel %vm247, %v2228, 0
      %v2303 = vsel %vm247, %v2231, 0
      %v2305 = vsel %vm247, %v2233, 0
      %v2307 = vsel %vm247, %v2236, 0
      %v2309 = vsel %vm247, %v2238, 0
      %v2311 = vsel %vm247, %v2241, 0
      %v2313 = vsel %vm247, %v2243, 0
      %v2315 = vsel %vm247, %v2246, 0
      %v2317 = vsel %vm247, %v2248, 0
      %v2319 = vsel %vm247, %v2251, 0
      %v2321 = vsel %vm247, %v2253, 0
      %2323 = vmatprep.subr.mxu0 0.0
      %2324 = vmatpush1.msra.mxu0 %v2255
      %2325 = vmatprep.subr.mxu0 0.0
      %2326 = vmatpush1.msra.mxu0 %v2256
      %2327 = vmatprep.subr.mxu0 0.0
      %2328 = vmatpush1.msra.mxu0 %v2257
      %2329 = vmatprep.subr.mxu0 0.0
      %2330 = vmatpush1.msra.mxu0 %v2258
      %2331 = vmatprep.subr.mxu0 0.0
      %2332 = vmatpush1.msra.mxu0 0.0
      %2333 = vmatprep.subr.mxu0 0.0
      %2334 = vmatpush1.msra.mxu0 0.0
      %2335 = vmatprep.subr.mxu0 0.0
      %2336 = vmatpush1.msra.mxu0 0.0
      %2337 = vmatprep.subr.mxu0 0.0
      %2338 = vmatpush1.msra.mxu0 0.0
      %2339 = vmatprep.subr.mxu0 0.0
      %2340 = vmatpush1.msra.mxu0 0.0
      %2341 = vmatprep.subr.mxu0 0.0
      %2342 = vmatpush1.msra.mxu0 0.0
      %2343 = vmatprep.subr.mxu0 0.0
      %2344 = vmatpush1.msra.mxu0 0.0
      %2345 = vmatprep.subr.mxu0 0.0
      %2346 = vmatpush1.msra.mxu0 0.0
      %2347 = vmatprep.subr.mxu0 0.0
      %2348 = vmatpush1.msra.mxu0 0.0
      %2349 = vmatprep.subr.mxu0 0.0
      %2350 = vmatpush1.msra.mxu0 0.0
      %2351 = vmatprep.subr.mxu0 0.0
      %2352 = vmatpush1.msra.mxu0 0.0
      %2353 = vmatprep.subr.mxu0 0.0
      %2354 = vmatpush1.msra.mxu0 0.0
      %2355 = vmatprep.subr.mxu0 0.0
      %2356 = vmatpush1.msra.mxu0 0.0
      %2357 = vmatprep.subr.mxu0 0.0
      %2358 = vmatpush1.msra.mxu0 0.0
      %2359 = vmatprep.subr.mxu0 0.0
      %2360 = vmatpush1.msra.mxu0 0.0
      %2361 = vmatprep.subr.mxu0 0.0
      %2362 = vmatpush1.msra.mxu0 0.0
      %2363 = vmatprep.subr.mxu0 0.0
      %2364 = vmatpush1.msra.mxu0 0.0
      %2365 = vmatprep.subr.mxu0 0.0
      %2366 = vmatpush1.msra.mxu0 0.0
      %2367 = vmatprep.subr.mxu0 0.0
      %2368 = vmatpush1.msra.mxu0 0.0
      %2369 = vmatprep.subr.mxu0 0.0
      %2370 = vmatpush1.msra.mxu0 0.0
      %2371 = vmatprep.subr.mxu0 0.0
      %2372 = vmatpush1.msra.mxu0 0.0
      %2373 = vmatprep.subr.mxu0 0.0
      %2374 = vmatpush1.msra.mxu0 0.0
      %2375 = vmatprep.subr.mxu0 0.0
      %2376 = vmatpush1.msra.mxu0 0.0
      %2377 = vmatprep.subr.mxu0 0.0
      %2378 = vmatpush1.msra.mxu0 0.0
      %2379 = vmatprep.subr.mxu0 0.0
      %2380 = vmatpush1.msra.mxu0 0.0
      %2381 = vmatprep.subr.mxu0 0.0
      %2382 = vmatpush1.msra.mxu0 0.0
      %2383 = vmatprep.subr.mxu0 0.0
      %2384 = vmatpush1.msra.mxu0 0.0
      %2385 = vmatprep.subr.mxu0 0.0
      %2386 = vmatpush1.msra.mxu0 0.0
      %2387 = vmatprep.mubr.f32.mxu0 0.0
      %2388 = vmatmul.mubr.f32.gmra.mrb[0].mxu0 %v2259
      %v2389 = vpop.f32.mrb[0].mxu0
      %v2390 = vadd.f32 0.0, %v2389
      %v2391 = vpop.f32.mrb[0].mxu0
      %2392 = vmatprep.mubr.f32.mxu0 0.0
      %2393 = vmatmul.mubr.f32.gmra.mrb[0].mxu0 %v2261
      %v2394 = vpop.f32.mrb[0].mxu0
      %v2395 = vadd.f32 0.0, %v2394
      %v2396 = vpop.f32.mrb[0].mxu0
      %2397 = vmatprep.mubr.f32.mxu0 0.0
      %2398 = vmatmul.mubr.f32.gmra.mrb[0].mxu0 %v2263
      %v2399 = vpop.f32.mrb[0].mxu0
      %v2400 = vadd.f32 0.0, %v2399
      %v2401 = vpop.f32.mrb[0].mxu0
      %2402 = vmatprep.mubr.f32.mxu0 0.0
      %2403 = vmatmul.mubr.f32.gmra.mrb[0].mxu0 %v2265
      %v2404 = vpop.f32.mrb[0].mxu0
      %v2405 = vadd.f32 0.0, %v2404
      %v2406 = vpop.f32.mrb[0].mxu0
      %2407 = vmatprep.mubr.f32.mxu0 0.0
      %2408 = vmatmul.mubr.f32.gmra.mrb[0].mxu0 %v2267
      %v2409 = vpop.f32.mrb[0].mxu0
      %v2410 = vadd.f32 0.0, %v2409
      %v2411 = vpop.f32.mrb[0].mxu0
      %2412 = vmatprep.mubr.f32.mxu0 0.0
      %2413 = vmatmul.mubr.f32.gmra.mrb[0].mxu0 %v2269
      %v2414 = vpop.f32.mrb[0].mxu0
      %v2415 = vadd.f32 0.0, %v2414
      %v2416 = vpop.f32.mrb[0].mxu0
      %2417 = vmatprep.mubr.f32.mxu0 0.0
      %2418 = vmatmul.mubr.f32.gmra.mrb[0].mxu0 %v2271
      %v2419 = vpop.f32.mrb[0].mxu0
      %v2420 = vadd.f32 0.0, %v2419
      %v2421 = vpop.f32.mrb[0].mxu0
      %2422 = vmatprep.mubr.f32.mxu0 0.0
      %2423 = vmatmul.mubr.f32.gmra.mrb[0].mxu0 %v2273
      %v2424 = vpop.f32.mrb[0].mxu0
      %v2425 = vadd.f32 0.0, %v2424
      %v2426 = vpop.f32.mrb[0].mxu0
      %2427 = vmatprep.mubr.f32.mxu0 0.0
      %2428 = vmatmul.mubr.f32.gmra.mrb[0].mxu0 %v2275
      %v2429 = vpop.f32.mrb[0].mxu0
      %v2430 = vadd.f32 0.0, %v2429
      %v2431 = vpop.f32.mrb[0].mxu0
      %2432 = vmatprep.mubr.f32.mxu0 0.0
      %2433 = vmatmul.mubr.f32.gmra.mrb[0].mxu0 %v2277
      %v2434 = vpop.f32.mrb[0].mxu0
      %v2435 = vadd.f32 0.0, %v2434
      %v2436 = vpop.f32.mrb[0].mxu0
      %2437 = vmatprep.mubr.f32.mxu0 0.0
      %2438 = vmatmul.mubr.f32.gmra.mrb[0].mxu0 %v2279
      %v2439 = vpop.f32.mrb[0].mxu0
      %v2440 = vadd.f32 0.0, %v2439
      %v2441 = vpop.f32.mrb[0].mxu0
      %2442 = vmatprep.mubr.f32.mxu0 0.0
      %2443 = vmatmul.mubr.f32.gmra.mrb[0].mxu0 %v2281
      %v2444 = vpop.f32.mrb[0].mxu0
      %v2445 = vadd.f32 0.0, %v2444
      %v2446 = vpop.f32.mrb[0].mxu0
      %2447 = vmatprep.mubr.f32.mxu0 0.0
      %2448 = vmatmul.mubr.f32.gmra.mrb[0].mxu0 %v2283
      %v2449 = vpop.f32.mrb[0].mxu0
      %v2450 = vadd.f32 0.0, %v2449
      %v2451 = vpop.f32.mrb[0].mxu0
      %2452 = vmatprep.mubr.f32.mxu0 0.0
      %2453 = vmatmul.mubr.f32.gmra.mrb[0].mxu0 %v2285
      %v2454 = vpop.f32.mrb[0].mxu0
      %v2455 = vadd.f32 0.0, %v2454
      %v2456 = vpop.f32.mrb[0].mxu0
      %2457 = vmatprep.mubr.f32.mxu0 0.0
      %2458 = vmatmul.mubr.f32.gmra.mrb[0].mxu0 %v2287
      %v2459 = vpop.f32.mrb[0].mxu0
      %v2460 = vadd.f32 0.0, %v2459
      %v2461 = vpop.f32.mrb[0].mxu0
      %2462 = vmatprep.mubr.f32.mxu0 0.0
      %2463 = vmatmul.mubr.f32.gmra.mrb[0].mxu0 %v2289
      %v2464 = vpop.f32.mrb[0].mxu0
      %v2465 = vadd.f32 0.0, %v2464
      %v2466 = vpop.f32.mrb[0].mxu0
      %2467 = vmatprep.mubr.f32.mxu0 0.0
      %2468 = vmatmul.mubr.f32.gmra.mrb[0].mxu0 %v2291
      %v2469 = vpop.f32.mrb[0].mxu0
      %v2470 = vadd.f32 0.0, %v2469
      %v2471 = vpop.f32.mrb[0].mxu0
      %2472 = vmatprep.mubr.f32.mxu0 0.0
      %2473 = vmatmul.mubr.f32.gmra.mrb[0].mxu0 %v2293
      %v2474 = vpop.f32.mrb[0].mxu0
      %v2475 = vadd.f32 0.0, %v2474
      %v2476 = vpop.f32.mrb[0].mxu0
      %2477 = vmatprep.mubr.f32.mxu0 0.0
      %2478 = vmatmul.mubr.f32.gmra.mrb[0].mxu0 %v2295
      %v2479 = vpop.f32.mrb[0].mxu0
      %v2480 = vadd.f32 0.0, %v2479
      %v2481 = vpop.f32.mrb[0].mxu0
      %2482 = vmatprep.mubr.f32.mxu0 0.0
      %2483 = vmatmul.mubr.f32.gmra.mrb[0].mxu0 %v2297
      %v2484 = vpop.f32.mrb[0].mxu0
      %v2485 = vadd.f32 0.0, %v2484
      %v2486 = vpop.f32.mrb[0].mxu0
      %2487 = vmatprep.mubr.f32.mxu0 0.0
      %2488 = vmatmul.mubr.f32.gmra.mrb[0].mxu0 %v2299
      %v2489 = vpop.f32.mrb[0].mxu0
      %v2490 = vadd.f32 0.0, %v2489
      %v2491 = vpop.f32.mrb[0].mxu0
      %2492 = vmatprep.mubr.f32.mxu0 0.0
      %2493 = vmatmul.mubr.f32.gmra.mrb[0].mxu0 %v2301
      %v2494 = vpop.f32.mrb[0].mxu0
      %v2495 = vadd.f32 0.0, %v2494
      %v2496 = vpop.f32.mrb[0].mxu0
      %2497 = vmatprep.mubr.f32.mxu0 0.0
      %2498 = vmatmul.mubr.f32.gmra.mrb[0].mxu0 %v2303
      %v2499 = vpop.f32.mrb[0].mxu0
      %v2500 = vadd.f32 0.0, %v2499
      %v2501 = vpop.f32.mrb[0].mxu0
      %2502 = vmatprep.mubr.f32.mxu0 0.0
      %2503 = vmatmul.mubr.f32.gmra.mrb[0].mxu0 %v2305
      %v2504 = vpop.f32.mrb[0].mxu0
      %v2505 = vadd.f32 0.0, %v2504
      %v2506 = vpop.f32.mrb[0].mxu0
      %2507 = vmatprep.mubr.f32.mxu0 0.0
      %2508 = vmatmul.mubr.f32.gmra.mrb[0].mxu0 %v2307
      %v2509 = vpop.f32.mrb[0].mxu0
      %v2510 = vadd.f32 0.0, %v2509
      %v2511 = vpop.f32.mrb[0].mxu0
      %2512 = vmatprep.mubr.f32.mxu0 0.0
      %2513 = vmatmul.mubr.f32.gmra.mrb[0].mxu0 %v2309
      %v2514 = vpop.f32.mrb[0].mxu0
      %v2515 = vadd.f32 0.0, %v2514
      %v2516 = vpop.f32.mrb[0].mxu0
      %2517 = vmatprep.mubr.f32.mxu0 0.0
      %2518 = vmatmul.mubr.f32.gmra.mrb[0].mxu0 %v2311
      %v2519 = vpop.f32.mrb[0].mxu0
      %v2520 = vadd.f32 0.0, %v2519
      %v2521 = vpop.f32.mrb[0].mxu0
      %2522 = vmatprep.mubr.f32.mxu0 0.0
      %2523 = vmatmul.mubr.f32.gmra.mrb[0].mxu0 %v2313
      %v2524 = vpop.f32.mrb[0].mxu0
      %v2525 = vadd.f32 0.0, %v2524
      %v2526 = vpop.f32.mrb[0].mxu0
      %2527 = vmatprep.mubr.f32.mxu0 0.0
      %2528 = vmatmul.mubr.f32.gmra.mrb[0].mxu0 %v2315
      %v2529 = vpop.f32.mrb[0].mxu0
      %v2530 = vadd.f32 0.0, %v2529
      %v2531 = vpop.f32.mrb[0].mxu0
      %2532 = vmatprep.mubr.f32.mxu0 0.0
      %2533 = vmatmul.mubr.f32.gmra.mrb[0].mxu0 %v2317
      %v2534 = vpop.f32.mrb[0].mxu0
      %v2535 = vadd.f32 0.0, %v2534
      %v2536 = vpop.f32.mrb[0].mxu0
      %2537 = vmatprep.mubr.f32.mxu0 0.0
      %2538 = vmatmul.mubr.f32.gmra.mrb[0].mxu0 %v2319
      %v2539 = vpop.f32.mrb[0].mxu0
      %v2540 = vadd.f32 0.0, %v2539
      %v2541 = vpop.f32.mrb[0].mxu0
      %2542 = vmatprep.mubr.f32.mxu0 0.0
      %2543 = vmatmul.mubr.f32.gmra.mrb[0].mxu0 %v2321
      %v2544 = vpop.f32.mrb[0].mxu0
      %v2545 = vadd.f32 0.0, %v2544
      %v2546 = vpop.f32.mrb[0].mxu0
      %2547 = vdwg.mxu0
      %v2548 = vadd.f32 %v1998, %v2390
      %v2549 = vadd.f32 %v1999, %v2395
      %v2550 = vadd.f32 %v2000, %v2400
      %v2551 = vadd.f32 %v2001, %v2405
      %v2552 = vadd.f32 %v2002, %v2410
      %v2553 = vadd.f32 %v2003, %v2415
      %v2554 = vadd.f32 %v2004, %v2420
      %v2555 = vadd.f32 %v2005, %v2425
      %v2556 = vadd.f32 %v2006, %v2430
      %v2557 = vadd.f32 %v2007, %v2435
      %v2558 = vadd.f32 %v2008, %v2440
      %v2559 = vadd.f32 %v2009, %v2445
      %v2560 = vadd.f32 %v2010, %v2450
      %v2561 = vadd.f32 %v2011, %v2455
      %v2562 = vadd.f32 %v2012, %v2460
      %v2563 = vadd.f32 %v2013, %v2465
      %v2564 = vadd.f32 %v2014, %v2470
      %v2565 = vadd.f32 %v2015, %v2475
      %v2566 = vadd.f32 %v2016, %v2480
      %v2567 = vadd.f32 %v2017, %v2485
      %v2568 = vadd.f32 %v2018, %v2490
      %v2569 = vadd.f32 %v2019, %v2495
      %v2570 = vadd.f32 %v2020, %v2500
      %v2571 = vadd.f32 %v2021, %v2505
      %v2572 = vadd.f32 %v2022, %v2510
      %v2573 = vadd.f32 %v2023, %v2515
      %v2574 = vadd.f32 %v2024, %v2520
      %v2575 = vadd.f32 %v2025, %v2525
      %v2576 = vadd.f32 %v2026, %v2530
      %v2577 = vadd.f32 %v2027, %v2535
      %v2578 = vadd.f32 %v2028, %v2540
      %v2579 = vadd.f32 %v2029, %v2545
      %v2580 = vld [vmem:[%s1607] sm:$0xe]
      %v2581 = vld [vmem:[%s1607 + $0xc] sm:$0xe]
      %v2582 = vld [vmem:[%s1607 + $0x18] sm:$0xe]
      %v2583 = vld [vmem:[%s1607 + $0x24] sm:$0xe]
      %v2584 = vld [vmem:[%s1607 + $0x30] sm:$0xe]
      %v2585 = vld [vmem:[%s1607 + $0x3c] sm:$0xe]
      %v2586 = vld [vmem:[%s1607 + $0x48] sm:$0xe]
      %v2587 = vld [vmem:[%s1607 + $0x54] sm:$0xe]
      %v2588 = vld [vmem:[%s1607 + $0x60] sm:$0xe]
      %v2589 = vld [vmem:[%s1607 + $0x6c] sm:$0xe]
      %v2590 = vld [vmem:[%s1607 + $0x78] sm:$0xe]
      %v2591 = vld [vmem:[%s1607 + $0x84] sm:$0xe]
      %v2592 = vld [vmem:[%s1607 + $0x90] sm:$0xe]
      %v2593 = vld [vmem:[%s1607 + $0x9c] sm:$0xe]
      %v2594 = vld [vmem:[%s1607 + $0xa8] sm:$0xe]
      %v2595 = vld [vmem:[%s1607 + $0xb4] sm:$0xe]
      %v2596 = vunpack.c.l.bf16 %v2580
      %v2597 = vunpack.c.l.bf16 %v2581
      %v2598 = vunpack.c.l.bf16 %v2582
      %v2599 = vunpack.c.l.bf16 %v2583
      %v2600 = vunpack.c.l.bf16 %v2584
      %v2601 = vunpack.c.l.bf16 %v2585
      %v2602 = vunpack.c.l.bf16 %v2586
      %v2603 = vunpack.c.l.bf16 %v2587
      %v2604 = vunpack.c.l.bf16 %v2588
      %v2605 = vunpack.c.l.bf16 %v2589
      %v2606 = vunpack.c.l.bf16 %v2590
      %v2607 = vunpack.c.l.bf16 %v2591
      %v2608 = vunpack.c.l.bf16 %v2592
      %v2609 = vunpack.c.l.bf16 %v2593
      %v2610 = vunpack.c.l.bf16 %v2594
      %v2611 = vunpack.c.l.bf16 %v2595
      %v2628 = vrot.slane %v2596, 2
      %v2629 = vrot.slane %v2079, 2
      %v2630 = vsel %vm1200, %v2628, %v2629
      %v2631 = vrot.slane %v2080, 2
      %v2632 = vsel %vm1200, %v2629, %v2631
      %v2633 = vrot.slane %v2597, 2
      %v2634 = vrot.slane %v2082, 2
      %v2635 = vsel %vm1200, %v2633, %v2634
      %v2636 = vrot.slane %v2083, 2
      %v2637 = vsel %vm1200, %v2634, %v2636
      %v2638 = vrot.slane %v2598, 2
      %v2639 = vrot.slane %v2085, 2
      %v2640 = vsel %vm1200, %v2638, %v2639
      %v2641 = vrot.slane %v2086, 2
      %v2642 = vsel %vm1200, %v2639, %v2641
      %v2643 = vrot.slane %v2599, 2
      %v2644 = vrot.slane %v2088, 2
      %v2645 = vsel %vm1200, %v2643, %v2644
      %v2646 = vrot.slane %v2089, 2
      %v2647 = vsel %vm1200, %v2644, %v2646
      %v2648 = vrot.slane %v2600, 2
      %v2649 = vrot.slane %v2091, 2
      %v2650 = vsel %vm1200, %v2648, %v2649
      %v2651 = vrot.slane %v2092, 2
      %v2652 = vsel %vm1200, %v2649, %v2651
      %v2653 = vrot.slane %v2601, 2
      %v2654 = vrot.slane %v2094, 2
      %v2655 = vsel %vm1200, %v2653, %v2654
      %v2656 = vrot.slane %v2095, 2
      %v2657 = vsel %vm1200, %v2654, %v2656
      %v2658 = vrot.slane %v2602, 2
      %v2659 = vrot.slane %v2097, 2
      %v2660 = vsel %vm1200, %v2658, %v2659
      %v2661 = vrot.slane %v2098, 2
      %v2662 = vsel %vm1200, %v2659, %v2661
      %v2663 = vrot.slane %v2603, 2
      %v2664 = vrot.slane %v2100, 2
      %v2665 = vsel %vm1200, %v2663, %v2664
      %v2666 = vrot.slane %v2101, 2
      %v2667 = vsel %vm1200, %v2664, %v2666
      %v2668 = vrot.slane %v2604, 2
      %v2669 = vrot.slane %v2103, 2
      %v2670 = vsel %vm1200, %v2668, %v2669
      %v2671 = vrot.slane %v2104, 2
      %v2672 = vsel %vm1200, %v2669, %v2671
      %v2673 = vrot.slane %v2605, 2
      %v2674 = vrot.slane %v2106, 2
      %v2675 = vsel %vm1200, %v2673, %v2674
      %v2676 = vrot.slane %v2107, 2
      %v2677 = vsel %vm1200, %v2674, %v2676
      %v2678 = vrot.slane %v2606, 2
      %v2679 = vrot.slane %v2109, 2
      %v2680 = vsel %vm1200, %v2678, %v2679
      %v2681 = vrot.slane %v2110, 2
      %v2682 = vsel %vm1200, %v2679, %v2681
      %v2683 = vrot.slane %v2607, 2
      %v2684 = vrot.slane %v2112, 2
      %v2685 = vsel %vm1200, %v2683, %v2684
      %v2686 = vrot.slane %v2113, 2
      %v2687 = vsel %vm1200, %v2684, %v2686
      %v2688 = vrot.slane %v2608, 2
      %v2689 = vrot.slane %v2115, 2
      %v2690 = vsel %vm1200, %v2688, %v2689
      %v2691 = vrot.slane %v2116, 2
      %v2692 = vsel %vm1200, %v2689, %v2691
      %v2693 = vrot.slane %v2609, 2
      %v2694 = vrot.slane %v2118, 2
      %v2695 = vsel %vm1200, %v2693, %v2694
      %v2696 = vrot.slane %v2119, 2
      %v2697 = vsel %vm1200, %v2694, %v2696
      %v2698 = vrot.slane %v2610, 2
      %v2699 = vrot.slane %v2121, 2
      %v2700 = vsel %vm1200, %v2698, %v2699
      %v2701 = vrot.slane %v2122, 2
      %v2702 = vsel %vm1200, %v2699, %v2701
      %v2703 = vrot.slane %v2611, 2
      %v2704 = vrot.slane %v2124, 2
      %v2705 = vsel %vm1200, %v2703, %v2704
      %v2706 = vrot.slane %v2125, 2
      %v2707 = vsel %vm1200, %v2704, %v2706
      %s2708 = scalar_lea.vmem %s1, 160
      %v2709 = vld [vmem:[%s2708] sm:$0xff]
      %v2710 = vld [vmem:[%s2708 + $0x8] sm:$0xff]
      %v2711 = vld [vmem:[%s2708 + $0x10] sm:$0xff]
      %v2712 = vld [vmem:[%s2708 + $0x18] sm:$0xff]
      %v2713 = vsel %vm247, %v2630, 0
      %v2715 = vsel %vm247, %v2632, 0
      %v2717 = vsel %vm247, %v2635, 0
      %v2719 = vsel %vm247, %v2637, 0
      %v2721 = vsel %vm247, %v2640, 0
      %v2723 = vsel %vm247, %v2642, 0
      %v2725 = vsel %vm247, %v2645, 0
      %v2727 = vsel %vm247, %v2647, 0
      %v2729 = vsel %vm247, %v2650, 0
      %v2731 = vsel %vm247, %v2652, 0
      %v2733 = vsel %vm247, %v2655, 0
      %v2735 = vsel %vm247, %v2657, 0
      %v2737 = vsel %vm247, %v2660, 0
      %v2739 = vsel %vm247, %v2662, 0
      %v2741 = vsel %vm247, %v2665, 0
      %v2743 = vsel %vm247, %v2667, 0
      %v2745 = vsel %vm247, %v2670, 0
      %v2747 = vsel %vm247, %v2672, 0
      %v2749 = vsel %vm247, %v2675, 0
      %v2751 = vsel %vm247, %v2677, 0
      %v2753 = vsel %vm247, %v2680, 0
      %v2755 = vsel %vm247, %v2682, 0
      %v2757 = vsel %vm247, %v2685, 0
      %v2759 = vsel %vm247, %v2687, 0
      %v2761 = vsel %vm247, %v2690, 0
      %v2763 = vsel %vm247, %v2692, 0
      %v2765 = vsel %vm247, %v2695, 0
      %v2767 = vsel %vm247, %v2697, 0
      %v2769 = vsel %vm247, %v2700, 0
      %v2771 = vsel %vm247, %v2702, 0
      %v2773 = vsel %vm247, %v2705, 0
      %v2775 = vsel %vm247, %v2707, 0
      %2777 = vmatprep.subr.mxu0 0.0
      %2778 = vmatpush1.msra.mxu0 %v2709
      %2779 = vmatprep.subr.mxu0 0.0
      %2780 = vmatpush1.msra.mxu0 %v2710
      %2781 = vmatprep.subr.mxu0 0.0
      %2782 = vmatpush1.msra.mxu0 %v2711
      %2783 = vmatprep.subr.mxu0 0.0
      %2784 = vmatpush1.msra.mxu0 %v2712
      %2785 = vmatprep.subr.mxu0 0.0
      %2786 = vmatpush1.msra.mxu0 0.0
      %2787 = vmatprep.subr.mxu0 0.0
      %2788 = vmatpush1.msra.mxu0 0.0
      %2789 = vmatprep.subr.mxu0 0.0
      %2790 = vmatpush1.msra.mxu0 0.0
      %2791 = vmatprep.subr.mxu0 0.0
      %2792 = vmatpush1.msra.mxu0 0.0
      %2793 = vmatprep.subr.mxu0 0.0
      %2794 = vmatpush1.msra.mxu0 0.0
      %2795 = vmatprep.subr.mxu0 0.0
      %2796 = vmatpush1.msra.mxu0 0.0
      %2797 = vmatprep.subr.mxu0 0.0
      %2798 = vmatpush1.msra.mxu0 0.0
      %2799 = vmatprep.subr.mxu0 0.0
      %2800 = vmatpush1.msra.mxu0 0.0
      %2801 = vmatprep.subr.mxu0 0.0
      %2802 = vmatpush1.msra.mxu0 0.0
      %2803 = vmatprep.subr.mxu0 0.0
      %2804 = vmatpush1.msra.mxu0 0.0
      %2805 = vmatprep.subr.mxu0 0.0
      %2806 = vmatpush1.msra.mxu0 0.0
      %2807 = vmatprep.subr.mxu0 0.0
      %2808 = vmatpush1.msra.mxu0 0.0
      %2809 = vmatprep.subr.mxu0 0.0
      %2810 = vmatpush1.msra.mxu0 0.0
      %2811 = vmatprep.subr.mxu0 0.0
      %2812 = vmatpush1.msra.mxu0 0.0
      %2813 = vmatprep.subr.mxu0 0.0
      %2814 = vmatpush1.msra.mxu0 0.0
      %2815 = vmatprep.subr.mxu0 0.0
      %2816 = vmatpush1.msra.mxu0 0.0
      %2817 = vmatprep.subr.mxu0 0.0
      %2818 = vmatpush1.msra.mxu0 0.0
      %2819 = vmatprep.subr.mxu0 0.0
      %2820 = vmatpush1.msra.mxu0 0.0
      %2821 = vmatprep.subr.mxu0 0.0
      %2822 = vmatpush1.msra.mxu0 0.0
      %2823 = vmatprep.subr.mxu0 0.0
      %2824 = vmatpush1.msra.mxu0 0.0
      %2825 = vmatprep.subr.mxu0 0.0
      %2826 = vmatpush1.msra.mxu0 0.0
      %2827 = vmatprep.subr.mxu0 0.0
      %2828 = vmatpush1.msra.mxu0 0.0
      %2829 = vmatprep.subr.mxu0 0.0
      %2830 = vmatpush1.msra.mxu0 0.0
      %2831 = vmatprep.subr.mxu0 0.0
      %2832 = vmatpush1.msra.mxu0 0.0
      %2833 = vmatprep.subr.mxu0 0.0
      %2834 = vmatpush1.msra.mxu0 0.0
      %2835 = vmatprep.subr.mxu0 0.0
      %2836 = vmatpush1.msra.mxu0 0.0
      %2837 = vmatprep.subr.mxu0 0.0
      %2838 = vmatpush1.msra.mxu0 0.0
      %2839 = vmatprep.subr.mxu0 0.0
      %2840 = vmatpush1.msra.mxu0 0.0
      %2841 = vmatprep.mubr.f32.mxu0 0.0
      %2842 = vmatmul.mubr.f32.gmra.mrb[0].mxu0 %v2713
      %v2843 = vpop.f32.mrb[0].mxu0
      %v2844 = vadd.f32 0.0, %v2843
      %v2845 = vpop.f32.mrb[0].mxu0
      %2846 = vmatprep.mubr.f32.mxu0 0.0
      %2847 = vmatmul.mubr.f32.gmra.mrb[0].mxu0 %v2715
      %v2848 = vpop.f32.mrb[0].mxu0
      %v2849 = vadd.f32 0.0, %v2848
      %v2850 = vpop.f32.mrb[0].mxu0
      %2851 = vmatprep.mubr.f32.mxu0 0.0
      %2852 = vmatmul.mubr.f32.gmra.mrb[0].mxu0 %v2717
      %v2853 = vpop.f32.mrb[0].mxu0
      %v2854 = vadd.f32 0.0, %v2853
      %v2855 = vpop.f32.mrb[0].mxu0
      %2856 = vmatprep.mubr.f32.mxu0 0.0
      %2857 = vmatmul.mubr.f32.gmra.mrb[0].mxu0 %v2719
      %v2858 = vpop.f32.mrb[0].mxu0
      %v2859 = vadd.f32 0.0, %v2858
      %v2860 = vpop.f32.mrb[0].mxu0
      %2861 = vmatprep.mubr.f32.mxu0 0.0
      %2862 = vmatmul.mubr.f32.gmra.mrb[0].mxu0 %v2721
      %v2863 = vpop.f32.mrb[0].mxu0
      %v2864 = vadd.f32 0.0, %v2863
      %v2865 = vpop.f32.mrb[0].mxu0
      %2866 = vmatprep.mubr.f32.mxu0 0.0
      %2867 = vmatmul.mubr.f32.gmra.mrb[0].mxu0 %v2723
      %v2868 = vpop.f32.mrb[0].mxu0
      %v2869 = vadd.f32 0.0, %v2868
      %v2870 = vpop.f32.mrb[0].mxu0
      %2871 = vmatprep.mubr.f32.mxu0 0.0
      %2872 = vmatmul.mubr.f32.gmra.mrb[0].mxu0 %v2725
      %v2873 = vpop.f32.mrb[0].mxu0
      %v2874 = vadd.f32 0.0, %v2873
      %v2875 = vpop.f32.mrb[0].mxu0
      %2876 = vmatprep.mubr.f32.mxu0 0.0
      %2877 = vmatmul.mubr.f32.gmra.mrb[0].mxu0 %v2727
      %v2878 = vpop.f32.mrb[0].mxu0
      %v2879 = vadd.f32 0.0, %v2878
      %v2880 = vpop.f32.mrb[0].mxu0
      %2881 = vmatprep.mubr.f32.mxu0 0.0
      %2882 = vmatmul.mubr.f32.gmra.mrb[0].mxu0 %v2729
      %v2883 = vpop.f32.mrb[0].mxu0
      %v2884 = vadd.f32 0.0, %v2883
      %v2885 = vpop.f32.mrb[0].mxu0
      %2886 = vmatprep.mubr.f32.mxu0 0.0
      %2887 = vmatmul.mubr.f32.gmra.mrb[0].mxu0 %v2731
      %v2888 = vpop.f32.mrb[0].mxu0
      %v2889 = vadd.f32 0.0, %v2888
      %v2890 = vpop.f32.mrb[0].mxu0
      %2891 = vmatprep.mubr.f32.mxu0 0.0
      %2892 = vmatmul.mubr.f32.gmra.mrb[0].mxu0 %v2733
      %v2893 = vpop.f32.mrb[0].mxu0
      %v2894 = vadd.f32 0.0, %v2893
      %v2895 = vpop.f32.mrb[0].mxu0
      %2896 = vmatprep.mubr.f32.mxu0 0.0
      %2897 = vmatmul.mubr.f32.gmra.mrb[0].mxu0 %v2735
      %v2898 = vpop.f32.mrb[0].mxu0
      %v2899 = vadd.f32 0.0, %v2898
      %v2900 = vpop.f32.mrb[0].mxu0
      %2901 = vmatprep.mubr.f32.mxu0 0.0
      %2902 = vmatmul.mubr.f32.gmra.mrb[0].mxu0 %v2737
      %v2903 = vpop.f32.mrb[0].mxu0
      %v2904 = vadd.f32 0.0, %v2903
      %v2905 = vpop.f32.mrb[0].mxu0
      %2906 = vmatprep.mubr.f32.mxu0 0.0
      %2907 = vmatmul.mubr.f32.gmra.mrb[0].mxu0 %v2739
      %v2908 = vpop.f32.mrb[0].mxu0
      %v2909 = vadd.f32 0.0, %v2908
      %v2910 = vpop.f32.mrb[0].mxu0
      %2911 = vmatprep.mubr.f32.mxu0 0.0
      %2912 = vmatmul.mubr.f32.gmra.mrb[0].mxu0 %v2741
      %v2913 = vpop.f32.mrb[0].mxu0
      %v2914 = vadd.f32 0.0, %v2913
      %v2915 = vpop.f32.mrb[0].mxu0
      %2916 = vmatprep.mubr.f32.mxu0 0.0
      %2917 = vmatmul.mubr.f32.gmra.mrb[0].mxu0 %v2743
      %v2918 = vpop.f32.mrb[0].mxu0
      %v2919 = vadd.f32 0.0, %v2918
      %v2920 = vpop.f32.mrb[0].mxu0
      %2921 = vmatprep.mubr.f32.mxu0 0.0
      %2922 = vmatmul.mubr.f32.gmra.mrb[0].mxu0 %v2745
      %v2923 = vpop.f32.mrb[0].mxu0
      %v2924 = vadd.f32 0.0, %v2923
      %v2925 = vpop.f32.mrb[0].mxu0
      %2926 = vmatprep.mubr.f32.mxu0 0.0
      %2927 = vmatmul.mubr.f32.gmra.mrb[0].mxu0 %v2747
      %v2928 = vpop.f32.mrb[0].mxu0
      %v2929 = vadd.f32 0.0, %v2928
      %v2930 = vpop.f32.mrb[0].mxu0
      %2931 = vmatprep.mubr.f32.mxu0 0.0
      %2932 = vmatmul.mubr.f32.gmra.mrb[0].mxu0 %v2749
      %v2933 = vpop.f32.mrb[0].mxu0
      %v2934 = vadd.f32 0.0, %v2933
      %v2935 = vpop.f32.mrb[0].mxu0
      %2936 = vmatprep.mubr.f32.mxu0 0.0
      %2937 = vmatmul.mubr.f32.gmra.mrb[0].mxu0 %v2751
      %v2938 = vpop.f32.mrb[0].mxu0
      %v2939 = vadd.f32 0.0, %v2938
      %v2940 = vpop.f32.mrb[0].mxu0
      %2941 = vmatprep.mubr.f32.mxu0 0.0
      %2942 = vmatmul.mubr.f32.gmra.mrb[0].mxu0 %v2753
      %v2943 = vpop.f32.mrb[0].mxu0
      %v2944 = vadd.f32 0.0, %v2943
      %v2945 = vpop.f32.mrb[0].mxu0
      %2946 = vmatprep.mubr.f32.mxu0 0.0
      %2947 = vmatmul.mubr.f32.gmra.mrb[0].mxu0 %v2755
      %v2948 = vpop.f32.mrb[0].mxu0
      %v2949 = vadd.f32 0.0, %v2948
      %v2950 = vpop.f32.mrb[0].mxu0
      %2951 = vmatprep.mubr.f32.mxu0 0.0
      %2952 = vmatmul.mubr.f32.gmra.mrb[0].mxu0 %v2757
      %v2953 = vpop.f32.mrb[0].mxu0
      %v2954 = vadd.f32 0.0, %v2953
      %v2955 = vpop.f32.mrb[0].mxu0
      %2956 = vmatprep.mubr.f32.mxu0 0.0
      %2957 = vmatmul.mubr.f32.gmra.mrb[0].mxu0 %v2759
      %v2958 = vpop.f32.mrb[0].mxu0
      %v2959 = vadd.f32 0.0, %v2958
      %v2960 = vpop.f32.mrb[0].mxu0
      %2961 = vmatprep.mubr.f32.mxu0 0.0
      %2962 = vmatmul.mubr.f32.gmra.mrb[0].mxu0 %v2761
      %v2963 = vpop.f32.mrb[0].mxu0
      %v2964 = vadd.f32 0.0, %v2963
      %v2965 = vpop.f32.mrb[0].mxu0
      %2966 = vmatprep.mubr.f32.mxu0 0.0
      %2967 = vmatmul.mubr.f32.gmra.mrb[0].mxu0 %v2763
      %v2968 = vpop.f32.mrb[0].mxu0
      %v2969 = vadd.f32 0.0, %v2968
      %v2970 = vpop.f32.mrb[0].mxu0
      %2971 = vmatprep.mubr.f32.mxu0 0.0
      %2972 = vmatmul.mubr.f32.gmra.mrb[0].mxu0 %v2765
      %v2973 = vpop.f32.mrb[0].mxu0
      %v2974 = vadd.f32 0.0, %v2973
      %v2975 = vpop.f32.mrb[0].mxu0
      %2976 = vmatprep.mubr.f32.mxu0 0.0
      %2977 = vmatmul.mubr.f32.gmra.mrb[0].mxu0 %v2767
      %v2978 = vpop.f32.mrb[0].mxu0
      %v2979 = vadd.f32 0.0, %v2978
      %v2980 = vpop.f32.mrb[0].mxu0
      %2981 = vmatprep.mubr.f32.mxu0 0.0
      %2982 = vmatmul.mubr.f32.gmra.mrb[0].mxu0 %v2769
      %v2983 = vpop.f32.mrb[0].mxu0
      %v2984 = vadd.f32 0.0, %v2983
      %v2985 = vpop.f32.mrb[0].mxu0
      %2986 = vmatprep.mubr.f32.mxu0 0.0
      %2987 = vmatmul.mubr.f32.gmra.mrb[0].mxu0 %v2771
      %v2988 = vpop.f32.mrb[0].mxu0
      %v2989 = vadd.f32 0.0, %v2988
      %v2990 = vpop.f32.mrb[0].mxu0
      %2991 = vmatprep.mubr.f32.mxu0 0.0
      %2992 = vmatmul.mubr.f32.gmra.mrb[0].mxu0 %v2773
      %v2993 = vpop.f32.mrb[0].mxu0
      %v2994 = vadd.f32 0.0, %v2993
      %v2995 = vpop.f32.mrb[0].mxu0
      %2996 = vmatprep.mubr.f32.mxu0 0.0
      %2997 = vmatmul.mubr.f32.gmra.mrb[0].mxu0 %v2775
      %v2998 = vpop.f32.mrb[0].mxu0
      %v2999 = vadd.f32 0.0, %v2998
      %v3000 = vpop.f32.mrb[0].mxu0
      %3001 = vdwg.mxu0
      %v3002 = vadd.f32 %v2548, %v2844
      %v3003 = vadd.f32 %v2549, %v2849
      %v3004 = vadd.f32 %v2550, %v2854
      %v3005 = vadd.f32 %v2551, %v2859
      %v3006 = vadd.f32 %v2552, %v2864
      %v3007 = vadd.f32 %v2553, %v2869
      %v3008 = vadd.f32 %v2554, %v2874
      %v3009 = vadd.f32 %v2555, %v2879
      %v3010 = vadd.f32 %v2556, %v2884
      %v3011 = vadd.f32 %v2557, %v2889
      %v3012 = vadd.f32 %v2558, %v2894
      %v3013 = vadd.f32 %v2559, %v2899
      %v3014 = vadd.f32 %v2560, %v2904
      %v3015 = vadd.f32 %v2561, %v2909
      %v3016 = vadd.f32 %v2562, %v2914
      %v3017 = vadd.f32 %v2563, %v2919
      %v3018 = vadd.f32 %v2564, %v2924
      %v3019 = vadd.f32 %v2565, %v2929
      %v3020 = vadd.f32 %v2566, %v2934
      %v3021 = vadd.f32 %v2567, %v2939
      %v3022 = vadd.f32 %v2568, %v2944
      %v3023 = vadd.f32 %v2569, %v2949
      %v3024 = vadd.f32 %v2570, %v2954
      %v3025 = vadd.f32 %v2571, %v2959
      %v3026 = vadd.f32 %v2572, %v2964
      %v3027 = vadd.f32 %v2573, %v2969
      %v3028 = vadd.f32 %v2574, %v2974
      %v3029 = vadd.f32 %v2575, %v2979
      %v3030 = vadd.f32 %v2576, %v2984
      %v3031 = vadd.f32 %v2577, %v2989
      %v3032 = vadd.f32 %v2578, %v2994
      %v3033 = vadd.f32 %v2579, %v2999
      %s3034 = scalar_lea.vmem %s165, 24
      %v3035 = vld [vmem:[%s3034] sm:$0xf]
      %v3036 = vld [vmem:[%s3034 + $0x4] sm:$0xf]
      %v3037 = vld [vmem:[%s3034 + $0xc] sm:$0xf]
      %v3038 = vld [vmem:[%s3034 + $0x10] sm:$0xf]
      %v3039 = vld [vmem:[%s3034 + $0x18] sm:$0xf]
      %v3040 = vld [vmem:[%s3034 + $0x1c] sm:$0xf]
      %v3041 = vld [vmem:[%s3034 + $0x24] sm:$0xf]
      %v3042 = vld [vmem:[%s3034 + $0x28] sm:$0xf]
      %v3043 = vld [vmem:[%s3034 + $0x30] sm:$0xf]
      %v3044 = vld [vmem:[%s3034 + $0x34] sm:$0xf]
      %v3045 = vld [vmem:[%s3034 + $0x3c] sm:$0xf]
      %v3046 = vld [vmem:[%s3034 + $0x40] sm:$0xf]
      %v3047 = vld [vmem:[%s3034 + $0x48] sm:$0xf]
      %v3048 = vld [vmem:[%s3034 + $0x4c] sm:$0xf]
      %v3049 = vld [vmem:[%s3034 + $0x54] sm:$0xf]
      %v3050 = vld [vmem:[%s3034 + $0x58] sm:$0xf]
      %v3051 = vld [vmem:[%s3034 + $0x60] sm:$0xf]
      %v3052 = vld [vmem:[%s3034 + $0x64] sm:$0xf]
      %v3053 = vld [vmem:[%s3034 + $0x6c] sm:$0xf]
      %v3054 = vld [vmem:[%s3034 + $0x70] sm:$0xf]
      %v3055 = vld [vmem:[%s3034 + $0x78] sm:$0xf]
      %v3056 = vld [vmem:[%s3034 + $0x7c] sm:$0xf]
      %v3057 = vld [vmem:[%s3034 + $0x84] sm:$0xf]
      %v3058 = vld [vmem:[%s3034 + $0x88] sm:$0xf]
      %v3059 = vld [vmem:[%s3034 + $0x90] sm:$0xf]
      %v3060 = vld [vmem:[%s3034 + $0x94] sm:$0xf]
      %v3061 = vld [vmem:[%s3034 + $0x9c] sm:$0xf]
      %v3062 = vld [vmem:[%s3034 + $0xa0] sm:$0xf]
      %v3063 = vld [vmem:[%s3034 + $0xa8] sm:$0xf]
      %v3064 = vld [vmem:[%s3034 + $0xac] sm:$0xf]
      %v3065 = vld [vmem:[%s3034 + $0xb4] sm:$0xf]
      %v3066 = vld [vmem:[%s3034 + $0xb8] sm:$0xf]
      %v3067 = vunpack.c.l.bf16 %v3035
      %v3068 = vunpack.c.l.bf16 %v3036
      %v3069 = vunpack.c.l.bf16 %v3037
      %v3070 = vunpack.c.l.bf16 %v3038
      %v3071 = vunpack.c.l.bf16 %v3039
      %v3072 = vunpack.c.l.bf16 %v3040
      %v3073 = vunpack.c.l.bf16 %v3041
      %v3074 = vunpack.c.l.bf16 %v3042
      %v3075 = vunpack.c.l.bf16 %v3043
      %v3076 = vunpack.c.l.bf16 %v3044
      %v3077 = vunpack.c.l.bf16 %v3045
      %v3078 = vunpack.c.l.bf16 %v3046
      %v3079 = vunpack.c.l.bf16 %v3047
      %v3080 = vunpack.c.l.bf16 %v3048
      %v3081 = vunpack.c.l.bf16 %v3049
      %v3082 = vunpack.c.l.bf16 %v3050
      %v3083 = vunpack.c.l.bf16 %v3051
      %v3084 = vunpack.c.l.bf16 %v3052
      %v3085 = vunpack.c.l.bf16 %v3053
      %v3086 = vunpack.c.l.bf16 %v3054
      %v3087 = vunpack.c.l.bf16 %v3055
      %v3088 = vunpack.c.l.bf16 %v3056
      %v3089 = vunpack.c.l.bf16 %v3057
      %v3090 = vunpack.c.l.bf16 %v3058
      %v3091 = vunpack.c.l.bf16 %v3059
      %v3092 = vunpack.c.l.bf16 %v3060
      %v3093 = vunpack.c.l.bf16 %v3061
      %v3094 = vunpack.c.l.bf16 %v3062
      %v3095 = vunpack.c.l.bf16 %v3063
      %v3096 = vunpack.c.l.bf16 %v3064
      %v3097 = vunpack.c.l.bf16 %v3065
      %v3098 = vunpack.c.l.bf16 %v3066
      %s3099 = scalar_lea.vmem %s1, 192
      %v3100 = vld [vmem:[%s3099] sm:$0xff]
      %v3101 = vld [vmem:[%s3099 + $0x8] sm:$0xff]
      %v3102 = vld [vmem:[%s3099 + $0x10] sm:$0xff]
      %v3103 = vld [vmem:[%s3099 + $0x18] sm:$0xff]
      %v3105 = vsel %vm247, %v3067, 0
      %v3108 = vsel %vm247, %v3068, 0
      %v3111 = vsel %vm247, %v3069, 0
      %v3114 = vsel %vm247, %v3070, 0
      %v3117 = vsel %vm247, %v3071, 0
      %v3120 = vsel %vm247, %v3072, 0
      %v3123 = vsel %vm247, %v3073, 0
      %v3126 = vsel %vm247, %v3074, 0
      %v3129 = vsel %vm247, %v3075, 0
      %v3132 = vsel %vm247, %v3076, 0
      %v3135 = vsel %vm247, %v3077, 0
      %v3138 = vsel %vm247, %v3078, 0
      %v3141 = vsel %vm247, %v3079, 0
      %v3144 = vsel %vm247, %v3080, 0
      %v3147 = vsel %vm247, %v3081, 0
      %v3150 = vsel %vm247, %v3082, 0
      %v3153 = vsel %vm247, %v3083, 0
      %v3156 = vsel %vm247, %v3084, 0
      %v3159 = vsel %vm247, %v3085, 0
      %v3162 = vsel %vm247, %v3086, 0
      %v3165 = vsel %vm247, %v3087, 0
      %v3168 = vsel %vm247, %v3088, 0
      %v3171 = vsel %vm247, %v3089, 0
      %v3174 = vsel %vm247, %v3090, 0
      %v3177 = vsel %vm247, %v3091, 0
      %v3180 = vsel %vm247, %v3092, 0
      %v3183 = vsel %vm247, %v3093, 0
      %v3186 = vsel %vm247, %v3094, 0
      %v3189 = vsel %vm247, %v3095, 0
      %v3192 = vsel %vm247, %v3096, 0
      %v3195 = vsel %vm247, %v3097, 0
      %v3198 = vsel %vm247, %v3098, 0
      %3200 = vmatprep.subr.mxu0 0.0
      %3201 = vmatpush1.msra.mxu0 %v3100
      %3202 = vmatprep.subr.mxu0 0.0
      %3203 = vmatpush1.msra.mxu0 %v3101
      %3204 = vmatprep.subr.mxu0 0.0
      %3205 = vmatpush1.msra.mxu0 %v3102
      %3206 = vmatprep.subr.mxu0 0.0
      %3207 = vmatpush1.msra.mxu0 %v3103
      %3208 = vmatprep.subr.mxu0 0.0
      %3209 = vmatpush1.msra.mxu0 0.0
      %3210 = vmatprep.subr.mxu0 0.0
      %3211 = vmatpush1.msra.mxu0 0.0
      %3212 = vmatprep.subr.mxu0 0.0
      %3213 = vmatpush1.msra.mxu0 0.0
      %3214 = vmatprep.subr.mxu0 0.0
      %3215 = vmatpush1.msra.mxu0 0.0
      %3216 = vmatprep.subr.mxu0 0.0
      %3217 = vmatpush1.msra.mxu0 0.0
      %3218 = vmatprep.subr.mxu0 0.0
      %3219 = vmatpush1.msra.mxu0 0.0
      %3220 = vmatprep.subr.mxu0 0.0
      %3221 = vmatpush1.msra.mxu0 0.0
      %3222 = vmatprep.subr.mxu0 0.0
      %3223 = vmatpush1.msra.mxu0 0.0
      %3224 = vmatprep.subr.mxu0 0.0
      %3225 = vmatpush1.msra.mxu0 0.0
      %3226 = vmatprep.subr.mxu0 0.0
      %3227 = vmatpush1.msra.mxu0 0.0
      %3228 = vmatprep.subr.mxu0 0.0
      %3229 = vmatpush1.msra.mxu0 0.0
      %3230 = vmatprep.subr.mxu0 0.0
      %3231 = vmatpush1.msra.mxu0 0.0
      %3232 = vmatprep.subr.mxu0 0.0
      %3233 = vmatpush1.msra.mxu0 0.0
      %3234 = vmatprep.subr.mxu0 0.0
      %3235 = vmatpush1.msra.mxu0 0.0
      %3236 = vmatprep.subr.mxu0 0.0
      %3237 = vmatpush1.msra.mxu0 0.0
      %3238 = vmatprep.subr.mxu0 0.0
      %3239 = vmatpush1.msra.mxu0 0.0
      %3240 = vmatprep.subr.mxu0 0.0
      %3241 = vmatpush1.msra.mxu0 0.0
      %3242 = vmatprep.subr.mxu0 0.0
      %3243 = vmatpush1.msra.mxu0 0.0
      %3244 = vmatprep.subr.mxu0 0.0
      %3245 = vmatpush1.msra.mxu0 0.0
      %3246 = vmatprep.subr.mxu0 0.0
      %3247 = vmatpush1.msra.mxu0 0.0
      %3248 = vmatprep.subr.mxu0 0.0
      %3249 = vmatpush1.msra.mxu0 0.0
      %3250 = vmatprep.subr.mxu0 0.0
      %3251 = vmatpush1.msra.mxu0 0.0
      %3252 = vmatprep.subr.mxu0 0.0
      %3253 = vmatpush1.msra.mxu0 0.0
      %3254 = vmatprep.subr.mxu0 0.0
      %3255 = vmatpush1.msra.mxu0 0.0
      %3256 = vmatprep.subr.mxu0 0.0
      %3257 = vmatpush1.msra.mxu0 0.0
      %3258 = vmatprep.subr.mxu0 0.0
      %3259 = vmatpush1.msra.mxu0 0.0
      %3260 = vmatprep.subr.mxu0 0.0
      %3261 = vmatpush1.msra.mxu0 0.0
      %3262 = vmatprep.subr.mxu0 0.0
      %3263 = vmatpush1.msra.mxu0 0.0
      %3264 = vmatprep.mubr.f32.mxu0 0.0
      %3265 = vmatmul.mubr.f32.gmra.mrb[0].mxu0 %v3105
      %v3266 = vpop.f32.mrb[0].mxu0
      %v3267 = vadd.f32 0.0, %v3266
      %v3268 = vpop.f32.mrb[0].mxu0
      %3269 = vmatprep.mubr.f32.mxu0 0.0
      %3270 = vmatmul.mubr.f32.gmra.mrb[0].mxu0 %v3108
      %v3271 = vpop.f32.mrb[0].mxu0
      %v3272 = vadd.f32 0.0, %v3271
      %v3273 = vpop.f32.mrb[0].mxu0
      %3274 = vmatprep.mubr.f32.mxu0 0.0
      %3275 = vmatmul.mubr.f32.gmra.mrb[0].mxu0 %v3111
      %v3276 = vpop.f32.mrb[0].mxu0
      %v3277 = vadd.f32 0.0, %v3276
      %v3278 = vpop.f32.mrb[0].mxu0
      %3279 = vmatprep.mubr.f32.mxu0 0.0
      %3280 = vmatmul.mubr.f32.gmra.mrb[0].mxu0 %v3114
      %v3281 = vpop.f32.mrb[0].mxu0
      %v3282 = vadd.f32 0.0, %v3281
      %v3283 = vpop.f32.mrb[0].mxu0
      %3284 = vmatprep.mubr.f32.mxu0 0.0
      %3285 = vmatmul.mubr.f32.gmra.mrb[0].mxu0 %v3117
      %v3286 = vpop.f32.mrb[0].mxu0
      %v3287 = vadd.f32 0.0, %v3286
      %v3288 = vpop.f32.mrb[0].mxu0
      %3289 = vmatprep.mubr.f32.mxu0 0.0
      %3290 = vmatmul.mubr.f32.gmra.mrb[0].mxu0 %v3120
      %v3291 = vpop.f32.mrb[0].mxu0
      %v3292 = vadd.f32 0.0, %v3291
      %v3293 = vpop.f32.mrb[0].mxu0
      %3294 = vmatprep.mubr.f32.mxu0 0.0
      %3295 = vmatmul.mubr.f32.gmra.mrb[0].mxu0 %v3123
      %v3296 = vpop.f32.mrb[0].mxu0
      %v3297 = vadd.f32 0.0, %v3296
      %v3298 = vpop.f32.mrb[0].mxu0
      %3299 = vmatprep.mubr.f32.mxu0 0.0
      %3300 = vmatmul.mubr.f32.gmra.mrb[0].mxu0 %v3126
      %v3301 = vpop.f32.mrb[0].mxu0
      %v3302 = vadd.f32 0.0, %v3301
      %v3303 = vpop.f32.mrb[0].mxu0
      %3304 = vmatprep.mubr.f32.mxu0 0.0
      %3305 = vmatmul.mubr.f32.gmra.mrb[0].mxu0 %v3129
      %v3306 = vpop.f32.mrb[0].mxu0
      %v3307 = vadd.f32 0.0, %v3306
      %v3308 = vpop.f32.mrb[0].mxu0
      %3309 = vmatprep.mubr.f32.mxu0 0.0
      %3310 = vmatmul.mubr.f32.gmra.mrb[0].mxu0 %v3132
      %v3311 = vpop.f32.mrb[0].mxu0
      %v3312 = vadd.f32 0.0, %v3311
      %v3313 = vpop.f32.mrb[0].mxu0
      %3314 = vmatprep.mubr.f32.mxu0 0.0
      %3315 = vmatmul.mubr.f32.gmra.mrb[0].mxu0 %v3135
      %v3316 = vpop.f32.mrb[0].mxu0
      %v3317 = vadd.f32 0.0, %v3316
      %v3318 = vpop.f32.mrb[0].mxu0
      %3319 = vmatprep.mubr.f32.mxu0 0.0
      %3320 = vmatmul.mubr.f32.gmra.mrb[0].mxu0 %v3138
      %v3321 = vpop.f32.mrb[0].mxu0
      %v3322 = vadd.f32 0.0, %v3321
      %v3323 = vpop.f32.mrb[0].mxu0
      %3324 = vmatprep.mubr.f32.mxu0 0.0
      %3325 = vmatmul.mubr.f32.gmra.mrb[0].mxu0 %v3141
      %v3326 = vpop.f32.mrb[0].mxu0
      %v3327 = vadd.f32 0.0, %v3326
      %v3328 = vpop.f32.mrb[0].mxu0
      %3329 = vmatprep.mubr.f32.mxu0 0.0
      %3330 = vmatmul.mubr.f32.gmra.mrb[0].mxu0 %v3144
      %v3331 = vpop.f32.mrb[0].mxu0
      %v3332 = vadd.f32 0.0, %v3331
      %v3333 = vpop.f32.mrb[0].mxu0
      %3334 = vmatprep.mubr.f32.mxu0 0.0
      %3335 = vmatmul.mubr.f32.gmra.mrb[0].mxu0 %v3147
      %v3336 = vpop.f32.mrb[0].mxu0
      %v3337 = vadd.f32 0.0, %v3336
      %v3338 = vpop.f32.mrb[0].mxu0
      %3339 = vmatprep.mubr.f32.mxu0 0.0
      %3340 = vmatmul.mubr.f32.gmra.mrb[0].mxu0 %v3150
      %v3341 = vpop.f32.mrb[0].mxu0
      %v3342 = vadd.f32 0.0, %v3341
      %v3343 = vpop.f32.mrb[0].mxu0
      %3344 = vmatprep.mubr.f32.mxu0 0.0
      %3345 = vmatmul.mubr.f32.gmra.mrb[0].mxu0 %v3153
      %v3346 = vpop.f32.mrb[0].mxu0
      %v3347 = vadd.f32 0.0, %v3346
      %v3348 = vpop.f32.mrb[0].mxu0
      %3349 = vmatprep.mubr.f32.mxu0 0.0
      %3350 = vmatmul.mubr.f32.gmra.mrb[0].mxu0 %v3156
      %v3351 = vpop.f32.mrb[0].mxu0
      %v3352 = vadd.f32 0.0, %v3351
      %v3353 = vpop.f32.mrb[0].mxu0
      %3354 = vmatprep.mubr.f32.mxu0 0.0
      %3355 = vmatmul.mubr.f32.gmra.mrb[0].mxu0 %v3159
      %v3356 = vpop.f32.mrb[0].mxu0
      %v3357 = vadd.f32 0.0, %v3356
      %v3358 = vpop.f32.mrb[0].mxu0
      %3359 = vmatprep.mubr.f32.mxu0 0.0
      %3360 = vmatmul.mubr.f32.gmra.mrb[0].mxu0 %v3162
      %v3361 = vpop.f32.mrb[0].mxu0
      %v3362 = vadd.f32 0.0, %v3361
      %v3363 = vpop.f32.mrb[0].mxu0
      %3364 = vmatprep.mubr.f32.mxu0 0.0
      %3365 = vmatmul.mubr.f32.gmra.mrb[0].mxu0 %v3165
      %v3366 = vpop.f32.mrb[0].mxu0
      %v3367 = vadd.f32 0.0, %v3366
      %v3368 = vpop.f32.mrb[0].mxu0
      %3369 = vmatprep.mubr.f32.mxu0 0.0
      %3370 = vmatmul.mubr.f32.gmra.mrb[0].mxu0 %v3168
      %v3371 = vpop.f32.mrb[0].mxu0
      %v3372 = vadd.f32 0.0, %v3371
      %v3373 = vpop.f32.mrb[0].mxu0
      %3374 = vmatprep.mubr.f32.mxu0 0.0
      %3375 = vmatmul.mubr.f32.gmra.mrb[0].mxu0 %v3171
      %v3376 = vpop.f32.mrb[0].mxu0
      %v3377 = vadd.f32 0.0, %v3376
      %v3378 = vpop.f32.mrb[0].mxu0
      %3379 = vmatprep.mubr.f32.mxu0 0.0
      %3380 = vmatmul.mubr.f32.gmra.mrb[0].mxu0 %v3174
      %v3381 = vpop.f32.mrb[0].mxu0
      %v3382 = vadd.f32 0.0, %v3381
      %v3383 = vpop.f32.mrb[0].mxu0
      %3384 = vmatprep.mubr.f32.mxu0 0.0
      %3385 = vmatmul.mubr.f32.gmra.mrb[0].mxu0 %v3177
      %v3386 = vpop.f32.mrb[0].mxu0
      %v3387 = vadd.f32 0.0, %v3386
      %v3388 = vpop.f32.mrb[0].mxu0
      %3389 = vmatprep.mubr.f32.mxu0 0.0
      %3390 = vmatmul.mubr.f32.gmra.mrb[0].mxu0 %v3180
      %v3391 = vpop.f32.mrb[0].mxu0
      %v3392 = vadd.f32 0.0, %v3391
      %v3393 = vpop.f32.mrb[0].mxu0
      %3394 = vmatprep.mubr.f32.mxu0 0.0
      %3395 = vmatmul.mubr.f32.gmra.mrb[0].mxu0 %v3183
      %v3396 = vpop.f32.mrb[0].mxu0
      %v3397 = vadd.f32 0.0, %v3396
      %v3398 = vpop.f32.mrb[0].mxu0
      %3399 = vmatprep.mubr.f32.mxu0 0.0
      %3400 = vmatmul.mubr.f32.gmra.mrb[0].mxu0 %v3186
      %v3401 = vpop.f32.mrb[0].mxu0
      %v3402 = vadd.f32 0.0, %v3401
      %v3403 = vpop.f32.mrb[0].mxu0
      %3404 = vmatprep.mubr.f32.mxu0 0.0
      %3405 = vmatmul.mubr.f32.gmra.mrb[0].mxu0 %v3189
      %v3406 = vpop.f32.mrb[0].mxu0
      %v3407 = vadd.f32 0.0, %v3406
      %v3408 = vpop.f32.mrb[0].mxu0
      %3409 = vmatprep.mubr.f32.mxu0 0.0
      %3410 = vmatmul.mubr.f32.gmra.mrb[0].mxu0 %v3192
      %v3411 = vpop.f32.mrb[0].mxu0
      %v3412 = vadd.f32 0.0, %v3411
      %v3413 = vpop.f32.mrb[0].mxu0
      %3414 = vmatprep.mubr.f32.mxu0 0.0
      %3415 = vmatmul.mubr.f32.gmra.mrb[0].mxu0 %v3195
      %v3416 = vpop.f32.mrb[0].mxu0
      %v3417 = vadd.f32 0.0, %v3416
      %v3418 = vpop.f32.mrb[0].mxu0
      %3419 = vmatprep.mubr.f32.mxu0 0.0
      %3420 = vmatmul.mubr.f32.gmra.mrb[0].mxu0 %v3198
      %v3421 = vpop.f32.mrb[0].mxu0
      %v3422 = vadd.f32 0.0, %v3421
      %v3423 = vpop.f32.mrb[0].mxu0
      %3424 = vdwg.mxu0
      %v3425 = vadd.f32 %v3002, %v3267
      %v3426 = vadd.f32 %v3003, %v3272
      %v3427 = vadd.f32 %v3004, %v3277
      %v3428 = vadd.f32 %v3005, %v3282
      %v3429 = vadd.f32 %v3006, %v3287
      %v3430 = vadd.f32 %v3007, %v3292
      %v3431 = vadd.f32 %v3008, %v3297
      %v3432 = vadd.f32 %v3009, %v3302
      %v3433 = vadd.f32 %v3010, %v3307
      %v3434 = vadd.f32 %v3011, %v3312
      %v3435 = vadd.f32 %v3012, %v3317
      %v3436 = vadd.f32 %v3013, %v3322
      %v3437 = vadd.f32 %v3014, %v3327
      %v3438 = vadd.f32 %v3015, %v3332
      %v3439 = vadd.f32 %v3016, %v3337
      %v3440 = vadd.f32 %v3017, %v3342
      %v3441 = vadd.f32 %v3018, %v3347
      %v3442 = vadd.f32 %v3019, %v3352
      %v3443 = vadd.f32 %v3020, %v3357
      %v3444 = vadd.f32 %v3021, %v3362
      %v3445 = vadd.f32 %v3022, %v3367
      %v3446 = vadd.f32 %v3023, %v3372
      %v3447 = vadd.f32 %v3024, %v3377
      %v3448 = vadd.f32 %v3025, %v3382
      %v3449 = vadd.f32 %v3026, %v3387
      %v3450 = vadd.f32 %v3027, %v3392
      %v3451 = vadd.f32 %v3028, %v3397
      %v3452 = vadd.f32 %v3029, %v3402
      %v3453 = vadd.f32 %v3030, %v3407
      %v3454 = vadd.f32 %v3031, %v3412
      %v3455 = vadd.f32 %v3032, %v3417
      %v3456 = vadd.f32 %v3033, %v3422
      %v3457 = vld [vmem:[%s3034] sm:$0xf]
      %v3458 = vld [vmem:[%s3034 + $0x4] sm:$0xf]
      %v3459 = vld [vmem:[%s3034 + $0x8] sm:$0x1]
      %v3460 = vld [vmem:[%s3034 + $0xc] sm:$0xf]
      %v3461 = vld [vmem:[%s3034 + $0x10] sm:$0xf]
      %v3462 = vld [vmem:[%s3034 + $0x14] sm:$0x1]
      %v3463 = vld [vmem:[%s3034 + $0x18] sm:$0xf]
      %v3464 = vld [vmem:[%s3034 + $0x1c] sm:$0xf]
      %v3465 = vld [vmem:[%s3034 + $0x20] sm:$0x1]
      %v3466 = vld [vmem:[%s3034 + $0x24] sm:$0xf]
      %v3467 = vld [vmem:[%s3034 + $0x28] sm:$0xf]
      %v3468 = vld [vmem:[%s3034 + $0x2c] sm:$0x1]
      %v3469 = vld [vmem:[%s3034 + $0x30] sm:$0xf]
      %v3470 = vld [vmem:[%s3034 + $0x34] sm:$0xf]
      %v3471 = vld [vmem:[%s3034 + $0x38] sm:$0x1]
      %v3472 = vld [vmem:[%s3034 + $0x3c] sm:$0xf]
      %v3473 = vld [vmem:[%s3034 + $0x40] sm:$0xf]
      %v3474 = vld [vmem:[%s3034 + $0x44] sm:$0x1]
      %v3475 = vld [vmem:[%s3034 + $0x48] sm:$0xf]
      %v3476 = vld [vmem:[%s3034 + $0x4c] sm:$0xf]
      %v3477 = vld [vmem:[%s3034 + $0x50] sm:$0x1]
      %v3478 = vld [vmem:[%s3034 + $0x54] sm:$0xf]
      %v3479 = vld [vmem:[%s3034 + $0x58] sm:$0xf]
      %v3480 = vld [vmem:[%s3034 + $0x5c] sm:$0x1]
      %v3481 = vld [vmem:[%s3034 + $0x60] sm:$0xf]
      %v3482 = vld [vmem:[%s3034 + $0x64] sm:$0xf]
      %v3483 = vld [vmem:[%s3034 + $0x68] sm:$0x1]
      %v3484 = vld [vmem:[%s3034 + $0x6c] sm:$0xf]
      %v3485 = vld [vmem:[%s3034 + $0x70] sm:$0xf]
      %v3486 = vld [vmem:[%s3034 + $0x74] sm:$0x1]
      %v3487 = vld [vmem:[%s3034 + $0x78] sm:$0xf]
      %v3488 = vld [vmem:[%s3034 + $0x7c] sm:$0xf]
      %v3489 = vld [vmem:[%s3034 + $0x80] sm:$0x1]
      %v3490 = vld [vmem:[%s3034 + $0x84] sm:$0xf]
      %v3491 = vld [vmem:[%s3034 + $0x88] sm:$0xf]
      %v3492 = vld [vmem:[%s3034 + $0x8c] sm:$0x1]
      %v3493 = vld [vmem:[%s3034 + $0x90] sm:$0xf]
      %v3494 = vld [vmem:[%s3034 + $0x94] sm:$0xf]
      %v3495 = vld [vmem:[%s3034 + $0x98] sm:$0x1]
      %v3496 = vld [vmem:[%s3034 + $0x9c] sm:$0xf]
      %v3497 = vld [vmem:[%s3034 + $0xa0] sm:$0xf]
      %v3498 = vld [vmem:[%s3034 + $0xa4] sm:$0x1]
      %v3499 = vld [vmem:[%s3034 + $0xa8] sm:$0xf]
      %v3500 = vld [vmem:[%s3034 + $0xac] sm:$0xf]
      %v3501 = vld [vmem:[%s3034 + $0xb0] sm:$0x1]
      %v3502 = vld [vmem:[%s3034 + $0xb4] sm:$0xf]
      %v3503 = vld [vmem:[%s3034 + $0xb8] sm:$0xf]
      %v3504 = vld [vmem:[%s3034 + $0xbc] sm:$0x1]
      %v3505 = vunpack.c.l.bf16 %v3457
      %v3506 = vunpack.c.l.bf16 %v3458
      %v3507 = vunpack.c.l.bf16 %v3459
      %v3508 = vunpack.c.l.bf16 %v3460
      %v3509 = vunpack.c.l.bf16 %v3461
      %v3510 = vunpack.c.l.bf16 %v3462
      %v3511 = vunpack.c.l.bf16 %v3463
      %v3512 = vunpack.c.l.bf16 %v3464
      %v3513 = vunpack.c.l.bf16 %v3465
      %v3514 = vunpack.c.l.bf16 %v3466
      %v3515 = vunpack.c.l.bf16 %v3467
      %v3516 = vunpack.c.l.bf16 %v3468
      %v3517 = vunpack.c.l.bf16 %v3469
      %v3518 = vunpack.c.l.bf16 %v3470
      %v3519 = vunpack.c.l.bf16 %v3471
      %v3520 = vunpack.c.l.bf16 %v3472
      %v3521 = vunpack.c.l.bf16 %v3473
      %v3522 = vunpack.c.l.bf16 %v3474
      %v3523 = vunpack.c.l.bf16 %v3475
      %v3524 = vunpack.c.l.bf16 %v3476
      %v3525 = vunpack.c.l.bf16 %v3477
      %v3526 = vunpack.c.l.bf16 %v3478
      %v3527 = vunpack.c.l.bf16 %v3479
      %v3528 = vunpack.c.l.bf16 %v3480
      %v3529 = vunpack.c.l.bf16 %v3481
      %v3530 = vunpack.c.l.bf16 %v3482
      %v3531 = vunpack.c.l.bf16 %v3483
      %v3532 = vunpack.c.l.bf16 %v3484
      %v3533 = vunpack.c.l.bf16 %v3485
      %v3534 = vunpack.c.l.bf16 %v3486
      %v3535 = vunpack.c.l.bf16 %v3487
      %v3536 = vunpack.c.l.bf16 %v3488
      %v3537 = vunpack.c.l.bf16 %v3489
      %v3538 = vunpack.c.l.bf16 %v3490
      %v3539 = vunpack.c.l.bf16 %v3491
      %v3540 = vunpack.c.l.bf16 %v3492
      %v3541 = vunpack.c.l.bf16 %v3493
      %v3542 = vunpack.c.l.bf16 %v3494
      %v3543 = vunpack.c.l.bf16 %v3495
      %v3544 = vunpack.c.l.bf16 %v3496
      %v3545 = vunpack.c.l.bf16 %v3497
      %v3546 = vunpack.c.l.bf16 %v3498
      %v3547 = vunpack.c.l.bf16 %v3499
      %v3548 = vunpack.c.l.bf16 %v3500
      %v3549 = vunpack.c.l.bf16 %v3501
      %v3550 = vunpack.c.l.bf16 %v3502
      %v3551 = vunpack.c.l.bf16 %v3503
      %v3552 = vunpack.c.l.bf16 %v3504
      %v3601 = vrot.slane %v3505, 1
      %v3602 = vrot.slane %v3506, 1
      %v3603 = vsel %vm745, %v3601, %v3602
      %v3604 = vrot.slane %v3507, 1
      %v3605 = vsel %vm745, %v3602, %v3604
      %v3606 = vrot.slane %v3508, 1
      %v3607 = vrot.slane %v3509, 1
      %v3608 = vsel %vm745, %v3606, %v3607
      %v3609 = vrot.slane %v3510, 1
      %v3610 = vsel %vm745, %v3607, %v3609
      %v3611 = vrot.slane %v3511, 1
      %v3612 = vrot.slane %v3512, 1
      %v3613 = vsel %vm745, %v3611, %v3612
      %v3614 = vrot.slane %v3513, 1
      %v3615 = vsel %vm745, %v3612, %v3614
      %v3616 = vrot.slane %v3514, 1
      %v3617 = vrot.slane %v3515, 1
      %v3618 = vsel %vm745, %v3616, %v3617
      %v3619 = vrot.slane %v3516, 1
      %v3620 = vsel %vm745, %v3617, %v3619
      %v3621 = vrot.slane %v3517, 1
      %v3622 = vrot.slane %v3518, 1
      %v3623 = vsel %vm745, %v3621, %v3622
      %v3624 = vrot.slane %v3519, 1
      %v3625 = vsel %vm745, %v3622, %v3624
      %v3626 = vrot.slane %v3520, 1
      %v3627 = vrot.slane %v3521, 1
      %v3628 = vsel %vm745, %v3626, %v3627
      %v3629 = vrot.slane %v3522, 1
      %v3630 = vsel %vm745, %v3627, %v3629
      %v3631 = vrot.slane %v3523, 1
      %v3632 = vrot.slane %v3524, 1
      %v3633 = vsel %vm745, %v3631, %v3632
      %v3634 = vrot.slane %v3525, 1
      %v3635 = vsel %vm745, %v3632, %v3634
      %v3636 = vrot.slane %v3526, 1
      %v3637 = vrot.slane %v3527, 1
      %v3638 = vsel %vm745, %v3636, %v3637
      %v3639 = vrot.slane %v3528, 1
      %v3640 = vsel %vm745, %v3637, %v3639
      %v3641 = vrot.slane %v3529, 1
      %v3642 = vrot.slane %v3530, 1
      %v3643 = vsel %vm745, %v3641, %v3642
      %v3644 = vrot.slane %v3531, 1
      %v3645 = vsel %vm745, %v3642, %v3644
      %v3646 = vrot.slane %v3532, 1
      %v3647 = vrot.slane %v3533, 1
      %v3648 = vsel %vm745, %v3646, %v3647
      %v3649 = vrot.slane %v3534, 1
      %v3650 = vsel %vm745, %v3647, %v3649
      %v3651 = vrot.slane %v3535, 1
      %v3652 = vrot.slane %v3536, 1
      %v3653 = vsel %vm745, %v3651, %v3652
      %v3654 = vrot.slane %v3537, 1
      %v3655 = vsel %vm745, %v3652, %v3654
      %v3656 = vrot.slane %v3538, 1
      %v3657 = vrot.slane %v3539, 1
      %v3658 = vsel %vm745, %v3656, %v3657
      %v3659 = vrot.slane %v3540, 1
      %v3660 = vsel %vm745, %v3657, %v3659
      %v3661 = vrot.slane %v3541, 1
      %v3662 = vrot.slane %v3542, 1
      %v3663 = vsel %vm745, %v3661, %v3662
      %v3664 = vrot.slane %v3543, 1
      %v3665 = vsel %vm745, %v3662, %v3664
      %v3666 = vrot.slane %v3544, 1
      %v3667 = vrot.slane %v3545, 1
      %v3668 = vsel %vm745, %v3666, %v3667
      %v3669 = vrot.slane %v3546, 1
      %v3670 = vsel %vm745, %v3667, %v3669
      %v3671 = vrot.slane %v3547, 1
      %v3672 = vrot.slane %v3548, 1
      %v3673 = vsel %vm745, %v3671, %v3672
      %v3674 = vrot.slane %v3549, 1
      %v3675 = vsel %vm745, %v3672, %v3674
      %v3676 = vrot.slane %v3550, 1
      %v3677 = vrot.slane %v3551, 1
      %v3678 = vsel %vm745, %v3676, %v3677
      %v3679 = vrot.slane %v3552, 1
      %v3680 = vsel %vm745, %v3677, %v3679
      %s3681 = scalar_lea.vmem %s1, 224
      %v3682 = vld [vmem:[%s3681] sm:$0xff]
      %v3683 = vld [vmem:[%s3681 + $0x8] sm:$0xff]
      %v3684 = vld [vmem:[%s3681 + $0x10] sm:$0xff]
      %v3685 = vld [vmem:[%s3681 + $0x18] sm:$0xff]
      %v3686 = vsel %vm247, %v3603, 0
      %v3688 = vsel %vm247, %v3605, 0
      %v3690 = vsel %vm247, %v3608, 0
      %v3692 = vsel %vm247, %v3610, 0
      %v3694 = vsel %vm247, %v3613, 0
      %v3696 = vsel %vm247, %v3615, 0
      %v3698 = vsel %vm247, %v3618, 0
      %v3700 = vsel %vm247, %v3620, 0
      %v3702 = vsel %vm247, %v3623, 0
      %v3704 = vsel %vm247, %v3625, 0
      %v3706 = vsel %vm247, %v3628, 0
      %v3708 = vsel %vm247, %v3630, 0
      %v3710 = vsel %vm247, %v3633, 0
      %v3712 = vsel %vm247, %v3635, 0
      %v3714 = vsel %vm247, %v3638, 0
      %v3716 = vsel %vm247, %v3640, 0
      %v3718 = vsel %vm247, %v3643, 0
      %v3720 = vsel %vm247, %v3645, 0
      %v3722 = vsel %vm247, %v3648, 0
      %v3724 = vsel %vm247, %v3650, 0
      %v3726 = vsel %vm247, %v3653, 0
      %v3728 = vsel %vm247, %v3655, 0
      %v3730 = vsel %vm247, %v3658, 0
      %v3732 = vsel %vm247, %v3660, 0
      %v3734 = vsel %vm247, %v3663, 0
      %v3736 = vsel %vm247, %v3665, 0
      %v3738 = vsel %vm247, %v3668, 0
      %v3740 = vsel %vm247, %v3670, 0
      %v3742 = vsel %vm247, %v3673, 0
      %v3744 = vsel %vm247, %v3675, 0
      %v3746 = vsel %vm247, %v3678, 0
      %v3748 = vsel %vm247, %v3680, 0
      %3750 = vmatprep.subr.mxu0 0.0
      %3751 = vmatpush1.msra.mxu0 %v3682
      %3752 = vmatprep.subr.mxu0 0.0
      %3753 = vmatpush1.msra.mxu0 %v3683
      %3754 = vmatprep.subr.mxu0 0.0
      %3755 = vmatpush1.msra.mxu0 %v3684
      %3756 = vmatprep.subr.mxu0 0.0
      %3757 = vmatpush1.msra.mxu0 %v3685
      %3758 = vmatprep.subr.mxu0 0.0
      %3759 = vmatpush1.msra.mxu0 0.0
      %3760 = vmatprep.subr.mxu0 0.0
      %3761 = vmatpush1.msra.mxu0 0.0
      %3762 = vmatprep.subr.mxu0 0.0
      %3763 = vmatpush1.msra.mxu0 0.0
      %3764 = vmatprep.subr.mxu0 0.0
      %3765 = vmatpush1.msra.mxu0 0.0
      %3766 = vmatprep.subr.mxu0 0.0
      %3767 = vmatpush1.msra.mxu0 0.0
      %3768 = vmatprep.subr.mxu0 0.0
      %3769 = vmatpush1.msra.mxu0 0.0
      %3770 = vmatprep.subr.mxu0 0.0
      %3771 = vmatpush1.msra.mxu0 0.0
      %3772 = vmatprep.subr.mxu0 0.0
      %3773 = vmatpush1.msra.mxu0 0.0
      %3774 = vmatprep.subr.mxu0 0.0
      %3775 = vmatpush1.msra.mxu0 0.0
      %3776 = vmatprep.subr.mxu0 0.0
      %3777 = vmatpush1.msra.mxu0 0.0
      %3778 = vmatprep.subr.mxu0 0.0
      %3779 = vmatpush1.msra.mxu0 0.0
      %3780 = vmatprep.subr.mxu0 0.0
      %3781 = vmatpush1.msra.mxu0 0.0
      %3782 = vmatprep.subr.mxu0 0.0
      %3783 = vmatpush1.msra.mxu0 0.0
      %3784 = vmatprep.subr.mxu0 0.0
      %3785 = vmatpush1.msra.mxu0 0.0
      %3786 = vmatprep.subr.mxu0 0.0
      %3787 = vmatpush1.msra.mxu0 0.0
      %3788 = vmatprep.subr.mxu0 0.0
      %3789 = vmatpush1.msra.mxu0 0.0
      %3790 = vmatprep.subr.mxu0 0.0
      %3791 = vmatpush1.msra.mxu0 0.0
      %3792 = vmatprep.subr.mxu0 0.0
      %3793 = vmatpush1.msra.mxu0 0.0
      %3794 = vmatprep.subr.mxu0 0.0
      %3795 = vmatpush1.msra.mxu0 0.0
      %3796 = vmatprep.subr.mxu0 0.0
      %3797 = vmatpush1.msra.mxu0 0.0
      %3798 = vmatprep.subr.mxu0 0.0
      %3799 = vmatpush1.msra.mxu0 0.0
      %3800 = vmatprep.subr.mxu0 0.0
      %3801 = vmatpush1.msra.mxu0 0.0
      %3802 = vmatprep.subr.mxu0 0.0
      %3803 = vmatpush1.msra.mxu0 0.0
      %3804 = vmatprep.subr.mxu0 0.0
      %3805 = vmatpush1.msra.mxu0 0.0
      %3806 = vmatprep.subr.mxu0 0.0
      %3807 = vmatpush1.msra.mxu0 0.0
      %3808 = vmatprep.subr.mxu0 0.0
      %3809 = vmatpush1.msra.mxu0 0.0
      %3810 = vmatprep.subr.mxu0 0.0
      %3811 = vmatpush1.msra.mxu0 0.0
      %3812 = vmatprep.subr.mxu0 0.0
      %3813 = vmatpush1.msra.mxu0 0.0
      %3814 = vmatprep.mubr.f32.mxu0 0.0
      %3815 = vmatmul.mubr.f32.gmra.mrb[0].mxu0 %v3686
      %v3816 = vpop.f32.mrb[0].mxu0
      %v3817 = vadd.f32 0.0, %v3816
      %v3818 = vpop.f32.mrb[0].mxu0
      %3819 = vmatprep.mubr.f32.mxu0 0.0
      %3820 = vmatmul.mubr.f32.gmra.mrb[0].mxu0 %v3688
      %v3821 = vpop.f32.mrb[0].mxu0
      %v3822 = vadd.f32 0.0, %v3821
      %v3823 = vpop.f32.mrb[0].mxu0
      %3824 = vmatprep.mubr.f32.mxu0 0.0
      %3825 = vmatmul.mubr.f32.gmra.mrb[0].mxu0 %v3690
      %v3826 = vpop.f32.mrb[0].mxu0
      %v3827 = vadd.f32 0.0, %v3826
      %v3828 = vpop.f32.mrb[0].mxu0
      %3829 = vmatprep.mubr.f32.mxu0 0.0
      %3830 = vmatmul.mubr.f32.gmra.mrb[0].mxu0 %v3692
      %v3831 = vpop.f32.mrb[0].mxu0
      %v3832 = vadd.f32 0.0, %v3831
      %v3833 = vpop.f32.mrb[0].mxu0
      %3834 = vmatprep.mubr.f32.mxu0 0.0
      %3835 = vmatmul.mubr.f32.gmra.mrb[0].mxu0 %v3694
      %v3836 = vpop.f32.mrb[0].mxu0
      %v3837 = vadd.f32 0.0, %v3836
      %v3838 = vpop.f32.mrb[0].mxu0
      %3839 = vmatprep.mubr.f32.mxu0 0.0
      %3840 = vmatmul.mubr.f32.gmra.mrb[0].mxu0 %v3696
      %v3841 = vpop.f32.mrb[0].mxu0
      %v3842 = vadd.f32 0.0, %v3841
      %v3843 = vpop.f32.mrb[0].mxu0
      %3844 = vmatprep.mubr.f32.mxu0 0.0
      %3845 = vmatmul.mubr.f32.gmra.mrb[0].mxu0 %v3698
      %v3846 = vpop.f32.mrb[0].mxu0
      %v3847 = vadd.f32 0.0, %v3846
      %v3848 = vpop.f32.mrb[0].mxu0
      %3849 = vmatprep.mubr.f32.mxu0 0.0
      %3850 = vmatmul.mubr.f32.gmra.mrb[0].mxu0 %v3700
      %v3851 = vpop.f32.mrb[0].mxu0
      %v3852 = vadd.f32 0.0, %v3851
      %v3853 = vpop.f32.mrb[0].mxu0
      %3854 = vmatprep.mubr.f32.mxu0 0.0
      %3855 = vmatmul.mubr.f32.gmra.mrb[0].mxu0 %v3702
      %v3856 = vpop.f32.mrb[0].mxu0
      %v3857 = vadd.f32 0.0, %v3856
      %v3858 = vpop.f32.mrb[0].mxu0
      %3859 = vmatprep.mubr.f32.mxu0 0.0
      %3860 = vmatmul.mubr.f32.gmra.mrb[0].mxu0 %v3704
      %v3861 = vpop.f32.mrb[0].mxu0
      %v3862 = vadd.f32 0.0, %v3861
      %v3863 = vpop.f32.mrb[0].mxu0
      %3864 = vmatprep.mubr.f32.mxu0 0.0
      %3865 = vmatmul.mubr.f32.gmra.mrb[0].mxu0 %v3706
      %v3866 = vpop.f32.mrb[0].mxu0
      %v3867 = vadd.f32 0.0, %v3866
      %v3868 = vpop.f32.mrb[0].mxu0
      %3869 = vmatprep.mubr.f32.mxu0 0.0
      %3870 = vmatmul.mubr.f32.gmra.mrb[0].mxu0 %v3708
      %v3871 = vpop.f32.mrb[0].mxu0
      %v3872 = vadd.f32 0.0, %v3871
      %v3873 = vpop.f32.mrb[0].mxu0
      %3874 = vmatprep.mubr.f32.mxu0 0.0
      %3875 = vmatmul.mubr.f32.gmra.mrb[0].mxu0 %v3710
      %v3876 = vpop.f32.mrb[0].mxu0
      %v3877 = vadd.f32 0.0, %v3876
      %v3878 = vpop.f32.mrb[0].mxu0
      %3879 = vmatprep.mubr.f32.mxu0 0.0
      %3880 = vmatmul.mubr.f32.gmra.mrb[0].mxu0 %v3712
      %v3881 = vpop.f32.mrb[0].mxu0
      %v3882 = vadd.f32 0.0, %v3881
      %v3883 = vpop.f32.mrb[0].mxu0
      %3884 = vmatprep.mubr.f32.mxu0 0.0
      %3885 = vmatmul.mubr.f32.gmra.mrb[0].mxu0 %v3714
      %v3886 = vpop.f32.mrb[0].mxu0
      %v3887 = vadd.f32 0.0, %v3886
      %v3888 = vpop.f32.mrb[0].mxu0
      %3889 = vmatprep.mubr.f32.mxu0 0.0
      %3890 = vmatmul.mubr.f32.gmra.mrb[0].mxu0 %v3716
      %v3891 = vpop.f32.mrb[0].mxu0
      %v3892 = vadd.f32 0.0, %v3891
      %v3893 = vpop.f32.mrb[0].mxu0
      %3894 = vmatprep.mubr.f32.mxu0 0.0
      %3895 = vmatmul.mubr.f32.gmra.mrb[0].mxu0 %v3718
      %v3896 = vpop.f32.mrb[0].mxu0
      %v3897 = vadd.f32 0.0, %v3896
      %v3898 = vpop.f32.mrb[0].mxu0
      %3899 = vmatprep.mubr.f32.mxu0 0.0
      %3900 = vmatmul.mubr.f32.gmra.mrb[0].mxu0 %v3720
      %v3901 = vpop.f32.mrb[0].mxu0
      %v3902 = vadd.f32 0.0, %v3901
      %v3903 = vpop.f32.mrb[0].mxu0
      %3904 = vmatprep.mubr.f32.mxu0 0.0
      %3905 = vmatmul.mubr.f32.gmra.mrb[0].mxu0 %v3722
      %v3906 = vpop.f32.mrb[0].mxu0
      %v3907 = vadd.f32 0.0, %v3906
      %v3908 = vpop.f32.mrb[0].mxu0
      %3909 = vmatprep.mubr.f32.mxu0 0.0
      %3910 = vmatmul.mubr.f32.gmra.mrb[0].mxu0 %v3724
      %v3911 = vpop.f32.mrb[0].mxu0
      %v3912 = vadd.f32 0.0, %v3911
      %v3913 = vpop.f32.mrb[0].mxu0
      %3914 = vmatprep.mubr.f32.mxu0 0.0
      %3915 = vmatmul.mubr.f32.gmra.mrb[0].mxu0 %v3726
      %v3916 = vpop.f32.mrb[0].mxu0
      %v3917 = vadd.f32 0.0, %v3916
      %v3918 = vpop.f32.mrb[0].mxu0
      %3919 = vmatprep.mubr.f32.mxu0 0.0
      %3920 = vmatmul.mubr.f32.gmra.mrb[0].mxu0 %v3728
      %v3921 = vpop.f32.mrb[0].mxu0
      %v3922 = vadd.f32 0.0, %v3921
      %v3923 = vpop.f32.mrb[0].mxu0
      %3924 = vmatprep.mubr.f32.mxu0 0.0
      %3925 = vmatmul.mubr.f32.gmra.mrb[0].mxu0 %v3730
      %v3926 = vpop.f32.mrb[0].mxu0
      %v3927 = vadd.f32 0.0, %v3926
      %v3928 = vpop.f32.mrb[0].mxu0
      %3929 = vmatprep.mubr.f32.mxu0 0.0
      %3930 = vmatmul.mubr.f32.gmra.mrb[0].mxu0 %v3732
      %v3931 = vpop.f32.mrb[0].mxu0
      %v3932 = vadd.f32 0.0, %v3931
      %v3933 = vpop.f32.mrb[0].mxu0
      %3934 = vmatprep.mubr.f32.mxu0 0.0
      %3935 = vmatmul.mubr.f32.gmra.mrb[0].mxu0 %v3734
      %v3936 = vpop.f32.mrb[0].mxu0
      %v3937 = vadd.f32 0.0, %v3936
      %v3938 = vpop.f32.mrb[0].mxu0
      %3939 = vmatprep.mubr.f32.mxu0 0.0
      %3940 = vmatmul.mubr.f32.gmra.mrb[0].mxu0 %v3736
      %v3941 = vpop.f32.mrb[0].mxu0
      %v3942 = vadd.f32 0.0, %v3941
      %v3943 = vpop.f32.mrb[0].mxu0
      %3944 = vmatprep.mubr.f32.mxu0 0.0
      %3945 = vmatmul.mubr.f32.gmra.mrb[0].mxu0 %v3738
      %v3946 = vpop.f32.mrb[0].mxu0
      %v3947 = vadd.f32 0.0, %v3946
      %v3948 = vpop.f32.mrb[0].mxu0
      %3949 = vmatprep.mubr.f32.mxu0 0.0
      %3950 = vmatmul.mubr.f32.gmra.mrb[0].mxu0 %v3740
      %v3951 = vpop.f32.mrb[0].mxu0
      %v3952 = vadd.f32 0.0, %v3951
      %v3953 = vpop.f32.mrb[0].mxu0
      %3954 = vmatprep.mubr.f32.mxu0 0.0
      %3955 = vmatmul.mubr.f32.gmra.mrb[0].mxu0 %v3742
      %v3956 = vpop.f32.mrb[0].mxu0
      %v3957 = vadd.f32 0.0, %v3956
      %v3958 = vpop.f32.mrb[0].mxu0
      %3959 = vmatprep.mubr.f32.mxu0 0.0
      %3960 = vmatmul.mubr.f32.gmra.mrb[0].mxu0 %v3744
      %v3961 = vpop.f32.mrb[0].mxu0
      %v3962 = vadd.f32 0.0, %v3961
      %v3963 = vpop.f32.mrb[0].mxu0
      %3964 = vmatprep.mubr.f32.mxu0 0.0
      %3965 = vmatmul.mubr.f32.gmra.mrb[0].mxu0 %v3746
      %v3966 = vpop.f32.mrb[0].mxu0
      %v3967 = vadd.f32 0.0, %v3966
      %v3968 = vpop.f32.mrb[0].mxu0
      %3969 = vmatprep.mubr.f32.mxu0 0.0
      %3970 = vmatmul.mubr.f32.gmra.mrb[0].mxu0 %v3748
      %v3971 = vpop.f32.mrb[0].mxu0
      %v3972 = vadd.f32 0.0, %v3971
      %v3973 = vpop.f32.mrb[0].mxu0
      %3974 = vdwg.mxu0
      %v3975 = vadd.f32 %v3425, %v3817
      %v3976 = vadd.f32 %v3426, %v3822
      %v3977 = vadd.f32 %v3427, %v3827
      %v3978 = vadd.f32 %v3428, %v3832
      %v3979 = vadd.f32 %v3429, %v3837
      %v3980 = vadd.f32 %v3430, %v3842
      %v3981 = vadd.f32 %v3431, %v3847
      %v3982 = vadd.f32 %v3432, %v3852
      %v3983 = vadd.f32 %v3433, %v3857
      %v3984 = vadd.f32 %v3434, %v3862
      %v3985 = vadd.f32 %v3435, %v3867
      %v3986 = vadd.f32 %v3436, %v3872
      %v3987 = vadd.f32 %v3437, %v3877
      %v3988 = vadd.f32 %v3438, %v3882
      %v3989 = vadd.f32 %v3439, %v3887
      %v3990 = vadd.f32 %v3440, %v3892
      %v3991 = vadd.f32 %v3441, %v3897
      %v3992 = vadd.f32 %v3442, %v3902
      %v3993 = vadd.f32 %v3443, %v3907
      %v3994 = vadd.f32 %v3444, %v3912
      %v3995 = vadd.f32 %v3445, %v3917
      %v3996 = vadd.f32 %v3446, %v3922
      %v3997 = vadd.f32 %v3447, %v3927
      %v3998 = vadd.f32 %v3448, %v3932
      %v3999 = vadd.f32 %v3449, %v3937
      %v4000 = vadd.f32 %v3450, %v3942
      %v4001 = vadd.f32 %v3451, %v3947
      %v4002 = vadd.f32 %v3452, %v3952
      %v4003 = vadd.f32 %v3453, %v3957
      %v4004 = vadd.f32 %v3454, %v3962
      %v4005 = vadd.f32 %v3455, %v3967
      %v4006 = vadd.f32 %v3456, %v3972
      %v4007 = vld [vmem:[%s3034] sm:$0xe]
      %v4008 = vld [vmem:[%s3034 + $0xc] sm:$0xe]
      %v4009 = vld [vmem:[%s3034 + $0x18] sm:$0xe]
      %v4010 = vld [vmem:[%s3034 + $0x24] sm:$0xe]
      %v4011 = vld [vmem:[%s3034 + $0x30] sm:$0xe]
      %v4012 = vld [vmem:[%s3034 + $0x3c] sm:$0xe]
      %v4013 = vld [vmem:[%s3034 + $0x48] sm:$0xe]
      %v4014 = vld [vmem:[%s3034 + $0x54] sm:$0xe]
      %v4015 = vld [vmem:[%s3034 + $0x60] sm:$0xe]
      %v4016 = vld [vmem:[%s3034 + $0x6c] sm:$0xe]
      %v4017 = vld [vmem:[%s3034 + $0x78] sm:$0xe]
      %v4018 = vld [vmem:[%s3034 + $0x84] sm:$0xe]
      %v4019 = vld [vmem:[%s3034 + $0x90] sm:$0xe]
      %v4020 = vld [vmem:[%s3034 + $0x9c] sm:$0xe]
      %v4021 = vld [vmem:[%s3034 + $0xa8] sm:$0xe]
      %v4022 = vld [vmem:[%s3034 + $0xb4] sm:$0xe]
      %v4023 = vunpack.c.l.bf16 %v4007
      %v4024 = vunpack.c.l.bf16 %v4008
      %v4025 = vunpack.c.l.bf16 %v4009
      %v4026 = vunpack.c.l.bf16 %v4010
      %v4027 = vunpack.c.l.bf16 %v4011
      %v4028 = vunpack.c.l.bf16 %v4012
      %v4029 = vunpack.c.l.bf16 %v4013
      %v4030 = vunpack.c.l.bf16 %v4014
      %v4031 = vunpack.c.l.bf16 %v4015
      %v4032 = vunpack.c.l.bf16 %v4016
      %v4033 = vunpack.c.l.bf16 %v4017
      %v4034 = vunpack.c.l.bf16 %v4018
      %v4035 = vunpack.c.l.bf16 %v4019
      %v4036 = vunpack.c.l.bf16 %v4020
      %v4037 = vunpack.c.l.bf16 %v4021
      %v4038 = vunpack.c.l.bf16 %v4022
      %v4055 = vrot.slane %v4023, 2
      %v4056 = vrot.slane %v3506, 2
      %v4057 = vsel %vm1200, %v4055, %v4056
      %v4058 = vrot.slane %v3507, 2
      %v4059 = vsel %vm1200, %v4056, %v4058
      %v4060 = vrot.slane %v4024, 2
      %v4061 = vrot.slane %v3509, 2
      %v4062 = vsel %vm1200, %v4060, %v4061
      %v4063 = vrot.slane %v3510, 2
      %v4064 = vsel %vm1200, %v4061, %v4063
      %v4065 = vrot.slane %v4025, 2
      %v4066 = vrot.slane %v3512, 2
      %v4067 = vsel %vm1200, %v4065, %v4066
      %v4068 = vrot.slane %v3513, 2
      %v4069 = vsel %vm1200, %v4066, %v4068
      %v4070 = vrot.slane %v4026, 2
      %v4071 = vrot.slane %v3515, 2
      %v4072 = vsel %vm1200, %v4070, %v4071
      %v4073 = vrot.slane %v3516, 2
      %v4074 = vsel %vm1200, %v4071, %v4073
      %v4075 = vrot.slane %v4027, 2
      %v4076 = vrot.slane %v3518, 2
      %v4077 = vsel %vm1200, %v4075, %v4076
      %v4078 = vrot.slane %v3519, 2
      %v4079 = vsel %vm1200, %v4076, %v4078
      %v4080 = vrot.slane %v4028, 2
      %v4081 = vrot.slane %v3521, 2
      %v4082 = vsel %vm1200, %v4080, %v4081
      %v4083 = vrot.slane %v3522, 2
      %v4084 = vsel %vm1200, %v4081, %v4083
      %v4085 = vrot.slane %v4029, 2
      %v4086 = vrot.slane %v3524, 2
      %v4087 = vsel %vm1200, %v4085, %v4086
      %v4088 = vrot.slane %v3525, 2
      %v4089 = vsel %vm1200, %v4086, %v4088
      %v4090 = vrot.slane %v4030, 2
      %v4091 = vrot.slane %v3527, 2
      %v4092 = vsel %vm1200, %v4090, %v4091
      %v4093 = vrot.slane %v3528, 2
      %v4094 = vsel %vm1200, %v4091, %v4093
      %v4095 = vrot.slane %v4031, 2
      %v4096 = vrot.slane %v3530, 2
      %v4097 = vsel %vm1200, %v4095, %v4096
      %v4098 = vrot.slane %v3531, 2
      %v4099 = vsel %vm1200, %v4096, %v4098
      %v4100 = vrot.slane %v4032, 2
      %v4101 = vrot.slane %v3533, 2
      %v4102 = vsel %vm1200, %v4100, %v4101
      %v4103 = vrot.slane %v3534, 2
      %v4104 = vsel %vm1200, %v4101, %v4103
      %v4105 = vrot.slane %v4033, 2
      %v4106 = vrot.slane %v3536, 2
      %v4107 = vsel %vm1200, %v4105, %v4106
      %v4108 = vrot.slane %v3537, 2
      %v4109 = vsel %vm1200, %v4106, %v4108
      %v4110 = vrot.slane %v4034, 2
      %v4111 = vrot.slane %v3539, 2
      %v4112 = vsel %vm1200, %v4110, %v4111
      %v4113 = vrot.slane %v3540, 2
      %v4114 = vsel %vm1200, %v4111, %v4113
      %v4115 = vrot.slane %v4035, 2
      %v4116 = vrot.slane %v3542, 2
      %v4117 = vsel %vm1200, %v4115, %v4116
      %v4118 = vrot.slane %v3543, 2
      %v4119 = vsel %vm1200, %v4116, %v4118
      %v4120 = vrot.slane %v4036, 2
      %v4121 = vrot.slane %v3545, 2
      %v4122 = vsel %vm1200, %v4120, %v4121
      %v4123 = vrot.slane %v3546, 2
      %v4124 = vsel %vm1200, %v4121, %v4123
      %v4125 = vrot.slane %v4037, 2
      %v4126 = vrot.slane %v3548, 2
      %v4127 = vsel %vm1200, %v4125, %v4126
      %v4128 = vrot.slane %v3549, 2
      %v4129 = vsel %vm1200, %v4126, %v4128
      %v4130 = vrot.slane %v4038, 2
      %v4131 = vrot.slane %v3551, 2
      %v4132 = vsel %vm1200, %v4130, %v4131
      %v4133 = vrot.slane %v3552, 2
      %v4134 = vsel %vm1200, %v4131, %v4133
      %s4135 = scalar_lea.vmem %s1, 256
      %v4136 = vld [vmem:[%s4135] sm:$0xff]
      %v4137 = vld [vmem:[%s4135 + $0x8] sm:$0xff]
      %v4138 = vld [vmem:[%s4135 + $0x10] sm:$0xff]
      %v4139 = vld [vmem:[%s4135 + $0x18] sm:$0xff]
      %v4140 = vsel %vm247, %v4057, 0
      %v4142 = vsel %vm247, %v4059, 0
      %v4144 = vsel %vm247, %v4062, 0
      %v4146 = vsel %vm247, %v4064, 0
      %v4148 = vsel %vm247, %v4067, 0
      %v4150 = vsel %vm247, %v4069, 0
      %v4152 = vsel %vm247, %v4072, 0
      %v4154 = vsel %vm247, %v4074, 0
      %v4156 = vsel %vm247, %v4077, 0
      %v4158 = vsel %vm247, %v4079, 0
      %v4160 = vsel %vm247, %v4082, 0
      %v4162 = vsel %vm247, %v4084, 0
      %v4164 = vsel %vm247, %v4087, 0
      %v4166 = vsel %vm247, %v4089, 0
      %v4168 = vsel %vm247, %v4092, 0
      %v4170 = vsel %vm247, %v4094, 0
      %v4172 = vsel %vm247, %v4097, 0
      %v4174 = vsel %vm247, %v4099, 0
      %v4176 = vsel %vm247, %v4102, 0
      %v4178 = vsel %vm247, %v4104, 0
      %v4180 = vsel %vm247, %v4107, 0
      %v4182 = vsel %vm247, %v4109, 0
      %v4184 = vsel %vm247, %v4112, 0
      %v4186 = vsel %vm247, %v4114, 0
      %v4188 = vsel %vm247, %v4117, 0
      %v4190 = vsel %vm247, %v4119, 0
      %v4192 = vsel %vm247, %v4122, 0
      %v4194 = vsel %vm247, %v4124, 0
      %v4196 = vsel %vm247, %v4127, 0
      %v4198 = vsel %vm247, %v4129, 0
      %v4200 = vsel %vm247, %v4132, 0
      %v4202 = vsel %vm247, %v4134, 0
      %4204 = vmatprep.subr.mxu0 0.0
      %4205 = vmatpush1.msra.mxu0 %v4136
      %4206 = vmatprep.subr.mxu0 0.0
      %4207 = vmatpush1.msra.mxu0 %v4137
      %4208 = vmatprep.subr.mxu0 0.0
      %4209 = vmatpush1.msra.mxu0 %v4138
      %4210 = vmatprep.subr.mxu0 0.0
      %4211 = vmatpush1.msra.mxu0 %v4139
      %4212 = vmatprep.subr.mxu0 0.0
      %4213 = vmatpush1.msra.mxu0 0.0
      %4214 = vmatprep.subr.mxu0 0.0
      %4215 = vmatpush1.msra.mxu0 0.0
      %4216 = vmatprep.subr.mxu0 0.0
      %4217 = vmatpush1.msra.mxu0 0.0
      %4218 = vmatprep.subr.mxu0 0.0
      %4219 = vmatpush1.msra.mxu0 0.0
      %4220 = vmatprep.subr.mxu0 0.0
      %4221 = vmatpush1.msra.mxu0 0.0
      %4222 = vmatprep.subr.mxu0 0.0
      %4223 = vmatpush1.msra.mxu0 0.0
      %4224 = vmatprep.subr.mxu0 0.0
      %4225 = vmatpush1.msra.mxu0 0.0
      %4226 = vmatprep.subr.mxu0 0.0
      %4227 = vmatpush1.msra.mxu0 0.0
      %4228 = vmatprep.subr.mxu0 0.0
      %4229 = vmatpush1.msra.mxu0 0.0
      %4230 = vmatprep.subr.mxu0 0.0
      %4231 = vmatpush1.msra.mxu0 0.0
      %4232 = vmatprep.subr.mxu0 0.0
      %4233 = vmatpush1.msra.mxu0 0.0
      %4234 = vmatprep.subr.mxu0 0.0
      %4235 = vmatpush1.msra.mxu0 0.0
      %4236 = vmatprep.subr.mxu0 0.0
      %4237 = vmatpush1.msra.mxu0 0.0
      %4238 = vmatprep.subr.mxu0 0.0
      %4239 = vmatpush1.msra.mxu0 0.0
      %4240 = vmatprep.subr.mxu0 0.0
      %4241 = vmatpush1.msra.mxu0 0.0
      %4242 = vmatprep.subr.mxu0 0.0
      %4243 = vmatpush1.msra.mxu0 0.0
      %4244 = vmatprep.subr.mxu0 0.0
      %4245 = vmatpush1.msra.mxu0 0.0
      %4246 = vmatprep.subr.mxu0 0.0
      %4247 = vmatpush1.msra.mxu0 0.0
      %4248 = vmatprep.subr.mxu0 0.0
      %4249 = vmatpush1.msra.mxu0 0.0
      %4250 = vmatprep.subr.mxu0 0.0
      %4251 = vmatpush1.msra.mxu0 0.0
      %4252 = vmatprep.subr.mxu0 0.0
      %4253 = vmatpush1.msra.mxu0 0.0
      %4254 = vmatprep.subr.mxu0 0.0
      %4255 = vmatpush1.msra.mxu0 0.0
      %4256 = vmatprep.subr.mxu0 0.0
      %4257 = vmatpush1.msra.mxu0 0.0
      %4258 = vmatprep.subr.mxu0 0.0
      %4259 = vmatpush1.msra.mxu0 0.0
      %4260 = vmatprep.subr.mxu0 0.0
      %4261 = vmatpush1.msra.mxu0 0.0
      %4262 = vmatprep.subr.mxu0 0.0
      %4263 = vmatpush1.msra.mxu0 0.0
      %4264 = vmatprep.subr.mxu0 0.0
      %4265 = vmatpush1.msra.mxu0 0.0
      %4266 = vmatprep.subr.mxu0 0.0
      %4267 = vmatpush1.msra.mxu0 0.0
      %4268 = vmatprep.mubr.f32.mxu0 0.0
      %4269 = vmatmul.mubr.f32.gmra.mrb[0].mxu0 %v4140
      %v4270 = vpop.f32.mrb[0].mxu0
      %v4271 = vadd.f32 0.0, %v4270
      %v4272 = vpop.f32.mrb[0].mxu0
      %4273 = vmatprep.mubr.f32.mxu0 0.0
      %4274 = vmatmul.mubr.f32.gmra.mrb[0].mxu0 %v4142
      %v4275 = vpop.f32.mrb[0].mxu0
      %v4276 = vadd.f32 0.0, %v4275
      %v4277 = vpop.f32.mrb[0].mxu0
      %4278 = vmatprep.mubr.f32.mxu0 0.0
      %4279 = vmatmul.mubr.f32.gmra.mrb[0].mxu0 %v4144
      %v4280 = vpop.f32.mrb[0].mxu0
      %v4281 = vadd.f32 0.0, %v4280
      %v4282 = vpop.f32.mrb[0].mxu0
      %4283 = vmatprep.mubr.f32.mxu0 0.0
      %4284 = vmatmul.mubr.f32.gmra.mrb[0].mxu0 %v4146
      %v4285 = vpop.f32.mrb[0].mxu0
      %v4286 = vadd.f32 0.0, %v4285
      %v4287 = vpop.f32.mrb[0].mxu0
      %4288 = vmatprep.mubr.f32.mxu0 0.0
      %4289 = vmatmul.mubr.f32.gmra.mrb[0].mxu0 %v4148
      %v4290 = vpop.f32.mrb[0].mxu0
      %v4291 = vadd.f32 0.0, %v4290
      %v4292 = vpop.f32.mrb[0].mxu0
      %4293 = vmatprep.mubr.f32.mxu0 0.0
      %4294 = vmatmul.mubr.f32.gmra.mrb[0].mxu0 %v4150
      %v4295 = vpop.f32.mrb[0].mxu0
      %v4296 = vadd.f32 0.0, %v4295
      %v4297 = vpop.f32.mrb[0].mxu0
      %4298 = vmatprep.mubr.f32.mxu0 0.0
      %4299 = vmatmul.mubr.f32.gmra.mrb[0].mxu0 %v4152
      %v4300 = vpop.f32.mrb[0].mxu0
      %v4301 = vadd.f32 0.0, %v4300
      %v4302 = vpop.f32.mrb[0].mxu0
      %4303 = vmatprep.mubr.f32.mxu0 0.0
      %4304 = vmatmul.mubr.f32.gmra.mrb[0].mxu0 %v4154
      %v4305 = vpop.f32.mrb[0].mxu0
      %v4306 = vadd.f32 0.0, %v4305
      %v4307 = vpop.f32.mrb[0].mxu0
      %4308 = vmatprep.mubr.f32.mxu0 0.0
      %4309 = vmatmul.mubr.f32.gmra.mrb[0].mxu0 %v4156
      %v4310 = vpop.f32.mrb[0].mxu0
      %v4311 = vadd.f32 0.0, %v4310
      %v4312 = vpop.f32.mrb[0].mxu0
      %4313 = vmatprep.mubr.f32.mxu0 0.0
      %4314 = vmatmul.mubr.f32.gmra.mrb[0].mxu0 %v4158
      %v4315 = vpop.f32.mrb[0].mxu0
      %v4316 = vadd.f32 0.0, %v4315
      %v4317 = vpop.f32.mrb[0].mxu0
      %4318 = vmatprep.mubr.f32.mxu0 0.0
      %4319 = vmatmul.mubr.f32.gmra.mrb[0].mxu0 %v4160
      %v4320 = vpop.f32.mrb[0].mxu0
      %v4321 = vadd.f32 0.0, %v4320
      %v4322 = vpop.f32.mrb[0].mxu0
      %4323 = vmatprep.mubr.f32.mxu0 0.0
      %4324 = vmatmul.mubr.f32.gmra.mrb[0].mxu0 %v4162
      %v4325 = vpop.f32.mrb[0].mxu0
      %v4326 = vadd.f32 0.0, %v4325
      %v4327 = vpop.f32.mrb[0].mxu0
      %4328 = vmatprep.mubr.f32.mxu0 0.0
      %4329 = vmatmul.mubr.f32.gmra.mrb[0].mxu0 %v4164
      %v4330 = vpop.f32.mrb[0].mxu0
      %v4331 = vadd.f32 0.0, %v4330
      %v4332 = vpop.f32.mrb[0].mxu0
      %4333 = vmatprep.mubr.f32.mxu0 0.0
      %4334 = vmatmul.mubr.f32.gmra.mrb[0].mxu0 %v4166
      %v4335 = vpop.f32.mrb[0].mxu0
      %v4336 = vadd.f32 0.0, %v4335
      %v4337 = vpop.f32.mrb[0].mxu0
      %4338 = vmatprep.mubr.f32.mxu0 0.0
      %4339 = vmatmul.mubr.f32.gmra.mrb[0].mxu0 %v4168
      %v4340 = vpop.f32.mrb[0].mxu0
      %v4341 = vadd.f32 0.0, %v4340
      %v4342 = vpop.f32.mrb[0].mxu0
      %4343 = vmatprep.mubr.f32.mxu0 0.0
      %4344 = vmatmul.mubr.f32.gmra.mrb[0].mxu0 %v4170
      %v4345 = vpop.f32.mrb[0].mxu0
      %v4346 = vadd.f32 0.0, %v4345
      %v4347 = vpop.f32.mrb[0].mxu0
      %4348 = vmatprep.mubr.f32.mxu0 0.0
      %4349 = vmatmul.mubr.f32.gmra.mrb[0].mxu0 %v4172
      %v4350 = vpop.f32.mrb[0].mxu0
      %v4351 = vadd.f32 0.0, %v4350
      %v4352 = vpop.f32.mrb[0].mxu0
      %4353 = vmatprep.mubr.f32.mxu0 0.0
      %4354 = vmatmul.mubr.f32.gmra.mrb[0].mxu0 %v4174
      %v4355 = vpop.f32.mrb[0].mxu0
      %v4356 = vadd.f32 0.0, %v4355
      %v4357 = vpop.f32.mrb[0].mxu0
      %4358 = vmatprep.mubr.f32.mxu0 0.0
      %4359 = vmatmul.mubr.f32.gmra.mrb[0].mxu0 %v4176
      %v4360 = vpop.f32.mrb[0].mxu0
      %v4361 = vadd.f32 0.0, %v4360
      %v4362 = vpop.f32.mrb[0].mxu0
      %4363 = vmatprep.mubr.f32.mxu0 0.0
      %4364 = vmatmul.mubr.f32.gmra.mrb[0].mxu0 %v4178
      %v4365 = vpop.f32.mrb[0].mxu0
      %v4366 = vadd.f32 0.0, %v4365
      %v4367 = vpop.f32.mrb[0].mxu0
      %4368 = vmatprep.mubr.f32.mxu0 0.0
      %4369 = vmatmul.mubr.f32.gmra.mrb[0].mxu0 %v4180
      %v4370 = vpop.f32.mrb[0].mxu0
      %v4371 = vadd.f32 0.0, %v4370
      %v4372 = vpop.f32.mrb[0].mxu0
      %4373 = vmatprep.mubr.f32.mxu0 0.0
      %4374 = vmatmul.mubr.f32.gmra.mrb[0].mxu0 %v4182
      %v4375 = vpop.f32.mrb[0].mxu0
      %v4376 = vadd.f32 0.0, %v4375
      %v4377 = vpop.f32.mrb[0].mxu0
      %4378 = vmatprep.mubr.f32.mxu0 0.0
      %4379 = vmatmul.mubr.f32.gmra.mrb[0].mxu0 %v4184
      %v4380 = vpop.f32.mrb[0].mxu0
      %v4381 = vadd.f32 0.0, %v4380
      %v4382 = vpop.f32.mrb[0].mxu0
      %4383 = vmatprep.mubr.f32.mxu0 0.0
      %4384 = vmatmul.mubr.f32.gmra.mrb[0].mxu0 %v4186
      %v4385 = vpop.f32.mrb[0].mxu0
      %v4386 = vadd.f32 0.0, %v4385
      %v4387 = vpop.f32.mrb[0].mxu0
      %4388 = vmatprep.mubr.f32.mxu0 0.0
      %4389 = vmatmul.mubr.f32.gmra.mrb[0].mxu0 %v4188
      %v4390 = vpop.f32.mrb[0].mxu0
      %v4391 = vadd.f32 0.0, %v4390
      %v4392 = vpop.f32.mrb[0].mxu0
      %4393 = vmatprep.mubr.f32.mxu0 0.0
      %4394 = vmatmul.mubr.f32.gmra.mrb[0].mxu0 %v4190
      %v4395 = vpop.f32.mrb[0].mxu0
      %v4396 = vadd.f32 0.0, %v4395
      %v4397 = vpop.f32.mrb[0].mxu0
      %4398 = vmatprep.mubr.f32.mxu0 0.0
      %4399 = vmatmul.mubr.f32.gmra.mrb[0].mxu0 %v4192
      %v4400 = vpop.f32.mrb[0].mxu0
      %v4401 = vadd.f32 0.0, %v4400
      %v4402 = vpop.f32.mrb[0].mxu0
      %4403 = vmatprep.mubr.f32.mxu0 0.0
      %4404 = vmatmul.mubr.f32.gmra.mrb[0].mxu0 %v4194
      %v4405 = vpop.f32.mrb[0].mxu0
      %v4406 = vadd.f32 0.0, %v4405
      %v4407 = vpop.f32.mrb[0].mxu0
      %4408 = vmatprep.mubr.f32.mxu0 0.0
      %4409 = vmatmul.mubr.f32.gmra.mrb[0].mxu0 %v4196
      %v4410 = vpop.f32.mrb[0].mxu0
      %v4411 = vadd.f32 0.0, %v4410
      %v4412 = vpop.f32.mrb[0].mxu0
      %4413 = vmatprep.mubr.f32.mxu0 0.0
      %4414 = vmatmul.mubr.f32.gmra.mrb[0].mxu0 %v4198
      %v4415 = vpop.f32.mrb[0].mxu0
      %v4416 = vadd.f32 0.0, %v4415
      %v4417 = vpop.f32.mrb[0].mxu0
      %4418 = vmatprep.mubr.f32.mxu0 0.0
      %4419 = vmatmul.mubr.f32.gmra.mrb[0].mxu0 %v4200
      %v4420 = vpop.f32.mrb[0].mxu0
      %v4421 = vadd.f32 0.0, %v4420
      %v4422 = vpop.f32.mrb[0].mxu0
      %4423 = vmatprep.mubr.f32.mxu0 0.0
      %4424 = vmatmul.mubr.f32.gmra.mrb[0].mxu0 %v4202
      %v4425 = vpop.f32.mrb[0].mxu0
      %v4426 = vadd.f32 0.0, %v4425
      %v4427 = vpop.f32.mrb[0].mxu0
      %4428 = vdwg.mxu0
      %v4429 = vadd.f32 %v3975, %v4271
      %v4430 = vadd.f32 %v3976, %v4276
      %v4431 = vadd.f32 %v3977, %v4281
      %v4432 = vadd.f32 %v3978, %v4286
      %v4433 = vadd.f32 %v3979, %v4291
      %v4434 = vadd.f32 %v3980, %v4296
      %v4435 = vadd.f32 %v3981, %v4301
      %v4436 = vadd.f32 %v3982, %v4306
      %v4437 = vadd.f32 %v3983, %v4311
      %v4438 = vadd.f32 %v3984, %v4316
      %v4439 = vadd.f32 %v3985, %v4321
      %v4440 = vadd.f32 %v3986, %v4326
      %v4441 = vadd.f32 %v3987, %v4331
      %v4442 = vadd.f32 %v3988, %v4336
      %v4443 = vadd.f32 %v3989, %v4341
      %v4444 = vadd.f32 %v3990, %v4346
      %v4445 = vadd.f32 %v3991, %v4351
      %v4446 = vadd.f32 %v3992, %v4356
      %v4447 = vadd.f32 %v3993, %v4361
      %v4448 = vadd.f32 %v3994, %v4366
      %v4449 = vadd.f32 %v3995, %v4371
      %v4450 = vadd.f32 %v3996, %v4376
      %v4451 = vadd.f32 %v3997, %v4381
      %v4452 = vadd.f32 %v3998, %v4386
      %v4453 = vadd.f32 %v3999, %v4391
      %v4454 = vadd.f32 %v4000, %v4396
      %v4455 = vadd.f32 %v4001, %v4401
      %v4456 = vadd.f32 %v4002, %v4406
      %v4457 = vadd.f32 %v4003, %v4411
      %v4458 = vadd.f32 %v4004, %v4416
      %v4459 = vadd.f32 %v4005, %v4421
      %v4460 = vadd.f32 %v4006, %v4426
      %v4461 = vpack.c.bf16 %v4430, %v4429
      %v4462 = vpack.c.bf16 %v4432, %v4431
      %v4463 = vpack.c.bf16 %v4434, %v4433
      %v4464 = vpack.c.bf16 %v4436, %v4435
      %v4465 = vpack.c.bf16 %v4438, %v4437
      %v4466 = vpack.c.bf16 %v4440, %v4439
      %v4467 = vpack.c.bf16 %v4442, %v4441
      %v4468 = vpack.c.bf16 %v4444, %v4443
      %v4469 = vpack.c.bf16 %v4446, %v4445
      %v4470 = vpack.c.bf16 %v4448, %v4447
      %v4471 = vpack.c.bf16 %v4450, %v4449
      %v4472 = vpack.c.bf16 %v4452, %v4451
      %v4473 = vpack.c.bf16 %v4454, %v4453
      %v4474 = vpack.c.bf16 %v4456, %v4455
      %v4475 = vpack.c.bf16 %v4458, %v4457
      %v4476 = vpack.c.bf16 %v4460, %v4459
      %v4493 = vunpack.c.l.b16 %v4461
      %v4494 = vunpack.c.h.b16 %v4461
      %v4495 = vunpack.c.l.b16 %v4462
      %v4496 = vunpack.c.h.b16 %v4462
      %v4497 = vunpack.c.l.b16 %v4463
      %v4498 = vunpack.c.h.b16 %v4463
      %v4499 = vunpack.c.l.b16 %v4464
      %v4500 = vunpack.c.h.b16 %v4464
      %v4501 = vunpack.c.l.b16 %v4465
      %v4502 = vunpack.c.h.b16 %v4465
      %v4503 = vunpack.c.l.b16 %v4466
      %v4504 = vunpack.c.h.b16 %v4466
      %v4505 = vunpack.c.l.b16 %v4467
      %v4506 = vunpack.c.h.b16 %v4467
      %v4507 = vunpack.c.l.b16 %v4468
      %v4508 = vunpack.c.h.b16 %v4468
      %v4509 = vunpack.c.l.b16 %v4469
      %v4510 = vunpack.c.h.b16 %v4469
      %v4511 = vunpack.c.l.b16 %v4470
      %v4512 = vunpack.c.h.b16 %v4470
      %v4513 = vunpack.c.l.b16 %v4471
      %v4514 = vunpack.c.h.b16 %v4471
      %v4515 = vunpack.c.l.b16 %v4472
      %v4516 = vunpack.c.h.b16 %v4472
      %v4517 = vunpack.c.l.b16 %v4473
      %v4518 = vunpack.c.h.b16 %v4473
      %v4519 = vunpack.c.l.b16 %v4474
      %v4520 = vunpack.c.h.b16 %v4474
      %v4521 = vunpack.c.l.b16 %v4475
      %v4522 = vunpack.c.h.b16 %v4475
      %v4523 = vunpack.c.l.b16 %v4476
      %v4524 = vunpack.c.h.b16 %v4476
      %v4525 = vpack.c.b16 %v4493, %v4493
      %v4526 = vpack.c.b16 %v4494, %v4494
      %v4527 = vpack.c.b16 %v4495, %v4495
      %v4528 = vpack.c.b16 %v4496, %v4496
      %v4529 = vpack.c.b16 %v4497, %v4497
      %v4530 = vpack.c.b16 %v4498, %v4498
      %v4531 = vpack.c.b16 %v4499, %v4499
      %v4532 = vpack.c.b16 %v4500, %v4500
      %v4533 = vpack.c.b16 %v4501, %v4501
      %v4534 = vpack.c.b16 %v4502, %v4502
      %v4535 = vpack.c.b16 %v4503, %v4503
      %v4536 = vpack.c.b16 %v4504, %v4504
      %v4537 = vpack.c.b16 %v4505, %v4505
      %v4538 = vpack.c.b16 %v4506, %v4506
      %v4539 = vpack.c.b16 %v4507, %v4507
      %v4540 = vpack.c.b16 %v4508, %v4508
      %v4541 = vpack.c.b16 %v4509, %v4509
      %v4542 = vpack.c.b16 %v4510, %v4510
      %v4543 = vpack.c.b16 %v4511, %v4511
      %v4544 = vpack.c.b16 %v4512, %v4512
      %v4545 = vpack.c.b16 %v4513, %v4513
      %v4546 = vpack.c.b16 %v4514, %v4514
      %v4547 = vpack.c.b16 %v4515, %v4515
      %v4548 = vpack.c.b16 %v4516, %v4516
      %v4549 = vpack.c.b16 %v4517, %v4517
      %v4550 = vpack.c.b16 %v4518, %v4518
      %v4551 = vpack.c.b16 %v4519, %v4519
      %v4552 = vpack.c.b16 %v4520, %v4520
      %v4553 = vpack.c.b16 %v4521, %v4521
      %v4554 = vpack.c.b16 %v4522, %v4522
      %v4555 = vpack.c.b16 %v4523, %v4523
      %v4556 = vpack.c.b16 %v4524, %v4524
      %vm4589 = vcmask 257024
      %4590 = vst.msk [vmem:[%s170] sm:$0xf] %vm4589, %v4525
      %4591 = vst.msk [vmem:[%s170 + $0x4] sm:$0xf] %vm4589, %v4526
      %4592 = vst.msk [vmem:[%s170 + $0x8] sm:$0xf] %vm4589, %v4527
      %4593 = vst.msk [vmem:[%s170 + $0xc] sm:$0xf] %vm4589, %v4528
      %4594 = vst.msk [vmem:[%s170 + $0x10] sm:$0xf] %vm4589, %v4529
      %4595 = vst.msk [vmem:[%s170 + $0x14] sm:$0xf] %vm4589, %v4530
      %4596 = vst.msk [vmem:[%s170 + $0x18] sm:$0xf] %vm4589, %v4531
      %4597 = vst.msk [vmem:[%s170 + $0x1c] sm:$0xf] %vm4589, %v4532
      %4598 = vst.msk [vmem:[%s170 + $0x20] sm:$0xf] %vm4589, %v4533
      %4599 = vst.msk [vmem:[%s170 + $0x24] sm:$0xf] %vm4589, %v4534
      %4600 = vst.msk [vmem:[%s170 + $0x28] sm:$0xf] %vm4589, %v4535
      %4601 = vst.msk [vmem:[%s170 + $0x2c] sm:$0xf] %vm4589, %v4536
      %4602 = vst.msk [vmem:[%s170 + $0x30] sm:$0xf] %vm4589, %v4537
      %4603 = vst.msk [vmem:[%s170 + $0x34] sm:$0xf] %vm4589, %v4538
      %4604 = vst.msk [vmem:[%s170 + $0x38] sm:$0xf] %vm4589, %v4539
      %4605 = vst.msk [vmem:[%s170 + $0x3c] sm:$0xf] %vm4589, %v4540
      %4606 = vst.msk [vmem:[%s170 + $0x40] sm:$0xf] %vm4589, %v4541
      %4607 = vst.msk [vmem:[%s170 + $0x44] sm:$0xf] %vm4589, %v4542
      %4608 = vst.msk [vmem:[%s170 + $0x48] sm:$0xf] %vm4589, %v4543
      %4609 = vst.msk [vmem:[%s170 + $0x4c] sm:$0xf] %vm4589, %v4544
      %4610 = vst.msk [vmem:[%s170 + $0x50] sm:$0xf] %vm4589, %v4545
      %4611 = vst.msk [vmem:[%s170 + $0x54] sm:$0xf] %vm4589, %v4546
      %4612 = vst.msk [vmem:[%s170 + $0x58] sm:$0xf] %vm4589, %v4547
      %4613 = vst.msk [vmem:[%s170 + $0x5c] sm:$0xf] %vm4589, %v4548
      %4614 = vst.msk [vmem:[%s170 + $0x60] sm:$0xf] %vm4589, %v4549
      %4615 = vst.msk [vmem:[%s170 + $0x64] sm:$0xf] %vm4589, %v4550
      %4616 = vst.msk [vmem:[%s170 + $0x68] sm:$0xf] %vm4589, %v4551
      %4617 = vst.msk [vmem:[%s170 + $0x6c] sm:$0xf] %vm4589, %v4552
      %4618 = vst.msk [vmem:[%s170 + $0x70] sm:$0xf] %vm4589, %v4553
      %4619 = vst.msk [vmem:[%s170 + $0x74] sm:$0xf] %vm4589, %v4554
      %4620 = vst.msk [vmem:[%s170 + $0x78] sm:$0xf] %vm4589, %v4555
      %4621 = vst.msk [vmem:[%s170 + $0x7c] sm:$0xf] %vm4589, %v4556
      %p4622 = scmp.lt.s32.totalorder %s14, 1
      %s4623 = scalar_select %p4622, %s14, 1
      %s4624 = smul.addr %s4623, 32
      %s4625 = smul.addr %s4624, 4
      %s4626 = scalar_lea.vmem %s3, %s4625
      // Predicated region
      $region33: #{tpu_custom_call.1} parent=31 // pred_check
        %p4627 = pneg %p100
      $region34: #{tpu_custom_call.1} parent=31 // pred_check_branch
        %4629 = sbr.rel (%p4627) target = $region36
      $region35: #{tpu_custom_call.1} parent=31 // pred_region
        _
      $region36: #{tpu_custom_call.1} parent=31 // pred_fallthru
        _
    $region32: #{tpu_custom_call.1} parent=5 // pred_fallthru
      _
    %p4630 = scmp.le.s32.totalorder 2, %s9
    // Predicated region
    $region37: #{tpu_custom_call.1} parent=5 // pred_check
      %p4631 = pneg %p4630
    $region38: #{tpu_custom_call.1} parent=5 // pred_check_branch
      %4633 = sbr.rel (%p4631) target = $region40
    $region39: #{tpu_custom_call.1} parent=5 // pred_region
      %s4634 = ssub.s32 %s9, 2
      // Predicated region
      $region41: #{tpu_custom_call.1} parent=39 // pred_check
        %p4635 = pneg %p106
      $region42: #{tpu_custom_call.1} parent=39 // pred_check_branch
        %4637 = sbr.rel (%p4635) target = $region44
      $region43: #{tpu_custom_call.1} parent=39 // pred_region
        %p4638 = scmp.lt.s32.totalorder %s15, 1
        %s4639 = scalar_select %p4638, %s15, 1
        %s4640 = smul.addr %s4639, 32
        %s4641 = smul.addr %s4640, 4
        %s4642 = scalar_lea.vmem %s3, %s4641
      $region44: #{tpu_custom_call.1} parent=39 // pred_fallthru
        _
    $region40: #{tpu_custom_call.1} parent=5 // pred_fallthru
      _
  $region6: #{tpu_custom_call.1} parent=0 // loop_footer
    %s13 = sadd.s32 1, %s9
  $region7: #{tpu_custom_call.1} parent=0 // loop_footer_branch
    %8 = sbr.rel target = $region3
  $region8: #{tpu_custom_call.1} parent=0 // loop_exit
    _

</llo_original>
